<compile_context>
chip_gen: v7x
topology: tpu7x:2x2x1
jax: 0.10.0
libtpu: 0.0.40
codegen_flags: <defaults>
</compile_context>

<pallas_src>
import functools

import jax
import jax.numpy as jnp
from jax.experimental import pallas as pl
from jax.experimental.pallas import tpu as pltpu


def _inconv_kernel(xcol_ref, w_ref, o_ref, sum_ref, sq_ref, *,
                   K, KCin, W, row_tile, hw, eps):
    # xcol_ref: (1, K*Cin, Hp, W)      kw-unfolded reflection-padded input (bf16), one sample
    #                                  xcol[0, kw*Cin+ci, h, w] = x_pad[ci, h, w+kw]
    # w_ref   : (Cout_t, K*K*Cin)      weight block (bf16); column index = (kh*K+kw)*Cin + ci
    # o_ref   : (1, Cout_t, T, TR*W)   output block, resident across the row-tile grid axis
    # sum_ref : (Cout_t, 1) f32        running per-channel spatial sum        (two-phase norm)
    # sq_ref  : (Cout_t, 1) f32        running per-channel spatial sum-of-squares
    t = pl.program_id(2)
    TR = row_tile
    row0 = pl.multiple_of(t * TR, TR)

    # --- im2col tile for output rows [row0, row0+TR) ---------------------------------------
    # One dynamic sublane-window load, then K static sublane-offset slices; kw is already
    # unfolded into the channel axis, so no lane-misaligned slicing happens in-kernel.
    slab = xcol_ref[0, :, pl.ds(row0, TR + K - 1), :]                   # (K*Cin, TR+K-1, W)
    a = jnp.concatenate(
        [slab[:, kh:kh + TR, :].reshape(KCin, TR * W) for kh in range(K)],
        axis=0)                                                         # (K*K*Cin, TR*W)

    # --- single folded matmul (one MXU weight pass, f32 accumulation) -----------------------
    conv = jnp.dot(w_ref[...], a, preferred_element_type=jnp.float32)   # (Cout_t, TR*W) f32

    # --- fused InstanceNorm statistics (f32, computed before any output down-cast) ----------
    tile_sum = jnp.sum(conv, axis=1, keepdims=True)                     # (Cout_t, 1)
    tile_sq = jnp.sum(conv * conv, axis=1, keepdims=True)               # (Cout_t, 1)

    @pl.when(t == 0)
    def _():
        sum_ref[...] = jnp.zeros_like(sum_ref)
        sq_ref[...] = jnp.zeros_like(sq_ref)

    sum_ref[...] += tile_sum
    sq_ref[...] += tile_sq

    # Conv tile goes straight into the resident output block (no separate accumulator scratch).
    o_ref[0, :, pl.ds(t, 1), :] = conv.astype(o_ref.dtype)[:, None, :]

    # --- phase 2: normalize + ReLU once all tiles of this (n, channel-block) are done -------
    @pl.when(t == pl.num_programs(2) - 1)
    def _():
        inv_hw = 1.0 / float(hw)
        mean = sum_ref[...] * inv_hw                                    # (Cout_t, 1)
        var = sq_ref[...] * inv_hw - mean * mean                        # biased variance
        inv_std = jax.lax.rsqrt(var + eps)
        y = (o_ref[0].astype(jnp.float32) - mean[:, :, None]) * inv_std[:, :, None]
        o_ref[0] = jnp.maximum(y, 0.0).astype(o_ref.dtype)              # ReLU(inplace=True)


def inconv_forward(x_nchw, w_oihw, bias=None, *, eps=1e-5,
                   row_tile=None, cout_tile=None,
                   mxu_dtype=jnp.bfloat16, out_dtype=jnp.float32):
    """Inconv forward. x: (N, Cin, H, W) f32 -> (N, Cout, H, W) out_dtype.

    The conv bias is accepted for API parity but intentionally NOT applied: the in-kernel
    InstanceNorm2d(affine=False) mean subtraction cancels a per-channel constant exactly.
    (This is not valid for BatchNorm / affine norms — this kernel hard-codes non-affine IN.)
    """
    N, Cin, H, W = x_nchw.shape
    Cout, Cin_w, K, K2 = w_oihw.shape
    assert Cin_w == Cin and K == K2
    pad = (K - 1) // 2                                     # ReflectionPad2d(3) for k=7
    del bias                                               # cancelled by the mean subtraction

    # ---- tiling choices ---------------------------------------------------------------------
    if row_tile is None:
        row_tile = max(1, min(H, 2048 // max(W, 1)))       # ~2k output lanes per tile
        while H % row_tile:
            row_tile -= 1
    if cout_tile is None:                                  # >=2 channel blocks when possible
        cout_tile = Cout // 2 if (Cout % 16 == 0) else Cout
    assert H % row_tile == 0 and Cout % cout_tile == 0
    T = H // row_tile
    CB = Cout // cout_tile
    KKC = K * K * Cin
    Hp = H + 2 * pad

    # ---- wrapper-side layout plumbing (cheap: the input has only Cin channels) ---------------
    xp = jnp.pad(x_nchw, ((0, 0), (0, 0), (pad, pad), (pad, pad)),
                 mode="reflect").astype(mxu_dtype)         # (N, Cin, Hp, Wp)
    # kw-unfold: xcol[n, kw*Cin+ci, h, w] = xp[n, ci, h, w+kw]  -> (N, K*Cin, Hp, W)
    xcol = jnp.concatenate([xp[:, :, :, kw:kw + W] for kw in range(K)], axis=1)
    # weights -> (Cout, K*K*Cin), column index (kh*K + kw)*Cin + ci (matches im2col rows)
    w2 = jnp.transpose(w_oihw, (0, 2, 3, 1)).reshape(Cout, KKC).astype(mxu_dtype)

    kernel = functools.partial(_inconv_kernel, K=K, KCin=K * Cin, W=W,
                               row_tile=row_tile, hw=H * W, eps=eps)

    out = pl.pallas_call(
        kernel,
        out_shape=jax.ShapeDtypeStruct((N, Cout, T, row_tile * W), out_dtype),
        grid_spec=pltpu.PrefetchScalarGridSpec(
            num_scalar_prefetch=0,
            grid=(N, CB, T),          # (batch, channel-block, spatial row tile); T innermost
            in_specs=[
                pl.BlockSpec((1, K * Cin, Hp, W), lambda n, c, t: (n, 0, 0, 0)),
                pl.BlockSpec((cout_tile, KKC), lambda n, c, t: (c, 0)),
            ],
            out_specs=pl.BlockSpec((1, cout_tile, T, row_tile * W),
                                   lambda n, c, t: (n, c, 0, 0)),
            scratch_shapes=[
                pltpu.VMEM((cout_tile, 1), jnp.float32),   # running sum
                pltpu.VMEM((cout_tile, 1), jnp.float32),   # running sum of squares
            ],
        ),
        compiler_params=pltpu.CompilerParams(
            dimension_semantics=("parallel", "parallel", "arbitrary"),
            vmem_limit_bytes=48 * 1024 * 1024,             # headroom even on v7x (64 MiB phys)
        ),
    )(xcol, w2)

    # (N, Cout, T, TR*W) row-major == (N, Cout, H, W): metadata-only reshape.
    return out.reshape(N, Cout, H, W)


def _reference(x_nchw, w_oihw, bias, eps=1e-5, conv_dtype=jnp.bfloat16):
    """Pure-JAX reference (includes the conv bias; InstanceNorm cancels it)."""
    pad = (w_oihw.shape[-1] - 1) // 2
    xp = jnp.pad(x_nchw, ((0, 0), (0, 0), (pad, pad), (pad, pad)), mode="reflect")
    y = jax.lax.conv_general_dilated(
        xp.astype(conv_dtype), w_oihw.astype(conv_dtype),
        window_strides=(1, 1), padding="VALID",
        dimension_numbers=("NCHW", "OIHW", "NCHW"),
        preferred_element_type=jnp.float32)
    y = y + bias.reshape(1, -1, 1, 1)
    mean = jnp.mean(y, axis=(2, 3), keepdims=True)
    var = jnp.mean((y - mean) ** 2, axis=(2, 3), keepdims=True)
    y = (y - mean) * jax.lax.rsqrt(var + eps)
    return jnp.maximum(y, 0.0)


if __name__ == "__main__":
    N, Cin, Cout, H, W, K = 2, 3, 16, 16, 16, 7

    key = jax.random.PRNGKey(0)
    kx, kwt, kb = jax.random.split(key, 3)
    x = jax.random.normal(kx, (N, Cin, H, W), dtype=jnp.float32)
    # Deterministic synthetic parameters (PyTorch-style uniform init).
    fan_in = Cin * K * K
    bound = 1.0 / (fan_in ** 0.5)
    w = jax.random.uniform(kwt, (Cout, Cin, K, K), jnp.float32, -bound, bound)
    b = jax.random.uniform(kb, (Cout,), jnp.float32, -bound, bound)

    ref = _reference(x, w, b)

    # f32 output (module-faithful), 2 row tiles x 2 channel blocks x 2 samples on the grid.
    out = inconv_forward(x, w, b, row_tile=8, cout_tile=8)
    out = jax.block_until_ready(out)
    assert out.shape == (N, Cout, H, W)
    err = float(jnp.max(jnp.abs(out - ref)))
    assert jnp.allclose(out, ref, atol=3e-3, rtol=3e-3), f"f32 mismatch vs reference: {err}"

    # bf16 output path (production setting for v7x): stats stay f32, looser tolerance.
    out_bf16 = jax.block_until_ready(
        inconv_forward(x, w, b, row_tile=8, cout_tile=8, out_dtype=jnp.bfloat16))
    err_b = float(jnp.max(jnp.abs(out_bf16.astype(jnp.float32) - ref)))
    assert jnp.allclose(out_bf16.astype(jnp.float32), ref, atol=3e-2, rtol=3e-2), \
        f"bf16 mismatch vs reference: {err_b}"

    print("KERNEL_OK")
</pallas_src>

<mosaic_0001>
module attributes {stable_mosaic.version = 11 : i64} {
  func.func @_inconv_kernel(%arg0: i32, %arg1: i32, %arg2: i32, %arg3: memref<1x21x22x16xbf16, #tpu.memory_space<vmem>>, %arg4: memref<8x147xbf16, #tpu.memory_space<vmem>>, %arg5: memref<1x8x2x128xf32, #tpu.memory_space<vmem>>, %arg6: memref<8x1xf32, #tpu.memory_space<vmem>>, %arg7: memref<8x1xf32, #tpu.memory_space<vmem>>) attributes {dimension_semantics = [#tpu.dimension_semantics<parallel>, #tpu.dimension_semantics<parallel>, #tpu.dimension_semantics<arbitrary>], iteration_bounds = array<i64: 2, 2, 2>, scalar_prefetch = 0 : i64, scratch_operands = 2 : i64, tpu.core_type = #tpu.core_type<tc>, window_params = [{transform_indices = @transform_0, window_bounds = array<i64: 1, 21, 22, 16>}, {transform_indices = @transform_1, window_bounds = array<i64: 8, 147>}, {transform_indices = @transform_2, window_bounds = array<i64: 1, 8, 2, 128>}]} {
    %c8_i32 = arith.constant 8 : i32
    %0 = arith.muli %arg2, %c8_i32 : i32
    %1 = tpu.assume_multiple %0, 8 : i32
    %c0 = arith.constant 0 : index
    %c0_0 = arith.constant 0 : index
    %2 = arith.index_cast %1 : i32 to index
    %c0_1 = arith.constant 0 : index
    %3 = vector.load %arg3[%c0, %c0_0, %2, %c0_1] : memref<1x21x22x16xbf16, #tpu.memory_space<vmem>>, vector<1x21x14x16xbf16>
    %4 = vector.shape_cast %3 : vector<1x21x14x16xbf16> to vector<21x14x16xbf16>
    %5 = vector.extract_strided_slice %4 {offsets = [0, 0, 0], sizes = [21, 8, 16], strides = [1, 1, 1]} : vector<21x14x16xbf16> to vector<21x8x16xbf16>
    %6 = vector.shape_cast %5 : vector<21x8x16xbf16> to vector<21x128xbf16>
    %7 = vector.extract_strided_slice %4 {offsets = [0, 1, 0], sizes = [21, 8, 16], strides = [1, 1, 1]} : vector<21x14x16xbf16> to vector<21x8x16xbf16>
    %8 = vector.shape_cast %7 : vector<21x8x16xbf16> to vector<21x128xbf16>
    %9 = vector.extract_strided_slice %4 {offsets = [0, 2, 0], sizes = [21, 8, 16], strides = [1, 1, 1]} : vector<21x14x16xbf16> to vector<21x8x16xbf16>
    %10 = vector.shape_cast %9 : vector<21x8x16xbf16> to vector<21x128xbf16>
    %11 = vector.extract_strided_slice %4 {offsets = [0, 3, 0], sizes = [21, 8, 16], strides = [1, 1, 1]} : vector<21x14x16xbf16> to vector<21x8x16xbf16>
    %12 = vector.shape_cast %11 : vector<21x8x16xbf16> to vector<21x128xbf16>
    %13 = vector.extract_strided_slice %4 {offsets = [0, 4, 0], sizes = [21, 8, 16], strides = [1, 1, 1]} : vector<21x14x16xbf16> to vector<21x8x16xbf16>
    %14 = vector.shape_cast %13 : vector<21x8x16xbf16> to vector<21x128xbf16>
    %15 = vector.extract_strided_slice %4 {offsets = [0, 5, 0], sizes = [21, 8, 16], strides = [1, 1, 1]} : vector<21x14x16xbf16> to vector<21x8x16xbf16>
    %16 = vector.shape_cast %15 : vector<21x8x16xbf16> to vector<21x128xbf16>
    %17 = vector.extract_strided_slice %4 {offsets = [0, 6, 0], sizes = [21, 8, 16], strides = [1, 1, 1]} : vector<21x14x16xbf16> to vector<21x8x16xbf16>
    %18 = vector.shape_cast %17 : vector<21x8x16xbf16> to vector<21x128xbf16>
    %19 = tpu.concatenate %6, %8, %10, %12, %14, %16, %18 in 0 : vector<21x128xbf16>, vector<21x128xbf16>, vector<21x128xbf16>, vector<21x128xbf16>, vector<21x128xbf16>, vector<21x128xbf16>, vector<21x128xbf16> -> vector<147x128xbf16>
    %c0_2 = arith.constant 0 : index
    %c0_3 = arith.constant 0 : index
    %20 = vector.load %arg4[%c0_2, %c0_3] : memref<8x147xbf16, #tpu.memory_space<vmem>>, vector<8x147xbf16>
    %cst = arith.constant dense<0.000000e+00> : vector<8x128xf32>
    %21 = tpu.matmul %20, %19, %cst {dimension_numbers = #tpu.dot_dimension_numbers<[1], [0], [0], [1], [0, 0, 1, 1], [], []>} : vector<8x147xbf16>, vector<147x128xbf16>, vector<8x128xf32> -> vector<8x128xf32>
    %cst_4 = arith.constant dense<0.000000e+00> : vector<8xf32>
    %22 = vector.multi_reduction <add>, %21, %cst_4 [1] : vector<8x128xf32> to vector<8xf32>
    %23 = vector.shape_cast %22 : vector<8xf32> to vector<8x1xf32>
    %24 = arith.mulf %21, %21 : vector<8x128xf32>
    %cst_5 = arith.constant dense<0.000000e+00> : vector<8xf32>
    %25 = vector.multi_reduction <add>, %24, %cst_5 [1] : vector<8x128xf32> to vector<8xf32>
    %26 = vector.shape_cast %25 : vector<8xf32> to vector<8x1xf32>
    %c0_i32 = arith.constant 0 : i32
    %27 = arith.cmpi eq, %arg2, %c0_i32 : i32
    %28 = arith.extui %27 : i1 to i32
    %c0_i32_6 = arith.constant 0 : i32
    %29 = arith.cmpi ne, %28, %c0_i32_6 : i32
    scf.if %29 {
      %cst_19 = arith.constant 0.000000e+00 : f32
      %44 = vector.broadcast %cst_19 : f32 to vector<8x1xf32>
      %c0_20 = arith.constant 0 : index
      %c0_21 = arith.constant 0 : index
      %45 = vector.load %arg6[%c0_20, %c0_21] : memref<8x1xf32, #tpu.memory_space<vmem>>, vector<8x1xf32>
      tpu.vector_store %arg6[%c0_20, %c0_21], %44 {strides = array<i32>} : memref<8x1xf32, #tpu.memory_space<vmem>>, vector<8x1xf32>,
      %cst_22 = arith.constant 0.000000e+00 : f32
      %46 = vector.broadcast %cst_22 : f32 to vector<8x1xf32>
      %c0_23 = arith.constant 0 : index
      %c0_24 = arith.constant 0 : index
      %47 = vector.load %arg7[%c0_23, %c0_24] : memref<8x1xf32, #tpu.memory_space<vmem>>, vector<8x1xf32>
      tpu.vector_store %arg7[%c0_23, %c0_24], %46 {strides = array<i32>} : memref<8x1xf32, #tpu.memory_space<vmem>>, vector<8x1xf32>,
    } else {
    }
    %c0_7 = arith.constant 0 : index
    %c0_8 = arith.constant 0 : index
    %30 = vector.load %arg6[%c0_7, %c0_8] : memref<8x1xf32, #tpu.memory_space<vmem>>, vector<8x1xf32>
    %31 = arith.addf %30, %23 : vector<8x1xf32>
    %c0_9 = arith.constant 0 : index
    %c0_10 = arith.constant 0 : index
    %32 = vector.load %arg6[%c0_9, %c0_10] : memref<8x1xf32, #tpu.memory_space<vmem>>, vector<8x1xf32>
    tpu.vector_store %arg6[%c0_9, %c0_10], %31 {strides = array<i32>} : memref<8x1xf32, #tpu.memory_space<vmem>>, vector<8x1xf32>,
    %c0_11 = arith.constant 0 : index
    %c0_12 = arith.constant 0 : index
    %33 = vector.load %arg7[%c0_11, %c0_12] : memref<8x1xf32, #tpu.memory_space<vmem>>, vector<8x1xf32>
    %34 = arith.addf %33, %26 : vector<8x1xf32>
    %c0_13 = arith.constant 0 : index
    %c0_14 = arith.constant 0 : index
    %35 = vector.load %arg7[%c0_13, %c0_14] : memref<8x1xf32, #tpu.memory_space<vmem>>, vector<8x1xf32>
    tpu.vector_store %arg7[%c0_13, %c0_14], %34 {strides = array<i32>} : memref<8x1xf32, #tpu.memory_space<vmem>>, vector<8x1xf32>,
    %36 = vector.shape_cast %21 : vector<8x128xf32> to vector<8x1x128xf32>
    %c0_15 = arith.constant 0 : index
    %c0_16 = arith.constant 0 : index
    %37 = arith.index_cast %arg2 : i32 to index
    %c0_17 = arith.constant 0 : index
    %38 = vector.load %arg5[%c0_15, %c0_16, %37, %c0_17] : memref<1x8x2x128xf32, #tpu.memory_space<vmem>>, vector<1x8x1x128xf32>
    %39 = vector.shape_cast %38 : vector<1x8x1x128xf32> to vector<8x1x128xf32>
    %40 = vector.shape_cast %36 : vector<8x1x128xf32> to vector<1x8x1x128xf32>
    tpu.vector_store %arg5[%c0_15, %c0_16, %37, %c0_17], %40 {strides = array<i32>} : memref<1x8x2x128xf32, #tpu.memory_space<vmem>>, vector<1x8x1x128xf32>,
    %c1_i32 = arith.constant 1 : i32
    %41 = arith.cmpi eq, %arg2, %c1_i32 : i32
    %42 = arith.extui %41 : i1 to i32
    %c0_i32_18 = arith.constant 0 : i32
    %43 = arith.cmpi ne, %42, %c0_i32_18 : i32
    scf.if %43 {
      %c0_19 = arith.constant 0 : index
      %c0_20 = arith.constant 0 : index
      %44 = vector.load %arg6[%c0_19, %c0_20] : memref<8x1xf32, #tpu.memory_space<vmem>>, vector<8x1xf32>
      %cst_21 = arith.constant 3.906250e-03 : f32
      %45 = vector.broadcast %cst_21 : f32 to vector<8x1xf32>
      %46 = arith.mulf %44, %45 : vector<8x1xf32>
      %c0_22 = arith.constant 0 : index
      %c0_23 = arith.constant 0 : index
      %47 = vector.load %arg7[%c0_22, %c0_23] : memref<8x1xf32, #tpu.memory_space<vmem>>, vector<8x1xf32>
      %cst_24 = arith.constant 3.906250e-03 : f32
      %48 = vector.broadcast %cst_24 : f32 to vector<8x1xf32>
      %49 = arith.mulf %47, %48 : vector<8x1xf32>
      %50 = arith.mulf %46, %46 : vector<8x1xf32>
      %51 = arith.subf %49, %50 : vector<8x1xf32>
      %cst_25 = arith.constant 9.99999974E-6 : f32
      %52 = vector.broadcast %cst_25 : f32 to vector<8x1xf32>
      %53 = arith.addf %51, %52 : vector<8x1xf32>
      %54 = math.rsqrt %53 : vector<8x1xf32>
      %c0_26 = arith.constant 0 : index
      %c0_27 = arith.constant 0 : index
      %c0_28 = arith.constant 0 : index
      %c0_29 = arith.constant 0 : index
      %55 = vector.load %arg5[%c0_26, %c0_27, %c0_28, %c0_29] : memref<1x8x2x128xf32, #tpu.memory_space<vmem>>, vector<1x8x2x128xf32>
      %56 = vector.shape_cast %55 : vector<1x8x2x128xf32> to vector<8x2x128xf32>
      %57 = vector.shape_cast %46 : vector<8x1xf32> to vector<8x1x1xf32>
      %58 = vector.broadcast %57 : vector<8x1x1xf32> to vector<8x2x128xf32>
      %59 = arith.subf %56, %58 : vector<8x2x128xf32>
      %60 = vector.shape_cast %54 : vector<8x1xf32> to vector<8x1x1xf32>
      %61 = vector.broadcast %60 : vector<8x1x1xf32> to vector<8x2x128xf32>
      %62 = arith.mulf %59, %61 : vector<8x2x128xf32>
      %cst_30 = arith.constant 0.000000e+00 : f32
      %63 = vector.broadcast %cst_30 : f32 to vector<8x2x128xf32>
      %64 = arith.maximumf %62, %63 : vector<8x2x128xf32>
      %c0_31 = arith.constant 0 : index
      %c0_32 = arith.constant 0 : index
      %c0_33 = arith.constant 0 : index
      %c0_34 = arith.constant 0 : index
      %65 = vector.load %arg5[%c0_31, %c0_32, %c0_33, %c0_34] : memref<1x8x2x128xf32, #tpu.memory_space<vmem>>, vector<1x8x2x128xf32>
      %66 = vector.shape_cast %65 : vector<1x8x2x128xf32> to vector<8x2x128xf32>
      %67 = vector.shape_cast %64 : vector<8x2x128xf32> to vector<1x8x2x128xf32>
      tpu.vector_store %arg5[%c0_31, %c0_32, %c0_33, %c0_34], %67 {strides = array<i32>} : memref<1x8x2x128xf32, #tpu.memory_space<vmem>>, vector<1x8x2x128xf32>,
    } else {
    }
    return
  }
  func.func @transform_0(%arg0: i32, %arg1: i32, %arg2: i32) -> (i32, i32, i32, i32) {
    %c0_i32 = arith.constant 0 : i32
    %c0_i32_0 = arith.constant 0 : i32
    %c0_i32_1 = arith.constant 0 : i32
    %c0_i32_2 = arith.constant 0 : i32
    return %arg0, %c0_i32, %c0_i32_0, %c0_i32_1 : i32, i32, i32, i32
  }
  func.func @transform_1(%arg0: i32, %arg1: i32, %arg2: i32) -> (i32, i32) {
    %c0_i32 = arith.constant 0 : i32
    %c0_i32_0 = arith.constant 0 : i32
    return %arg1, %c0_i32 : i32, i32
  }
  func.func @transform_2(%arg0: i32, %arg1: i32, %arg2: i32) -> (i32, i32, i32, i32) {
    %c0_i32 = arith.constant 0 : i32
    %c0_i32_0 = arith.constant 0 : i32
    %c0_i32_1 = arith.constant 0 : i32
    return %arg0, %arg1, %c0_i32, %c0_i32_0 : i32, i32, i32, i32
  }
}

</mosaic_0001>

<llo_original>
// kernel: tpu_custom_call.1
$region0: #{tpu_custom_call.1}
  #allocation0 [shape = 'u32[]', space=smem, size = 0x4, offset = 0x4, fixed_abs, tag = 'smem constant byte address 0x4 - core index']
  #allocation1 [shape = 'u32[144,128]{1,0:T(1,128)}', space=vmem, size = 0x12000, scoped, tag = 'internal scratch']
  #allocation2 [shape = 'f32[8,1]{1,0:T(8,128)}', space=vmem, size = 0x1000, scoped, tag = 'scratch operand']
  #allocation3 [shape = 'f32[8,1]{1,0:T(8,128)}', space=vmem, size = 0x1000, scoped, tag = 'scratch operand']
  %s0 = inlined_call_operand.vmem [shape: bf16[2,21,22,16], index: 0, kind: input, shape index: {}]
  %s1 = inlined_call_operand.vmem [shape: bf16[16,147], index: 1, kind: input, shape index: {}]
  %s2 = inlined_call_operand.hbm [shape: f32[2,16,2,128], index: 2, kind: output, shape index: {}]
  %s3 = sld [smem:[#allocation0]]
  $region49: #{tpu_custom_call.1} parent=0
    _
  %s5 = ssub.s32 1, %s3
  %s6 = scalar_select 0, %s5, %s3
  $region1: #{tpu_custom_call.1} parent=0
    #allocation4 [shape = 'u8[16384]{0}', space=vmem, size = 0x4000, scoped, tag = 'output window, operand 0']
    #allocation5 [shape = 's32[2]{0}', space=sflag, size = 0x8, scoped, tag = 'scoped memory for tpu_custom_call.1']
    %7 = vsyncpa [#allocation5], 0
    %s8 = scalar_lea.sflag [#allocation5], 1
    %9 = vsyncpa %s8, 0
    loop: start=0, step=1, limit=10
    $region2: #{tpu_custom_call.1} parent=1 // loop_pre_header
      _
    $region3: #{tpu_custom_call.1} parent=1 // loop_header
      %s11 = sphi 0, %s15
      %p12 = scmp.ge.s32.totalorder %s11, 10
      %s18 = sphi 0, %s37
      %s19 = sphi 0, %s33
      %s20 = sphi 0, %s29
      %s21 = sphi 0, %s18
      %s22 = sphi 0, %s19
      %s23 = sphi 0, %s20
      %s24 = sphi 0, %s21
      %s25 = sphi 0, %s22
      %s26 = sphi 0, %s23
      %s40 = sphi 0, %s42
      %s43 = sphi 0, %s40
      %s44 = sphi 0, %s43
      %s60 = sphi 0, %s44
      %s66 = sphi 0, %s68
      %s69 = sphi 0, %s66
      %s70 = sphi 0, %s69
      %s86 = sphi 0, %s70
      %s94 = sphi 0, %s96
      %s97 = sphi 0, %s94
      %s98 = sphi 0, %s97
      %s114 = sphi 0, %s98
    $region4: #{tpu_custom_call.1} parent=1 // loop_header_branch
      %14 = sbr.rel (%p12) target = $region8
    $region5: #{tpu_custom_call.1} parent=1 // loop_body
      %s16 = ssub.s32 %s11, 1
      %s17 = ssub.s32 %s11, 2
      %s27 = sadd.s32 1, %s20
      %p28 = scmp.ge.s32.totalorder %s27, 2
      %s29 = scalar_select %p28, 0, %s27
      %s30 = sadd.s32 1, %s19
      %s31 = scalar_select %p28, %s30, %s19
      %p32 = scmp.ge.s32.totalorder %s31, 2
      %s33 = scalar_select %p32, 0, %s31
      %s34 = sadd.s32 1, %s18
      %s35 = scalar_select %p32, %s34, %s18
      %p36 = scmp.ge.s32.totalorder %s35, 2
      %s37 = scalar_select %p36, 0, %s35
      %s38 = ssub.s32 %s18, %s37
      %p39 = scmp.eq.s32.totalorder %s38, 0
      %s41 = sadd.s32 %s40, 1
      %s42 = scalar_select %p39, %s40, %s41
      %p45 = pneg %p39
      %p46 = scmp.eq.s32.totalorder %s11, 7
      %p47 = por %p45, %p46
      %p48 = scmp.ne.s32.totalorder %s40, %s43
      %p49 = scmp.eq.s32.totalorder %s11, 0
      %p50 = por %p48, %p49
      %p51 = scmp.ne.s32.totalorder %s40, %s43
      %p52 = scmp.eq.s32.totalorder %s16, 7
      %p53 = por %p51, %p52
      %p54 = scmp.ne.s32.totalorder %s43, %s44
      %p55 = scmp.eq.s32.totalorder %s16, 0
      %p56 = por %p54, %p55
      %p57 = scmp.ne.s32.totalorder %s43, %s44
      %p58 = scmp.eq.s32.totalorder %s17, 7
      %p59 = por %p57, %p58
      %p61 = scmp.ne.s32.totalorder %s44, %s60
      %p62 = scmp.eq.s32.totalorder %s17, 0
      %p63 = por %p61, %p62
      %s64 = ssub.s32 %s19, %s33
      %p65 = scmp.eq.s32.totalorder %s64, 0
      %s67 = sadd.s32 %s66, 1
      %s68 = scalar_select %p65, %s66, %s67
      %p71 = pneg %p65
      %p72 = scmp.eq.s32.totalorder %s11, 7
      %p73 = por %p71, %p72
      %p74 = scmp.ne.s32.totalorder %s66, %s69
      %p75 = scmp.eq.s32.totalorder %s11, 0
      %p76 = por %p74, %p75
      %p77 = scmp.ne.s32.totalorder %s66, %s69
      %p78 = scmp.eq.s32.totalorder %s16, 7
      %p79 = por %p77, %p78
      %p80 = scmp.ne.s32.totalorder %s69, %s70
      %p81 = scmp.eq.s32.totalorder %s16, 0
      %p82 = por %p80, %p81
      %p83 = scmp.ne.s32.totalorder %s69, %s70
      %p84 = scmp.eq.s32.totalorder %s17, 7
      %p85 = por %p83, %p84
      %p87 = scmp.ne.s32.totalorder %s70, %s86
      %p88 = scmp.eq.s32.totalorder %s17, 0
      %p89 = por %p87, %p88
      %s90 = ssub.s32 %s18, %s37
      %s91 = ssub.s32 %s19, %s33
      %s92 = sor.u32 %s90, %s91
      %p93 = scmp.eq.s32.totalorder %s92, 0
      %s95 = sadd.s32 %s94, 1
      %s96 = scalar_select %p93, %s94, %s95
      %p99 = pneg %p93
      %p100 = scmp.eq.s32.totalorder %s11, 7
      %p101 = por %p99, %p100
      %p102 = scmp.ne.s32.totalorder %s94, %s97
      %p103 = scmp.eq.s32.totalorder %s11, 0
      %p104 = por %p102, %p103
      %p105 = scmp.ne.s32.totalorder %s94, %s97
      %p106 = scmp.eq.s32.totalorder %s16, 7
      %p107 = por %p105, %p106
      %p108 = scmp.ne.s32.totalorder %s97, %s98
      %p109 = scmp.eq.s32.totalorder %s16, 0
      %p110 = por %p108, %p109
      %p111 = scmp.ne.s32.totalorder %s97, %s98
      %p112 = scmp.eq.s32.totalorder %s17, 7
      %p113 = por %p111, %p112
      %p115 = scmp.ne.s32.totalorder %s98, %s114
      %p116 = scmp.eq.s32.totalorder %s17, 0
      %p117 = por %p115, %p116
      %p118 = scmp.le.s32.totalorder 1, %s11
      %p119 = scmp.lt.s32.totalorder %s11, 9
      %p120 = pnand %p118, %p119
      %p121 = pneg %p120
      // Predicated region
      $region9: #{tpu_custom_call.1} parent=5 // pred_check
        _
      $region10: #{tpu_custom_call.1} parent=5 // pred_check_branch
        %123 = sbr.rel (%p120) target = $region12
      $region11: #{tpu_custom_call.1} parent=5 // pred_region
        %s124 = ssub.s32 %s11, 1
      $region12: #{tpu_custom_call.1} parent=5 // pred_fallthru
        _
      %p125 = scmp.lt.s32.totalorder %s11, 8
      // Predicated region
      $region13: #{tpu_custom_call.1} parent=5 // pred_check
        %p126 = pneg %p125
      $region14: #{tpu_custom_call.1} parent=5 // pred_check_branch
        %128 = sbr.rel (%p126) target = $region16
      $region15: #{tpu_custom_call.1} parent=5 // pred_region
        // Predicated region
        $region17: #{tpu_custom_call.1} parent=15 // pred_check
          %p129 = pneg %p50
        $region18: #{tpu_custom_call.1} parent=15 // pred_check_branch
          %131 = sbr.rel (%p129) target = $region20
        $region19: #{tpu_custom_call.1} parent=15 // pred_region
          %p132 = scmp.lt.s32.totalorder %s18, 1
          %s133 = scalar_select %p132, %s18, 1
          %s134 = smul.addr %s133, 63
          %s135 = smul.addr %s134, 4
          %s136 = scalar_lea.vmem %s0, %s135
        $region20: #{tpu_custom_call.1} parent=15 // pred_fallthru
          _
        // Predicated region
        $region21: #{tpu_custom_call.1} parent=15 // pred_check
          %p137 = pneg %p76
        $region22: #{tpu_custom_call.1} parent=15 // pred_check_branch
          %139 = sbr.rel (%p137) target = $region24
        $region23: #{tpu_custom_call.1} parent=15 // pred_region
          %p140 = scmp.lt.s32.totalorder %s19, 1
          %s141 = scalar_select %p140, %s19, 1
          %s142 = smul.addr %s141, 2
          %s143 = smul.addr %s142, 4
          %s144 = scalar_lea.vmem %s1, %s143
        $region24: #{tpu_custom_call.1} parent=15 // pred_fallthru
          _
      $region16: #{tpu_custom_call.1} parent=5 // pred_fallthru
        _
      %p145 = scmp.le.s32.totalorder 1, %s11
      %p146 = scmp.lt.s32.totalorder %s11, 9
      %p147 = pnand %p145, %p146
      %p148 = pneg %p147
      // Predicated region
      $region25: #{tpu_custom_call.1} parent=5 // pred_check
        _
      $region26: #{tpu_custom_call.1} parent=5 // pred_check_branch
        %150 = sbr.rel (%p147) target = $region28
      $region27: #{tpu_custom_call.1} parent=5 // pred_region
        %s151 = ssub.s32 %s11, 1
        %p152 = scmp.lt.s32.totalorder %s21, 1
        %s153 = scalar_select %p152, %s21, 1
        %s154 = smul.addr %s153, 63
        %s155 = smul.addr %s154, 4
        %s156 = scalar_lea.vmem %s0, %s155
        %p157 = pneg %p56
        %p158 = pneg %p53
        %p159 = scmp.lt.s32.totalorder %s22, 1
        %s160 = scalar_select %p159, %s22, 1
        %s161 = smul.addr %s160, 2
        %s162 = smul.addr %s161, 4
        %s163 = scalar_lea.vmem %s1, %s162
        %p164 = pneg %p82
        %p165 = pneg %p79
        %p166 = pneg %p110
        %p167 = pneg %p107
        %s168 = sand.u32 %s97, 1
        %s169 = scalar_lea.sflag [#allocation5], %s168
        %s170 = sand.u32 %s97, 1
        %s171 = smul.addr %s170, 16
        %s172 = scalar_lea.vmem [#allocation4], %s171
        %p173 = scmp.lt.s32.totalorder %s21, 1
        %s174 = scalar_select %p173, %s21, 1
        %s175 = smul.addr %s174, 63
        %s176 = smul.addr %s175, 4
        %s177 = scalar_lea.vmem %s0, %s176
        %p178 = scmp.lt.s32.totalorder %s22, 1
        %s179 = scalar_select %p178, %s22, 1
        %s180 = smul.addr %s179, 2
        %s181 = smul.addr %s180, 4
        %s182 = scalar_lea.vmem %s1, %s181
        %s183 = smul.u32 8, %s22
        %s185 = smul.u32 %s23, 8
        %s186 = sshra.s32 %s185, 3
        %s187 = sand.u32 %s185, 7
        %s188 = smul.addr %s186, 4
        %s189 = scalar_lea.vmem %s177, %s188
        %v190 = vld [vmem:[%s189] sm:$0xf]
        %v191 = vld [vmem:[%s189 + $0x4] sm:$0x7]
        %v192 = vld [vmem:[%s189 + $0xc] sm:$0xf]
        %v193 = vld [vmem:[%s189 + $0x10] sm:$0x7]
        %v194 = vld [vmem:[%s189 + $0x18] sm:$0xf]
        %v195 = vld [vmem:[%s189 + $0x1c] sm:$0x7]
        %v196 = vld [vmem:[%s189 + $0x24] sm:$0xf]
        %v197 = vld [vmem:[%s189 + $0x28] sm:$0x7]
        %v198 = vld [vmem:[%s189 + $0x30] sm:$0xf]
        %v199 = vld [vmem:[%s189 + $0x34] sm:$0x7]
        %v200 = vld [vmem:[%s189 + $0x3c] sm:$0xf]
        %v201 = vld [vmem:[%s189 + $0x40] sm:$0x7]
        %v202 = vld [vmem:[%s189 + $0x48] sm:$0xf]
        %v203 = vld [vmem:[%s189 + $0x4c] sm:$0x7]
        %v204 = vld [vmem:[%s189 + $0x54] sm:$0xf]
        %v205 = vld [vmem:[%s189 + $0x58] sm:$0x7]
        %v206 = vld [vmem:[%s189 + $0x60] sm:$0xf]
        %v207 = vld [vmem:[%s189 + $0x64] sm:$0x7]
        %v208 = vld [vmem:[%s189 + $0x6c] sm:$0xf]
        %v209 = vld [vmem:[%s189 + $0x70] sm:$0x7]
        %v210 = vld [vmem:[%s189 + $0x78] sm:$0xf]
        %v211 = vld [vmem:[%s189 + $0x7c] sm:$0x7]
        %v212 = vld [vmem:[%s189 + $0x84] sm:$0xf]
        %v213 = vld [vmem:[%s189 + $0x88] sm:$0x7]
        %v214 = vld [vmem:[%s189 + $0x90] sm:$0xf]
        %v215 = vld [vmem:[%s189 + $0x94] sm:$0x7]
        %v216 = vld [vmem:[%s189 + $0x9c] sm:$0xf]
        %v217 = vld [vmem:[%s189 + $0xa0] sm:$0x7]
        %v218 = vld [vmem:[%s189 + $0xa8] sm:$0xf]
        %v219 = vld [vmem:[%s189 + $0xac] sm:$0x7]
        %v220 = vld [vmem:[%s189 + $0xb4] sm:$0xf]
        %v221 = vld [vmem:[%s189 + $0xb8] sm:$0x7]
        %v222 = vld [vmem:[%s189 + $0xc0] sm:$0xf]
        %v223 = vld [vmem:[%s189 + $0xc4] sm:$0x7]
        %v224 = vld [vmem:[%s189 + $0xcc] sm:$0xf]
        %v225 = vld [vmem:[%s189 + $0xd0] sm:$0x7]
        %v226 = vld [vmem:[%s189 + $0xd8] sm:$0xf]
        %v227 = vld [vmem:[%s189 + $0xdc] sm:$0x7]
        %v228 = vld [vmem:[%s189 + $0xe4] sm:$0xf]
        %v229 = vld [vmem:[%s189 + $0xe8] sm:$0x7]
        %v230 = vld [vmem:[%s189 + $0xf0] sm:$0xf]
        %v231 = vld [vmem:[%s189 + $0xf4] sm:$0x7]
        %v234 = vpack.i.b16 %v192, %v190
        %v236 = vshrl.u32 %v190, 16
        %v237 = vshrl.u32 %v192, 16
        %v238 = vpack.i.b16 %v237, %v236
        %v242 = vpack.i.b16 %v196, %v194
        %v244 = vshrl.u32 %v194, 16
        %v245 = vshrl.u32 %v196, 16
        %v246 = vpack.i.b16 %v245, %v244
        %v250 = vpack.i.b16 %v200, %v198
        %v252 = vshrl.u32 %v198, 16
        %v253 = vshrl.u32 %v200, 16
        %v254 = vpack.i.b16 %v253, %v252
        %v258 = vpack.i.b16 %v204, %v202
        %v260 = vshrl.u32 %v202, 16
        %v261 = vshrl.u32 %v204, 16
        %v262 = vpack.i.b16 %v261, %v260
        %v266 = vpack.i.b16 %v208, %v206
        %v268 = vshrl.u32 %v206, 16
        %v269 = vshrl.u32 %v208, 16
        %v270 = vpack.i.b16 %v269, %v268
        %v274 = vpack.i.b16 %v212, %v210
        %v276 = vshrl.u32 %v210, 16
        %v277 = vshrl.u32 %v212, 16
        %v278 = vpack.i.b16 %v277, %v276
        %v282 = vpack.i.b16 %v216, %v214
        %v284 = vshrl.u32 %v214, 16
        %v285 = vshrl.u32 %v216, 16
        %v286 = vpack.i.b16 %v285, %v284
        %v290 = vpack.i.b16 %v220, %v218
        %v292 = vshrl.u32 %v218, 16
        %v293 = vshrl.u32 %v220, 16
        %v294 = vpack.i.b16 %v293, %v292
        %v298 = vpack.i.b16 %v224, %v222
        %v300 = vshrl.u32 %v222, 16
        %v301 = vshrl.u32 %v224, 16
        %v302 = vpack.i.b16 %v301, %v300
        %v306 = vpack.i.b16 %v228, %v226
        %v307 = vshrl.u32 %v226, 16
        %v308 = vshrl.u32 %v228, 16
        %v309 = vpack.i.b16 %v308, %v307
        %v312 = vpack.i.b16 0, %v230
        %v314 = vshrl.u32 %v230, 16
        %v315 = vshrl.u32 0, 16
        %v316 = vpack.i.b16 %v315, %v314
        %v318 = vcombine.low %v234, %v250
        %v320 = vunpack.c.l.s4 1983009808
        %v321 = vunpack.c.0.s8 %v320
        %v322 = vlaneseq
        %v323 = vshrl.u32 %v322, 7
        %v324 = vsub.s32 %v321, %v323
        %v325 = vrot.slane %v318, %v324
        %v326 = vcombine.low %v242, %v258
        %v328 = vunpack.c.l.s4 1983009808
        %v329 = vunpack.c.0.s8 %v328
        %v330 = vlaneseq
        %v331 = vshrl.u32 %v330, 7
        %v332 = vsub.s32 %v329, %v331
        %v333 = vrot.slane %v326, %v332
        %v334 = vcombine.low %v325, %v333
        %v335 = vcombine.high %v325, %v333
        %v337 = vunpack.c.l.s4 1934713408
        %v338 = vunpack.c.0.s8 %v337
        %v339 = vlaneseq
        %v340 = vshrl.u32 %v339, 7
        %v341 = vsub.s32 %v338, %v340
        %v342 = vrot.slane %v334, %v341
        %v344 = vunpack.c.l.s4 1934713408
        %v345 = vunpack.c.0.s8 %v344
        %v346 = vlaneseq
        %v347 = vshrl.u32 %v346, 7
        %v348 = vsub.s32 %v345, %v347
        %v349 = vrot.slane %v335, %v348
        %v350 = vcombine.high %v342, 0
        %v351 = vcombine.high %v349, 0
        %v352 = vcombine.low %v238, %v254
        %v354 = vunpack.c.l.s4 1983009808
        %v355 = vunpack.c.0.s8 %v354
        %v356 = vlaneseq
        %v357 = vshrl.u32 %v356, 7
        %v358 = vsub.s32 %v355, %v357
        %v359 = vrot.slane %v352, %v358
        %v360 = vcombine.low %v246, %v262
        %v362 = vunpack.c.l.s4 1983009808
        %v363 = vunpack.c.0.s8 %v362
        %v364 = vlaneseq
        %v365 = vshrl.u32 %v364, 7
        %v366 = vsub.s32 %v363, %v365
        %v367 = vrot.slane %v360, %v366
        %v368 = vcombine.low %v359, %v367
        %v369 = vcombine.high %v359, %v367
        %v371 = vunpack.c.l.s4 1934713408
        %v372 = vunpack.c.0.s8 %v371
        %v373 = vlaneseq
        %v374 = vshrl.u32 %v373, 7
        %v375 = vsub.s32 %v372, %v374
        %v376 = vrot.slane %v368, %v375
        %v378 = vunpack.c.l.s4 1934713408
        %v379 = vunpack.c.0.s8 %v378
        %v380 = vlaneseq
        %v381 = vshrl.u32 %v380, 7
        %v382 = vsub.s32 %v379, %v381
        %v383 = vrot.slane %v369, %v382
        %v384 = vcombine.high %v376, 0
        %v385 = vcombine.high %v383, 0
        %v386 = vcombine.low %v266, %v282
        %v388 = vunpack.c.l.s4 1983009808
        %v389 = vunpack.c.0.s8 %v388
        %v390 = vlaneseq
        %v391 = vshrl.u32 %v390, 7
        %v392 = vsub.s32 %v389, %v391
        %v393 = vrot.slane %v386, %v392
        %v394 = vcombine.low %v274, %v290
        %v396 = vunpack.c.l.s4 1983009808
        %v397 = vunpack.c.0.s8 %v396
        %v398 = vlaneseq
        %v399 = vshrl.u32 %v398, 7
        %v400 = vsub.s32 %v397, %v399
        %v401 = vrot.slane %v394, %v400
        %v402 = vcombine.low %v393, %v401
        %v403 = vcombine.high %v393, %v401
        %v405 = vunpack.c.l.s4 1934713408
        %v406 = vunpack.c.0.s8 %v405
        %v407 = vlaneseq
        %v408 = vshrl.u32 %v407, 7
        %v409 = vsub.s32 %v406, %v408
        %v410 = vrot.slane %v402, %v409
        %v412 = vunpack.c.l.s4 1934713408
        %v413 = vunpack.c.0.s8 %v412
        %v414 = vlaneseq
        %v415 = vshrl.u32 %v414, 7
        %v416 = vsub.s32 %v413, %v415
        %v417 = vrot.slane %v403, %v416
        %v418 = vcombine.high %v410, 0
        %v419 = vcombine.high %v417, 0
        %v420 = vcombine.low %v270, %v286
        %v422 = vunpack.c.l.s4 1983009808
        %v423 = vunpack.c.0.s8 %v422
        %v424 = vlaneseq
        %v425 = vshrl.u32 %v424, 7
        %v426 = vsub.s32 %v423, %v425
        %v427 = vrot.slane %v420, %v426
        %v428 = vcombine.low %v278, %v294
        %v430 = vunpack.c.l.s4 1983009808
        %v431 = vunpack.c.0.s8 %v430
        %v432 = vlaneseq
        %v433 = vshrl.u32 %v432, 7
        %v434 = vsub.s32 %v431, %v433
        %v435 = vrot.slane %v428, %v434
        %v436 = vcombine.low %v427, %v435
        %v437 = vcombine.high %v427, %v435
        %v439 = vunpack.c.l.s4 1934713408
        %v440 = vunpack.c.0.s8 %v439
        %v441 = vlaneseq
        %v442 = vshrl.u32 %v441, 7
        %v443 = vsub.s32 %v440, %v442
        %v444 = vrot.slane %v436, %v443
        %v446 = vunpack.c.l.s4 1934713408
        %v447 = vunpack.c.0.s8 %v446
        %v448 = vlaneseq
        %v449 = vshrl.u32 %v448, 7
        %v450 = vsub.s32 %v447, %v449
        %v451 = vrot.slane %v437, %v450
        %v452 = vcombine.high %v444, 0
        %v453 = vcombine.high %v451, 0
        %v454 = vcombine.low %v298, %v312
        %v456 = vunpack.c.l.s4 1983009808
        %v457 = vunpack.c.0.s8 %v456
        %v458 = vlaneseq
        %v459 = vshrl.u32 %v458, 7
        %v460 = vsub.s32 %v457, %v459
        %v461 = vrot.slane %v454, %v460
        %v464 = vunpack.c.l.s4 1983009808
        %v465 = vunpack.c.0.s8 %v464
        %v466 = vlaneseq
        %v467 = vshrl.u32 %v466, 7
        %v468 = vsub.s32 %v465, %v467
        %v469 = vrot.slane %v306, %v468
        %v470 = vcombine.low %v461, %v469
        %v471 = vcombine.high %v461, %v469
        %v473 = vunpack.c.l.s4 1934713408
        %v474 = vunpack.c.0.s8 %v473
        %v475 = vlaneseq
        %v476 = vshrl.u32 %v475, 7
        %v477 = vsub.s32 %v474, %v476
        %v478 = vrot.slane %v470, %v477
        %v480 = vunpack.c.l.s4 1934713408
        %v481 = vunpack.c.0.s8 %v480
        %v482 = vlaneseq
        %v483 = vshrl.u32 %v482, 7
        %v484 = vsub.s32 %v481, %v483
        %v485 = vrot.slane %v471, %v484
        %v486 = vcombine.high %v478, 0
        %v487 = vcombine.high %v485, 0
        %v488 = vcombine.low %v302, %v316
        %v490 = vunpack.c.l.s4 1983009808
        %v491 = vunpack.c.0.s8 %v490
        %v492 = vlaneseq
        %v493 = vshrl.u32 %v492, 7
        %v494 = vsub.s32 %v491, %v493
        %v495 = vrot.slane %v488, %v494
        %v498 = vunpack.c.l.s4 1983009808
        %v499 = vunpack.c.0.s8 %v498
        %v500 = vlaneseq
        %v501 = vshrl.u32 %v500, 7
        %v502 = vsub.s32 %v499, %v501
        %v503 = vrot.slane %v309, %v502
        %v504 = vcombine.low %v495, %v503
        %v505 = vcombine.high %v495, %v503
        %v507 = vunpack.c.l.s4 1934713408
        %v508 = vunpack.c.0.s8 %v507
        %v509 = vlaneseq
        %v510 = vshrl.u32 %v509, 7
        %v511 = vsub.s32 %v508, %v510
        %v512 = vrot.slane %v504, %v511
        %v514 = vunpack.c.l.s4 1934713408
        %v515 = vunpack.c.0.s8 %v514
        %v516 = vlaneseq
        %v517 = vshrl.u32 %v516, 7
        %v518 = vsub.s32 %v515, %v517
        %v519 = vrot.slane %v505, %v518
        %v520 = vcombine.high %v512, 0
        %v521 = vcombine.high %v519, 0
        %v525 = vunpack.c.l.b16 %v342
        %v526 = vunpack.c.l.b16 %v410
        %v527 = vunpack.c.l.b16 %v478
        %v528 = vpack.c.b16 %v526, %v525
        %v529 = vpack.c.b16 %v527, %v527
        %v533 = vunpack.c.l.b16 %v376
        %v534 = vunpack.c.l.b16 %v444
        %v535 = vunpack.c.l.b16 %v512
        %v536 = vpack.c.b16 %v534, %v533
        %v537 = vpack.c.b16 %v535, %v535
        %538 = vrot.lane.b32.xlu0 %v536, 16
        %v539 = vpop.permute.xlu0 %538
        %540 = vrot.lane.b32.xlu0 %v537, 16
        %v541 = vpop.permute.xlu0 %540
        %v545 = vunpack.c.l.b16 %v350
        %v546 = vunpack.c.l.b16 %v418
        %v547 = vunpack.c.l.b16 %v486
        %v548 = vpack.c.b16 %v546, %v545
        %v549 = vpack.c.b16 %v547, %v547
        %550 = vrot.lane.b32.xlu0 %v548, 32
        %v551 = vpop.permute.xlu0 %550
        %552 = vrot.lane.b32.xlu0 %v549, 32
        %v553 = vpop.permute.xlu0 %552
        %v557 = vunpack.c.l.b16 %v384
        %v558 = vunpack.c.l.b16 %v452
        %v559 = vunpack.c.l.b16 %v520
        %v560 = vpack.c.b16 %v558, %v557
        %v561 = vpack.c.b16 %v559, %v559
        %562 = vrot.lane.b32.xlu0 %v560, 48
        %v563 = vpop.permute.xlu0 %562
        %564 = vrot.lane.b32.xlu0 %v561, 48
        %v565 = vpop.permute.xlu0 %564
        %v569 = vunpack.c.l.b16 %v349
        %v570 = vunpack.c.l.b16 %v417
        %v571 = vunpack.c.l.b16 %v485
        %v572 = vpack.c.b16 %v570, %v569
        %v573 = vpack.c.b16 %v571, %v571
        %574 = vrot.lane.b32.xlu0 %v572, 64
        %v575 = vpop.permute.xlu0 %574
        %576 = vrot.lane.b32.xlu0 %v573, 64
        %v577 = vpop.permute.xlu0 %576
        %v581 = vunpack.c.l.b16 %v383
        %v582 = vunpack.c.l.b16 %v451
        %v583 = vunpack.c.l.b16 %v519
        %v584 = vpack.c.b16 %v582, %v581
        %v585 = vpack.c.b16 %v583, %v583
        %586 = vrot.lane.b32.xlu0 %v584, 80
        %v587 = vpop.permute.xlu0 %586
        %588 = vrot.lane.b32.xlu0 %v585, 80
        %v589 = vpop.permute.xlu0 %588
        %v593 = vunpack.c.l.b16 %v351
        %v594 = vunpack.c.l.b16 %v419
        %v595 = vunpack.c.l.b16 %v487
        %v596 = vpack.c.b16 %v594, %v593
        %v597 = vpack.c.b16 %v595, %v595
        %598 = vrot.lane.b32.xlu0 %v596, 96
        %v599 = vpop.permute.xlu0 %598
        %600 = vrot.lane.b32.xlu0 %v597, 96
        %v601 = vpop.permute.xlu0 %600
        %v605 = vunpack.c.l.b16 %v385
        %v606 = vunpack.c.l.b16 %v453
        %v607 = vunpack.c.l.b16 %v521
        %v608 = vpack.c.b16 %v606, %v605
        %v609 = vpack.c.b16 %v607, %v607
        %610 = vrot.lane.b32.xlu0 %v608, 112
        %v611 = vpop.permute.xlu0 %610
        %612 = vrot.lane.b32.xlu0 %v609, 112
        %v613 = vpop.permute.xlu0 %612
        %vm614 = vcmask 130048
        %v617 = vsel %vm614, %v528, %v539
        %v620 = vsel %vm614, %v529, %v541
        %vm621 = vcmask 261120
        %v623 = vsel %vm621, %v617, %v551
        %v625 = vsel %vm621, %v620, %v553
        %vm626 = vcmask 392192
        %v628 = vsel %vm626, %v623, %v563
        %v630 = vsel %vm626, %v625, %v565
        %vm631 = vcmask 523264
        %v633 = vsel %vm631, %v628, %v575
        %v635 = vsel %vm631, %v630, %v577
        %vm636 = vcmask 654336
        %v638 = vsel %vm636, %v633, %v587
        %v640 = vsel %vm636, %v635, %v589
        %vm641 = vcmask 785408
        %v643 = vsel %vm641, %v638, %v599
        %v645 = vsel %vm641, %v640, %v601
        %vm646 = vcmask 916480
        %v648 = vsel %vm646, %v643, %v611
        %v651 = vsel %vm646, %v645, %v613
        %vm653 = vsmask.f32 3328
        %vm654 = vsmask.f32 7440
        %vm655 = vmor %vm653, %vm654
        %v657 = vrot.slane %v236, 4
        %v658 = vshll.u32 %v190, 16
        %v660 = vrot.slane %v658, 5
        %v661 = vor.u32 %v657, %v660
        %v662 = vrot.slane %v661, 4
        %v664 = vshll.u32 %v191, 16
        %v666 = vrot.slane %v664, 5
        %v667 = vsel %vm655, %v662, %v666
        %v669 = vrot.slane %v237, 4
        %v670 = vshll.u32 %v192, 16
        %v672 = vrot.slane %v670, 5
        %v673 = vor.u32 %v669, %v672
        %v674 = vrot.slane %v673, 4
        %v676 = vshll.u32 %v193, 16
        %v678 = vrot.slane %v676, 5
        %v679 = vsel %vm655, %v674, %v678
        %v681 = vrot.slane %v244, 4
        %v682 = vshll.u32 %v194, 16
        %v684 = vrot.slane %v682, 5
        %v685 = vor.u32 %v681, %v684
        %v686 = vrot.slane %v685, 4
        %v688 = vshll.u32 %v195, 16
        %v690 = vrot.slane %v688, 5
        %v691 = vsel %vm655, %v686, %v690
        %v693 = vrot.slane %v245, 4
        %v694 = vshll.u32 %v196, 16
        %v696 = vrot.slane %v694, 5
        %v697 = vor.u32 %v693, %v696
        %v698 = vrot.slane %v697, 4
        %v700 = vshll.u32 %v197, 16
        %v702 = vrot.slane %v700, 5
        %v703 = vsel %vm655, %v698, %v702
        %v705 = vrot.slane %v252, 4
        %v706 = vshll.u32 %v198, 16
        %v708 = vrot.slane %v706, 5
        %v709 = vor.u32 %v705, %v708
        %v710 = vrot.slane %v709, 4
        %v712 = vshll.u32 %v199, 16
        %v714 = vrot.slane %v712, 5
        %v715 = vsel %vm655, %v710, %v714
        %v717 = vrot.slane %v253, 4
        %v718 = vshll.u32 %v200, 16
        %v720 = vrot.slane %v718, 5
        %v721 = vor.u32 %v717, %v720
        %v722 = vrot.slane %v721, 4
        %v724 = vshll.u32 %v201, 16
        %v726 = vrot.slane %v724, 5
        %v727 = vsel %vm655, %v722, %v726
        %v729 = vrot.slane %v260, 4
        %v730 = vshll.u32 %v202, 16
        %v732 = vrot.slane %v730, 5
        %v733 = vor.u32 %v729, %v732
        %v734 = vrot.slane %v733, 4
        %v736 = vshll.u32 %v203, 16
        %v738 = vrot.slane %v736, 5
        %v739 = vsel %vm655, %v734, %v738
        %v741 = vrot.slane %v261, 4
        %v742 = vshll.u32 %v204, 16
        %v744 = vrot.slane %v742, 5
        %v745 = vor.u32 %v741, %v744
        %v746 = vrot.slane %v745, 4
        %v748 = vshll.u32 %v205, 16
        %v750 = vrot.slane %v748, 5
        %v751 = vsel %vm655, %v746, %v750
        %v753 = vrot.slane %v268, 4
        %v754 = vshll.u32 %v206, 16
        %v756 = vrot.slane %v754, 5
        %v757 = vor.u32 %v753, %v756
        %v758 = vrot.slane %v757, 4
        %v760 = vshll.u32 %v207, 16
        %v762 = vrot.slane %v760, 5
        %v763 = vsel %vm655, %v758, %v762
        %v765 = vrot.slane %v269, 4
        %v766 = vshll.u32 %v208, 16
        %v768 = vrot.slane %v766, 5
        %v769 = vor.u32 %v765, %v768
        %v770 = vrot.slane %v769, 4
        %v772 = vshll.u32 %v209, 16
        %v774 = vrot.slane %v772, 5
        %v775 = vsel %vm655, %v770, %v774
        %v777 = vrot.slane %v276, 4
        %v778 = vshll.u32 %v210, 16
        %v780 = vrot.slane %v778, 5
        %v781 = vor.u32 %v777, %v780
        %v782 = vrot.slane %v781, 4
        %v784 = vshll.u32 %v211, 16
        %v786 = vrot.slane %v784, 5
        %v787 = vsel %vm655, %v782, %v786
        %v789 = vrot.slane %v277, 4
        %v790 = vshll.u32 %v212, 16
        %v792 = vrot.slane %v790, 5
        %v793 = vor.u32 %v789, %v792
        %v794 = vrot.slane %v793, 4
        %v796 = vshll.u32 %v213, 16
        %v798 = vrot.slane %v796, 5
        %v799 = vsel %vm655, %v794, %v798
        %v801 = vrot.slane %v284, 4
        %v802 = vshll.u32 %v214, 16
        %v804 = vrot.slane %v802, 5
        %v805 = vor.u32 %v801, %v804
        %v806 = vrot.slane %v805, 4
        %v808 = vshll.u32 %v215, 16
        %v810 = vrot.slane %v808, 5
        %v811 = vsel %vm655, %v806, %v810
        %v813 = vrot.slane %v285, 4
        %v814 = vshll.u32 %v216, 16
        %v816 = vrot.slane %v814, 5
        %v817 = vor.u32 %v813, %v816
        %v818 = vrot.slane %v817, 4
        %v820 = vshll.u32 %v217, 16
        %v822 = vrot.slane %v820, 5
        %v823 = vsel %vm655, %v818, %v822
        %v825 = vrot.slane %v292, 4
        %v826 = vshll.u32 %v218, 16
        %v828 = vrot.slane %v826, 5
        %v829 = vor.u32 %v825, %v828
        %v830 = vrot.slane %v829, 4
        %v832 = vshll.u32 %v219, 16
        %v834 = vrot.slane %v832, 5
        %v835 = vsel %vm655, %v830, %v834
        %v837 = vrot.slane %v293, 4
        %v838 = vshll.u32 %v220, 16
        %v840 = vrot.slane %v838, 5
        %v841 = vor.u32 %v837, %v840
        %v842 = vrot.slane %v841, 4
        %v844 = vshll.u32 %v221, 16
        %v846 = vrot.slane %v844, 5
        %v847 = vsel %vm655, %v842, %v846
        %v849 = vrot.slane %v300, 4
        %v850 = vshll.u32 %v222, 16
        %v852 = vrot.slane %v850, 5
        %v853 = vor.u32 %v849, %v852
        %v854 = vrot.slane %v853, 4
        %v856 = vshll.u32 %v223, 16
        %v858 = vrot.slane %v856, 5
        %v859 = vsel %vm655, %v854, %v858
        %v861 = vrot.slane %v301, 4
        %v862 = vshll.u32 %v224, 16
        %v864 = vrot.slane %v862, 5
        %v865 = vor.u32 %v861, %v864
        %v866 = vrot.slane %v865, 4
        %v868 = vshll.u32 %v225, 16
        %v870 = vrot.slane %v868, 5
        %v871 = vsel %vm655, %v866, %v870
        %v873 = vrot.slane %v307, 4
        %v874 = vshll.u32 %v226, 16
        %v876 = vrot.slane %v874, 5
        %v877 = vor.u32 %v873, %v876
        %v878 = vrot.slane %v877, 4
        %v880 = vshll.u32 %v227, 16
        %v882 = vrot.slane %v880, 5
        %v883 = vsel %vm655, %v878, %v882
        %v885 = vrot.slane %v308, 4
        %v886 = vshll.u32 %v228, 16
        %v888 = vrot.slane %v886, 5
        %v889 = vor.u32 %v885, %v888
        %v890 = vrot.slane %v889, 4
        %v892 = vshll.u32 %v229, 16
        %v894 = vrot.slane %v892, 5
        %v895 = vsel %vm655, %v890, %v894
        %v897 = vrot.slane %v314, 4
        %v898 = vshll.u32 %v230, 16
        %v900 = vrot.slane %v898, 5
        %v901 = vor.u32 %v897, %v900
        %v902 = vrot.slane %v901, 4
        %v904 = vshll.u32 %v231, 16
        %v906 = vrot.slane %v904, 5
        %v907 = vsel %vm655, %v902, %v906
        %v910 = vpack.i.b16 %v679, %v667
        %v912 = vshrl.u32 %v667, 16
        %v913 = vshrl.u32 %v679, 16
        %v914 = vpack.i.b16 %v913, %v912
        %v918 = vpack.i.b16 %v703, %v691
        %v920 = vshrl.u32 %v691, 16
        %v921 = vshrl.u32 %v703, 16
        %v922 = vpack.i.b16 %v921, %v920
        %v926 = vpack.i.b16 %v727, %v715
        %v928 = vshrl.u32 %v715, 16
        %v929 = vshrl.u32 %v727, 16
        %v930 = vpack.i.b16 %v929, %v928
        %v934 = vpack.i.b16 %v751, %v739
        %v936 = vshrl.u32 %v739, 16
        %v937 = vshrl.u32 %v751, 16
        %v938 = vpack.i.b16 %v937, %v936
        %v942 = vpack.i.b16 %v775, %v763
        %v944 = vshrl.u32 %v763, 16
        %v945 = vshrl.u32 %v775, 16
        %v946 = vpack.i.b16 %v945, %v944
        %v950 = vpack.i.b16 %v799, %v787
        %v952 = vshrl.u32 %v787, 16
        %v953 = vshrl.u32 %v799, 16
        %v954 = vpack.i.b16 %v953, %v952
        %v958 = vpack.i.b16 %v823, %v811
        %v960 = vshrl.u32 %v811, 16
        %v961 = vshrl.u32 %v823, 16
        %v962 = vpack.i.b16 %v961, %v960
        %v966 = vpack.i.b16 %v847, %v835
        %v968 = vshrl.u32 %v835, 16
        %v969 = vshrl.u32 %v847, 16
        %v970 = vpack.i.b16 %v969, %v968
        %v974 = vpack.i.b16 %v871, %v859
        %v976 = vshrl.u32 %v859, 16
        %v977 = vshrl.u32 %v871, 16
        %v978 = vpack.i.b16 %v977, %v976
        %v982 = vpack.i.b16 %v895, %v883
        %v983 = vshrl.u32 %v883, 16
        %v984 = vshrl.u32 %v895, 16
        %v985 = vpack.i.b16 %v984, %v983
        %v987 = vpack.i.b16 0, %v907
        %v989 = vshrl.u32 %v907, 16
        %v990 = vpack.i.b16 %v315, %v989
        %v992 = vcombine.low %v910, %v926
        %v994 = vunpack.c.l.s4 1983009808
        %v995 = vunpack.c.0.s8 %v994
        %v996 = vlaneseq
        %v997 = vshrl.u32 %v996, 7
        %v998 = vsub.s32 %v995, %v997
        %v999 = vrot.slane %v992, %v998
        %v1000 = vcombine.low %v918, %v934
        %v1002 = vunpack.c.l.s4 1983009808
        %v1003 = vunpack.c.0.s8 %v1002
        %v1004 = vlaneseq
        %v1005 = vshrl.u32 %v1004, 7
        %v1006 = vsub.s32 %v1003, %v1005
        %v1007 = vrot.slane %v1000, %v1006
        %v1008 = vcombine.low %v999, %v1007
        %v1009 = vcombine.high %v999, %v1007
        %v1011 = vunpack.c.l.s4 1934713408
        %v1012 = vunpack.c.0.s8 %v1011
        %v1013 = vlaneseq
        %v1014 = vshrl.u32 %v1013, 7
        %v1015 = vsub.s32 %v1012, %v1014
        %v1016 = vrot.slane %v1008, %v1015
        %v1018 = vunpack.c.l.s4 1934713408
        %v1019 = vunpack.c.0.s8 %v1018
        %v1020 = vlaneseq
        %v1021 = vshrl.u32 %v1020, 7
        %v1022 = vsub.s32 %v1019, %v1021
        %v1023 = vrot.slane %v1009, %v1022
        %v1024 = vcombine.high %v1016, 0
        %v1025 = vcombine.high %v1023, 0
        %v1026 = vcombine.low %v914, %v930
        %v1028 = vunpack.c.l.s4 1983009808
        %v1029 = vunpack.c.0.s8 %v1028
        %v1030 = vlaneseq
        %v1031 = vshrl.u32 %v1030, 7
        %v1032 = vsub.s32 %v1029, %v1031
        %v1033 = vrot.slane %v1026, %v1032
        %v1034 = vcombine.low %v922, %v938
        %v1036 = vunpack.c.l.s4 1983009808
        %v1037 = vunpack.c.0.s8 %v1036
        %v1038 = vlaneseq
        %v1039 = vshrl.u32 %v1038, 7
        %v1040 = vsub.s32 %v1037, %v1039
        %v1041 = vrot.slane %v1034, %v1040
        %v1042 = vcombine.low %v1033, %v1041
        %v1043 = vcombine.high %v1033, %v1041
        %v1045 = vunpack.c.l.s4 1934713408
        %v1046 = vunpack.c.0.s8 %v1045
        %v1047 = vlaneseq
        %v1048 = vshrl.u32 %v1047, 7
        %v1049 = vsub.s32 %v1046, %v1048
        %v1050 = vrot.slane %v1042, %v1049
        %v1052 = vunpack.c.l.s4 1934713408
        %v1053 = vunpack.c.0.s8 %v1052
        %v1054 = vlaneseq
        %v1055 = vshrl.u32 %v1054, 7
        %v1056 = vsub.s32 %v1053, %v1055
        %v1057 = vrot.slane %v1043, %v1056
        %v1058 = vcombine.high %v1050, 0
        %v1059 = vcombine.high %v1057, 0
        %v1060 = vcombine.low %v942, %v958
        %v1062 = vunpack.c.l.s4 1983009808
        %v1063 = vunpack.c.0.s8 %v1062
        %v1064 = vlaneseq
        %v1065 = vshrl.u32 %v1064, 7
        %v1066 = vsub.s32 %v1063, %v1065
        %v1067 = vrot.slane %v1060, %v1066
        %v1068 = vcombine.low %v950, %v966
        %v1070 = vunpack.c.l.s4 1983009808
        %v1071 = vunpack.c.0.s8 %v1070
        %v1072 = vlaneseq
        %v1073 = vshrl.u32 %v1072, 7
        %v1074 = vsub.s32 %v1071, %v1073
        %v1075 = vrot.slane %v1068, %v1074
        %v1076 = vcombine.low %v1067, %v1075
        %v1077 = vcombine.high %v1067, %v1075
        %v1079 = vunpack.c.l.s4 1934713408
        %v1080 = vunpack.c.0.s8 %v1079
        %v1081 = vlaneseq
        %v1082 = vshrl.u32 %v1081, 7
        %v1083 = vsub.s32 %v1080, %v1082
        %v1084 = vrot.slane %v1076, %v1083
        %v1086 = vunpack.c.l.s4 1934713408
        %v1087 = vunpack.c.0.s8 %v1086
        %v1088 = vlaneseq
        %v1089 = vshrl.u32 %v1088, 7
        %v1090 = vsub.s32 %v1087, %v1089
        %v1091 = vrot.slane %v1077, %v1090
        %v1092 = vcombine.high %v1084, 0
        %v1093 = vcombine.high %v1091, 0
        %v1094 = vcombine.low %v946, %v962
        %v1096 = vunpack.c.l.s4 1983009808
        %v1097 = vunpack.c.0.s8 %v1096
        %v1098 = vlaneseq
        %v1099 = vshrl.u32 %v1098, 7
        %v1100 = vsub.s32 %v1097, %v1099
        %v1101 = vrot.slane %v1094, %v1100
        %v1102 = vcombine.low %v954, %v970
        %v1104 = vunpack.c.l.s4 1983009808
        %v1105 = vunpack.c.0.s8 %v1104
        %v1106 = vlaneseq
        %v1107 = vshrl.u32 %v1106, 7
        %v1108 = vsub.s32 %v1105, %v1107
        %v1109 = vrot.slane %v1102, %v1108
        %v1110 = vcombine.low %v1101, %v1109
        %v1111 = vcombine.high %v1101, %v1109
        %v1113 = vunpack.c.l.s4 1934713408
        %v1114 = vunpack.c.0.s8 %v1113
        %v1115 = vlaneseq
        %v1116 = vshrl.u32 %v1115, 7
        %v1117 = vsub.s32 %v1114, %v1116
        %v1118 = vrot.slane %v1110, %v1117
        %v1120 = vunpack.c.l.s4 1934713408
        %v1121 = vunpack.c.0.s8 %v1120
        %v1122 = vlaneseq
        %v1123 = vshrl.u32 %v1122, 7
        %v1124 = vsub.s32 %v1121, %v1123
        %v1125 = vrot.slane %v1111, %v1124
        %v1126 = vcombine.high %v1118, 0
        %v1127 = vcombine.high %v1125, 0
        %v1128 = vcombine.low %v974, %v987
        %v1130 = vunpack.c.l.s4 1983009808
        %v1131 = vunpack.c.0.s8 %v1130
        %v1132 = vlaneseq
        %v1133 = vshrl.u32 %v1132, 7
        %v1134 = vsub.s32 %v1131, %v1133
        %v1135 = vrot.slane %v1128, %v1134
        %v1138 = vunpack.c.l.s4 1983009808
        %v1139 = vunpack.c.0.s8 %v1138
        %v1140 = vlaneseq
        %v1141 = vshrl.u32 %v1140, 7
        %v1142 = vsub.s32 %v1139, %v1141
        %v1143 = vrot.slane %v982, %v1142
        %v1144 = vcombine.low %v1135, %v1143
        %v1145 = vcombine.high %v1135, %v1143
        %v1147 = vunpack.c.l.s4 1934713408
        %v1148 = vunpack.c.0.s8 %v1147
        %v1149 = vlaneseq
        %v1150 = vshrl.u32 %v1149, 7
        %v1151 = vsub.s32 %v1148, %v1150
        %v1152 = vrot.slane %v1144, %v1151
        %v1154 = vunpack.c.l.s4 1934713408
        %v1155 = vunpack.c.0.s8 %v1154
        %v1156 = vlaneseq
        %v1157 = vshrl.u32 %v1156, 7
        %v1158 = vsub.s32 %v1155, %v1157
        %v1159 = vrot.slane %v1145, %v1158
        %v1160 = vcombine.high %v1152, 0
        %v1161 = vcombine.high %v1159, 0
        %v1162 = vcombine.low %v978, %v990
        %v1164 = vunpack.c.l.s4 1983009808
        %v1165 = vunpack.c.0.s8 %v1164
        %v1166 = vlaneseq
        %v1167 = vshrl.u32 %v1166, 7
        %v1168 = vsub.s32 %v1165, %v1167
        %v1169 = vrot.slane %v1162, %v1168
        %v1172 = vunpack.c.l.s4 1983009808
        %v1173 = vunpack.c.0.s8 %v1172
        %v1174 = vlaneseq
        %v1175 = vshrl.u32 %v1174, 7
        %v1176 = vsub.s32 %v1173, %v1175
        %v1177 = vrot.slane %v985, %v1176
        %v1178 = vcombine.low %v1169, %v1177
        %v1179 = vcombine.high %v1169, %v1177
        %v1181 = vunpack.c.l.s4 1934713408
        %v1182 = vunpack.c.0.s8 %v1181
        %v1183 = vlaneseq
        %v1184 = vshrl.u32 %v1183, 7
        %v1185 = vsub.s32 %v1182, %v1184
        %v1186 = vrot.slane %v1178, %v1185
        %v1188 = vunpack.c.l.s4 1934713408
        %v1189 = vunpack.c.0.s8 %v1188
        %v1190 = vlaneseq
        %v1191 = vshrl.u32 %v1190, 7
        %v1192 = vsub.s32 %v1189, %v1191
        %v1193 = vrot.slane %v1179, %v1192
        %v1194 = vcombine.high %v1186, 0
        %v1195 = vcombine.high %v1193, 0
        %v1199 = vunpack.c.l.b16 %v1016
        %v1200 = vunpack.c.l.b16 %v1084
        %v1201 = vunpack.c.l.b16 %v1152
        %v1202 = vpack.c.b16 %v1200, %v1199
        %v1203 = vpack.c.b16 %v1201, %v1201
        %v1207 = vunpack.c.l.b16 %v1050
        %v1208 = vunpack.c.l.b16 %v1118
        %v1209 = vunpack.c.l.b16 %v1186
        %v1210 = vpack.c.b16 %v1208, %v1207
        %v1211 = vpack.c.b16 %v1209, %v1209
        %1212 = vrot.lane.b32.xlu0 %v1210, 16
        %v1213 = vpop.permute.xlu0 %1212
        %1214 = vrot.lane.b32.xlu0 %v1211, 16
        %v1215 = vpop.permute.xlu0 %1214
        %v1219 = vunpack.c.l.b16 %v1024
        %v1220 = vunpack.c.l.b16 %v1092
        %v1221 = vunpack.c.l.b16 %v1160
        %v1222 = vpack.c.b16 %v1220, %v1219
        %v1223 = vpack.c.b16 %v1221, %v1221
        %1224 = vrot.lane.b32.xlu0 %v1222, 32
        %v1225 = vpop.permute.xlu0 %1224
        %1226 = vrot.lane.b32.xlu0 %v1223, 32
        %v1227 = vpop.permute.xlu0 %1226
        %v1231 = vunpack.c.l.b16 %v1058
        %v1232 = vunpack.c.l.b16 %v1126
        %v1233 = vunpack.c.l.b16 %v1194
        %v1234 = vpack.c.b16 %v1232, %v1231
        %v1235 = vpack.c.b16 %v1233, %v1233
        %1236 = vrot.lane.b32.xlu0 %v1234, 48
        %v1237 = vpop.permute.xlu0 %1236
        %1238 = vrot.lane.b32.xlu0 %v1235, 48
        %v1239 = vpop.permute.xlu0 %1238
        %v1243 = vunpack.c.l.b16 %v1023
        %v1244 = vunpack.c.l.b16 %v1091
        %v1245 = vunpack.c.l.b16 %v1159
        %v1246 = vpack.c.b16 %v1244, %v1243
        %v1247 = vpack.c.b16 %v1245, %v1245
        %1248 = vrot.lane.b32.xlu0 %v1246, 64
        %v1249 = vpop.permute.xlu0 %1248
        %1250 = vrot.lane.b32.xlu0 %v1247, 64
        %v1251 = vpop.permute.xlu0 %1250
        %v1255 = vunpack.c.l.b16 %v1057
        %v1256 = vunpack.c.l.b16 %v1125
        %v1257 = vunpack.c.l.b16 %v1193
        %v1258 = vpack.c.b16 %v1256, %v1255
        %v1259 = vpack.c.b16 %v1257, %v1257
        %1260 = vrot.lane.b32.xlu0 %v1258, 80
        %v1261 = vpop.permute.xlu0 %1260
        %1262 = vrot.lane.b32.xlu0 %v1259, 80
        %v1263 = vpop.permute.xlu0 %1262
        %v1267 = vunpack.c.l.b16 %v1025
        %v1268 = vunpack.c.l.b16 %v1093
        %v1269 = vunpack.c.l.b16 %v1161
        %v1270 = vpack.c.b16 %v1268, %v1267
        %v1271 = vpack.c.b16 %v1269, %v1269
        %1272 = vrot.lane.b32.xlu0 %v1270, 96
        %v1273 = vpop.permute.xlu0 %1272
        %1274 = vrot.lane.b32.xlu0 %v1271, 96
        %v1275 = vpop.permute.xlu0 %1274
        %v1279 = vunpack.c.l.b16 %v1059
        %v1280 = vunpack.c.l.b16 %v1127
        %v1281 = vunpack.c.l.b16 %v1195
        %v1282 = vpack.c.b16 %v1280, %v1279
        %v1283 = vpack.c.b16 %v1281, %v1281
        %1284 = vrot.lane.b32.xlu0 %v1282, 112
        %v1285 = vpop.permute.xlu0 %1284
        %1286 = vrot.lane.b32.xlu0 %v1283, 112
        %v1287 = vpop.permute.xlu0 %1286
        %v1290 = vsel %vm614, %v1202, %v1213
        %v1293 = vsel %vm614, %v1203, %v1215
        %v1295 = vsel %vm621, %v1290, %v1225
        %v1297 = vsel %vm621, %v1293, %v1227
        %v1299 = vsel %vm626, %v1295, %v1237
        %v1301 = vsel %vm626, %v1297, %v1239
        %v1303 = vsel %vm631, %v1299, %v1249
        %v1305 = vsel %vm631, %v1301, %v1251
        %v1307 = vsel %vm636, %v1303, %v1261
        %v1309 = vsel %vm636, %v1305, %v1263
        %v1311 = vsel %vm641, %v1307, %v1273
        %v1313 = vsel %vm641, %v1309, %v1275
        %v1315 = vsel %vm646, %v1311, %v1285
        %v1317 = vsel %vm646, %v1313, %v1287
        %vm1360 = vcmask 1042432
        %vm1361 = vcmask 1046532
        %vm1362 = vmor %vm1360, %vm1361
        %v1363 = vrot.slane %v190, 5
        %v1364 = vrot.slane %v1363, 4
        %v1365 = vrot.slane %v191, 5
        %v1366 = vsel %vm1362, %v1364, %v1365
        %v1367 = vrot.slane %v192, 5
        %v1368 = vrot.slane %v1367, 4
        %v1369 = vrot.slane %v193, 5
        %v1370 = vsel %vm1362, %v1368, %v1369
        %v1371 = vrot.slane %v194, 5
        %v1372 = vrot.slane %v1371, 4
        %v1373 = vrot.slane %v195, 5
        %v1374 = vsel %vm1362, %v1372, %v1373
        %v1375 = vrot.slane %v196, 5
        %v1376 = vrot.slane %v1375, 4
        %v1377 = vrot.slane %v197, 5
        %v1378 = vsel %vm1362, %v1376, %v1377
        %v1379 = vrot.slane %v198, 5
        %v1380 = vrot.slane %v1379, 4
        %v1381 = vrot.slane %v199, 5
        %v1382 = vsel %vm1362, %v1380, %v1381
        %v1383 = vrot.slane %v200, 5
        %v1384 = vrot.slane %v1383, 4
        %v1385 = vrot.slane %v201, 5
        %v1386 = vsel %vm1362, %v1384, %v1385
        %v1387 = vrot.slane %v202, 5
        %v1388 = vrot.slane %v1387, 4
        %v1389 = vrot.slane %v203, 5
        %v1390 = vsel %vm1362, %v1388, %v1389
        %v1391 = vrot.slane %v204, 5
        %v1392 = vrot.slane %v1391, 4
        %v1393 = vrot.slane %v205, 5
        %v1394 = vsel %vm1362, %v1392, %v1393
        %v1395 = vrot.slane %v206, 5
        %v1396 = vrot.slane %v1395, 4
        %v1397 = vrot.slane %v207, 5
        %v1398 = vsel %vm1362, %v1396, %v1397
        %v1399 = vrot.slane %v208, 5
        %v1400 = vrot.slane %v1399, 4
        %v1401 = vrot.slane %v209, 5
        %v1402 = vsel %vm1362, %v1400, %v1401
        %v1403 = vrot.slane %v210, 5
        %v1404 = vrot.slane %v1403, 4
        %v1405 = vrot.slane %v211, 5
        %v1406 = vsel %vm1362, %v1404, %v1405
        %v1407 = vrot.slane %v212, 5
        %v1408 = vrot.slane %v1407, 4
        %v1409 = vrot.slane %v213, 5
        %v1410 = vsel %vm1362, %v1408, %v1409
        %v1411 = vrot.slane %v214, 5
        %v1412 = vrot.slane %v1411, 4
        %v1413 = vrot.slane %v215, 5
        %v1414 = vsel %vm1362, %v1412, %v1413
        %v1415 = vrot.slane %v216, 5
        %v1416 = vrot.slane %v1415, 4
        %v1417 = vrot.slane %v217, 5
        %v1418 = vsel %vm1362, %v1416, %v1417
        %v1419 = vrot.slane %v218, 5
        %v1420 = vrot.slane %v1419, 4
        %v1421 = vrot.slane %v219, 5
        %v1422 = vsel %vm1362, %v1420, %v1421
        %v1423 = vrot.slane %v220, 5
        %v1424 = vrot.slane %v1423, 4
        %v1425 = vrot.slane %v221, 5
        %v1426 = vsel %vm1362, %v1424, %v1425
        %v1427 = vrot.slane %v222, 5
        %v1428 = vrot.slane %v1427, 4
        %v1429 = vrot.slane %v223, 5
        %v1430 = vsel %vm1362, %v1428, %v1429
        %v1431 = vrot.slane %v224, 5
        %v1432 = vrot.slane %v1431, 4
        %v1433 = vrot.slane %v225, 5
        %v1434 = vsel %vm1362, %v1432, %v1433
        %v1435 = vrot.slane %v226, 5
        %v1436 = vrot.slane %v1435, 4
        %v1437 = vrot.slane %v227, 5
        %v1438 = vsel %vm1362, %v1436, %v1437
        %v1439 = vrot.slane %v228, 5
        %v1440 = vrot.slane %v1439, 4
        %v1441 = vrot.slane %v229, 5
        %v1442 = vsel %vm1362, %v1440, %v1441
        %v1443 = vrot.slane %v230, 5
        %v1444 = vrot.slane %v1443, 4
        %v1445 = vrot.slane %v231, 5
        %v1446 = vsel %vm1362, %v1444, %v1445
        %v1449 = vpack.i.b16 %v1370, %v1366
        %v1451 = vshrl.u32 %v1366, 16
        %v1452 = vshrl.u32 %v1370, 16
        %v1453 = vpack.i.b16 %v1452, %v1451
        %v1457 = vpack.i.b16 %v1378, %v1374
        %v1459 = vshrl.u32 %v1374, 16
        %v1460 = vshrl.u32 %v1378, 16
        %v1461 = vpack.i.b16 %v1460, %v1459
        %v1465 = vpack.i.b16 %v1386, %v1382
        %v1467 = vshrl.u32 %v1382, 16
        %v1468 = vshrl.u32 %v1386, 16
        %v1469 = vpack.i.b16 %v1468, %v1467
        %v1473 = vpack.i.b16 %v1394, %v1390
        %v1475 = vshrl.u32 %v1390, 16
        %v1476 = vshrl.u32 %v1394, 16
        %v1477 = vpack.i.b16 %v1476, %v1475
        %v1481 = vpack.i.b16 %v1402, %v1398
        %v1483 = vshrl.u32 %v1398, 16
        %v1484 = vshrl.u32 %v1402, 16
        %v1485 = vpack.i.b16 %v1484, %v1483
        %v1489 = vpack.i.b16 %v1410, %v1406
        %v1491 = vshrl.u32 %v1406, 16
        %v1492 = vshrl.u32 %v1410, 16
        %v1493 = vpack.i.b16 %v1492, %v1491
        %v1497 = vpack.i.b16 %v1418, %v1414
        %v1499 = vshrl.u32 %v1414, 16
        %v1500 = vshrl.u32 %v1418, 16
        %v1501 = vpack.i.b16 %v1500, %v1499
        %v1505 = vpack.i.b16 %v1426, %v1422
        %v1507 = vshrl.u32 %v1422, 16
        %v1508 = vshrl.u32 %v1426, 16
        %v1509 = vpack.i.b16 %v1508, %v1507
        %v1513 = vpack.i.b16 %v1434, %v1430
        %v1515 = vshrl.u32 %v1430, 16
        %v1516 = vshrl.u32 %v1434, 16
        %v1517 = vpack.i.b16 %v1516, %v1515
        %v1521 = vpack.i.b16 %v1442, %v1438
        %v1522 = vshrl.u32 %v1438, 16
        %v1523 = vshrl.u32 %v1442, 16
        %v1524 = vpack.i.b16 %v1523, %v1522
        %v1526 = vpack.i.b16 0, %v1446
        %v1528 = vshrl.u32 %v1446, 16
        %v1529 = vpack.i.b16 %v315, %v1528
        %v1531 = vcombine.low %v1449, %v1465
        %v1533 = vunpack.c.l.s4 1983009808
        %v1534 = vunpack.c.0.s8 %v1533
        %v1535 = vlaneseq
        %v1536 = vshrl.u32 %v1535, 7
        %v1537 = vsub.s32 %v1534, %v1536
        %v1538 = vrot.slane %v1531, %v1537
        %v1539 = vcombine.low %v1457, %v1473
        %v1541 = vunpack.c.l.s4 1983009808
        %v1542 = vunpack.c.0.s8 %v1541
        %v1543 = vlaneseq
        %v1544 = vshrl.u32 %v1543, 7
        %v1545 = vsub.s32 %v1542, %v1544
        %v1546 = vrot.slane %v1539, %v1545
        %v1547 = vcombine.low %v1538, %v1546
        %v1548 = vcombine.high %v1538, %v1546
        %v1550 = vunpack.c.l.s4 1934713408
        %v1551 = vunpack.c.0.s8 %v1550
        %v1552 = vlaneseq
        %v1553 = vshrl.u32 %v1552, 7
        %v1554 = vsub.s32 %v1551, %v1553
        %v1555 = vrot.slane %v1547, %v1554
        %v1557 = vunpack.c.l.s4 1934713408
        %v1558 = vunpack.c.0.s8 %v1557
        %v1559 = vlaneseq
        %v1560 = vshrl.u32 %v1559, 7
        %v1561 = vsub.s32 %v1558, %v1560
        %v1562 = vrot.slane %v1548, %v1561
        %v1563 = vcombine.high %v1555, 0
        %v1564 = vcombine.high %v1562, 0
        %v1565 = vcombine.low %v1453, %v1469
        %v1567 = vunpack.c.l.s4 1983009808
        %v1568 = vunpack.c.0.s8 %v1567
        %v1569 = vlaneseq
        %v1570 = vshrl.u32 %v1569, 7
        %v1571 = vsub.s32 %v1568, %v1570
        %v1572 = vrot.slane %v1565, %v1571
        %v1573 = vcombine.low %v1461, %v1477
        %v1575 = vunpack.c.l.s4 1983009808
        %v1576 = vunpack.c.0.s8 %v1575
        %v1577 = vlaneseq
        %v1578 = vshrl.u32 %v1577, 7
        %v1579 = vsub.s32 %v1576, %v1578
        %v1580 = vrot.slane %v1573, %v1579
        %v1581 = vcombine.low %v1572, %v1580
        %v1582 = vcombine.high %v1572, %v1580
        %v1584 = vunpack.c.l.s4 1934713408
        %v1585 = vunpack.c.0.s8 %v1584
        %v1586 = vlaneseq
        %v1587 = vshrl.u32 %v1586, 7
        %v1588 = vsub.s32 %v1585, %v1587
        %v1589 = vrot.slane %v1581, %v1588
        %v1591 = vunpack.c.l.s4 1934713408
        %v1592 = vunpack.c.0.s8 %v1591
        %v1593 = vlaneseq
        %v1594 = vshrl.u32 %v1593, 7
        %v1595 = vsub.s32 %v1592, %v1594
        %v1596 = vrot.slane %v1582, %v1595
        %v1597 = vcombine.high %v1589, 0
        %v1598 = vcombine.high %v1596, 0
        %v1599 = vcombine.low %v1481, %v1497
        %v1601 = vunpack.c.l.s4 1983009808
        %v1602 = vunpack.c.0.s8 %v1601
        %v1603 = vlaneseq
        %v1604 = vshrl.u32 %v1603, 7
        %v1605 = vsub.s32 %v1602, %v1604
        %v1606 = vrot.slane %v1599, %v1605
        %v1607 = vcombine.low %v1489, %v1505
        %v1609 = vunpack.c.l.s4 1983009808
        %v1610 = vunpack.c.0.s8 %v1609
        %v1611 = vlaneseq
        %v1612 = vshrl.u32 %v1611, 7
        %v1613 = vsub.s32 %v1610, %v1612
        %v1614 = vrot.slane %v1607, %v1613
        %v1615 = vcombine.low %v1606, %v1614
        %v1616 = vcombine.high %v1606, %v1614
        %v1618 = vunpack.c.l.s4 1934713408
        %v1619 = vunpack.c.0.s8 %v1618
        %v1620 = vlaneseq
        %v1621 = vshrl.u32 %v1620, 7
        %v1622 = vsub.s32 %v1619, %v1621
        %v1623 = vrot.slane %v1615, %v1622
        %v1625 = vunpack.c.l.s4 1934713408
        %v1626 = vunpack.c.0.s8 %v1625
        %v1627 = vlaneseq
        %v1628 = vshrl.u32 %v1627, 7
        %v1629 = vsub.s32 %v1626, %v1628
        %v1630 = vrot.slane %v1616, %v1629
        %v1631 = vcombine.high %v1623, 0
        %v1632 = vcombine.high %v1630, 0
        %v1633 = vcombine.low %v1485, %v1501
        %v1635 = vunpack.c.l.s4 1983009808
        %v1636 = vunpack.c.0.s8 %v1635
        %v1637 = vlaneseq
        %v1638 = vshrl.u32 %v1637, 7
        %v1639 = vsub.s32 %v1636, %v1638
        %v1640 = vrot.slane %v1633, %v1639
        %v1641 = vcombine.low %v1493, %v1509
        %v1643 = vunpack.c.l.s4 1983009808
        %v1644 = vunpack.c.0.s8 %v1643
        %v1645 = vlaneseq
        %v1646 = vshrl.u32 %v1645, 7
        %v1647 = vsub.s32 %v1644, %v1646
        %v1648 = vrot.slane %v1641, %v1647
        %v1649 = vcombine.low %v1640, %v1648
        %v1650 = vcombine.high %v1640, %v1648
        %v1652 = vunpack.c.l.s4 1934713408
        %v1653 = vunpack.c.0.s8 %v1652
        %v1654 = vlaneseq
        %v1655 = vshrl.u32 %v1654, 7
        %v1656 = vsub.s32 %v1653, %v1655
        %v1657 = vrot.slane %v1649, %v1656
        %v1659 = vunpack.c.l.s4 1934713408
        %v1660 = vunpack.c.0.s8 %v1659
        %v1661 = vlaneseq
        %v1662 = vshrl.u32 %v1661, 7
        %v1663 = vsub.s32 %v1660, %v1662
        %v1664 = vrot.slane %v1650, %v1663
        %v1665 = vcombine.high %v1657, 0
        %v1666 = vcombine.high %v1664, 0
        %v1667 = vcombine.low %v1513, %v1526
        %v1669 = vunpack.c.l.s4 1983009808
        %v1670 = vunpack.c.0.s8 %v1669
        %v1671 = vlaneseq
        %v1672 = vshrl.u32 %v1671, 7
        %v1673 = vsub.s32 %v1670, %v1672
        %v1674 = vrot.slane %v1667, %v1673
        %v1677 = vunpack.c.l.s4 1983009808
        %v1678 = vunpack.c.0.s8 %v1677
        %v1679 = vlaneseq
        %v1680 = vshrl.u32 %v1679, 7
        %v1681 = vsub.s32 %v1678, %v1680
        %v1682 = vrot.slane %v1521, %v1681
        %v1683 = vcombine.low %v1674, %v1682
        %v1684 = vcombine.high %v1674, %v1682
        %v1686 = vunpack.c.l.s4 1934713408
        %v1687 = vunpack.c.0.s8 %v1686
        %v1688 = vlaneseq
        %v1689 = vshrl.u32 %v1688, 7
        %v1690 = vsub.s32 %v1687, %v1689
        %v1691 = vrot.slane %v1683, %v1690
        %v1693 = vunpack.c.l.s4 1934713408
        %v1694 = vunpack.c.0.s8 %v1693
        %v1695 = vlaneseq
        %v1696 = vshrl.u32 %v1695, 7
        %v1697 = vsub.s32 %v1694, %v1696
        %v1698 = vrot.slane %v1684, %v1697
        %v1699 = vcombine.high %v1691, 0
        %v1700 = vcombine.high %v1698, 0
        %v1701 = vcombine.low %v1517, %v1529
        %v1703 = vunpack.c.l.s4 1983009808
        %v1704 = vunpack.c.0.s8 %v1703
        %v1705 = vlaneseq
        %v1706 = vshrl.u32 %v1705, 7
        %v1707 = vsub.s32 %v1704, %v1706
        %v1708 = vrot.slane %v1701, %v1707
        %v1711 = vunpack.c.l.s4 1983009808
        %v1712 = vunpack.c.0.s8 %v1711
        %v1713 = vlaneseq
        %v1714 = vshrl.u32 %v1713, 7
        %v1715 = vsub.s32 %v1712, %v1714
        %v1716 = vrot.slane %v1524, %v1715
        %v1717 = vcombine.low %v1708, %v1716
        %v1718 = vcombine.high %v1708, %v1716
        %v1720 = vunpack.c.l.s4 1934713408
        %v1721 = vunpack.c.0.s8 %v1720
        %v1722 = vlaneseq
        %v1723 = vshrl.u32 %v1722, 7
        %v1724 = vsub.s32 %v1721, %v1723
        %v1725 = vrot.slane %v1717, %v1724
        %v1727 = vunpack.c.l.s4 1934713408
        %v1728 = vunpack.c.0.s8 %v1727
        %v1729 = vlaneseq
        %v1730 = vshrl.u32 %v1729, 7
        %v1731 = vsub.s32 %v1728, %v1730
        %v1732 = vrot.slane %v1718, %v1731
        %v1733 = vcombine.high %v1725, 0
        %v1734 = vcombine.high %v1732, 0
        %v1738 = vunpack.c.l.b16 %v1555
        %v1739 = vunpack.c.l.b16 %v1623
        %v1740 = vunpack.c.l.b16 %v1691
        %v1741 = vpack.c.b16 %v1739, %v1738
        %v1742 = vpack.c.b16 %v1740, %v1740
        %v1746 = vunpack.c.l.b16 %v1589
        %v1747 = vunpack.c.l.b16 %v1657
        %v1748 = vunpack.c.l.b16 %v1725
        %v1749 = vpack.c.b16 %v1747, %v1746
        %v1750 = vpack.c.b16 %v1748, %v1748
        %1751 = vrot.lane.b32.xlu0 %v1749, 16
        %v1752 = vpop.permute.xlu0 %1751
        %1753 = vrot.lane.b32.xlu0 %v1750, 16
        %v1754 = vpop.permute.xlu0 %1753
        %v1758 = vunpack.c.l.b16 %v1563
        %v1759 = vunpack.c.l.b16 %v1631
        %v1760 = vunpack.c.l.b16 %v1699
        %v1761 = vpack.c.b16 %v1759, %v1758
        %v1762 = vpack.c.b16 %v1760, %v1760
        %1763 = vrot.lane.b32.xlu0 %v1761, 32
        %v1764 = vpop.permute.xlu0 %1763
        %1765 = vrot.lane.b32.xlu0 %v1762, 32
        %v1766 = vpop.permute.xlu0 %1765
        %v1770 = vunpack.c.l.b16 %v1597
        %v1771 = vunpack.c.l.b16 %v1665
        %v1772 = vunpack.c.l.b16 %v1733
        %v1773 = vpack.c.b16 %v1771, %v1770
        %v1774 = vpack.c.b16 %v1772, %v1772
        %1775 = vrot.lane.b32.xlu0 %v1773, 48
        %v1776 = vpop.permute.xlu0 %1775
        %1777 = vrot.lane.b32.xlu0 %v1774, 48
        %v1778 = vpop.permute.xlu0 %1777
        %v1782 = vunpack.c.l.b16 %v1562
        %v1783 = vunpack.c.l.b16 %v1630
        %v1784 = vunpack.c.l.b16 %v1698
        %v1785 = vpack.c.b16 %v1783, %v1782
        %v1786 = vpack.c.b16 %v1784, %v1784
        %1787 = vrot.lane.b32.xlu0 %v1785, 64
        %v1788 = vpop.permute.xlu0 %1787
        %1789 = vrot.lane.b32.xlu0 %v1786, 64
        %v1790 = vpop.permute.xlu0 %1789
        %v1794 = vunpack.c.l.b16 %v1596
        %v1795 = vunpack.c.l.b16 %v1664
        %v1796 = vunpack.c.l.b16 %v1732
        %v1797 = vpack.c.b16 %v1795, %v1794
        %v1798 = vpack.c.b16 %v1796, %v1796
        %1799 = vrot.lane.b32.xlu0 %v1797, 80
        %v1800 = vpop.permute.xlu0 %1799
        %1801 = vrot.lane.b32.xlu0 %v1798, 80
        %v1802 = vpop.permute.xlu0 %1801
        %v1806 = vunpack.c.l.b16 %v1564
        %v1807 = vunpack.c.l.b16 %v1632
        %v1808 = vunpack.c.l.b16 %v1700
        %v1809 = vpack.c.b16 %v1807, %v1806
        %v1810 = vpack.c.b16 %v1808, %v1808
        %1811 = vrot.lane.b32.xlu0 %v1809, 96
        %v1812 = vpop.permute.xlu0 %1811
        %1813 = vrot.lane.b32.xlu0 %v1810, 96
        %v1814 = vpop.permute.xlu0 %1813
        %v1818 = vunpack.c.l.b16 %v1598
        %v1819 = vunpack.c.l.b16 %v1666
        %v1820 = vunpack.c.l.b16 %v1734
        %v1821 = vpack.c.b16 %v1819, %v1818
        %v1822 = vpack.c.b16 %v1820, %v1820
        %1823 = vrot.lane.b32.xlu0 %v1821, 112
        %v1824 = vpop.permute.xlu0 %1823
        %1825 = vrot.lane.b32.xlu0 %v1822, 112
        %v1826 = vpop.permute.xlu0 %1825
        %v1829 = vsel %vm614, %v1741, %v1752
        %v1832 = vsel %vm614, %v1742, %v1754
        %v1834 = vsel %vm621, %v1829, %v1764
        %v1836 = vsel %vm621, %v1832, %v1766
        %v1838 = vsel %vm626, %v1834, %v1776
        %v1840 = vsel %vm626, %v1836, %v1778
        %v1842 = vsel %vm631, %v1838, %v1788
        %v1844 = vsel %vm631, %v1840, %v1790
        %v1846 = vsel %vm636, %v1842, %v1800
        %v1848 = vsel %vm636, %v1844, %v1802
        %v1850 = vsel %vm641, %v1846, %v1812
        %v1852 = vsel %vm641, %v1848, %v1814
        %v1854 = vsel %vm646, %v1850, %v1824
        %v1856 = vsel %vm646, %v1852, %v1826
        %vm1857 = vsmask.f32 2304
        %vm1858 = vsmask.f32 6416
        %vm1859 = vmor %vm1857, %vm1858
        %v1860 = vrot.slane %v236, 5
        %v1861 = vrot.slane %v658, 6
        %v1862 = vor.u32 %v1860, %v1861
        %v1863 = vrot.slane %v1862, 4
        %v1864 = vshrl.u32 %v191, 16
        %v1866 = vrot.slane %v1864, 5
        %v1867 = vrot.slane %v664, 6
        %v1868 = vor.u32 %v1866, %v1867
        %v1869 = vsel %vm1859, %v1863, %v1868
        %v1870 = vrot.slane %v237, 5
        %v1871 = vrot.slane %v670, 6
        %v1872 = vor.u32 %v1870, %v1871
        %v1873 = vrot.slane %v1872, 4
        %v1874 = vshrl.u32 %v193, 16
        %v1876 = vrot.slane %v1874, 5
        %v1877 = vrot.slane %v676, 6
        %v1878 = vor.u32 %v1876, %v1877
        %v1879 = vsel %vm1859, %v1873, %v1878
        %v1880 = vrot.slane %v244, 5
        %v1881 = vrot.slane %v682, 6
        %v1882 = vor.u32 %v1880, %v1881
        %v1883 = vrot.slane %v1882, 4
        %v1884 = vshrl.u32 %v195, 16
        %v1886 = vrot.slane %v1884, 5
        %v1887 = vrot.slane %v688, 6
        %v1888 = vor.u32 %v1886, %v1887
        %v1889 = vsel %vm1859, %v1883, %v1888
        %v1890 = vrot.slane %v245, 5
        %v1891 = vrot.slane %v694, 6
        %v1892 = vor.u32 %v1890, %v1891
        %v1893 = vrot.slane %v1892, 4
        %v1894 = vshrl.u32 %v197, 16
        %v1896 = vrot.slane %v1894, 5
        %v1897 = vrot.slane %v700, 6
        %v1898 = vor.u32 %v1896, %v1897
        %v1899 = vsel %vm1859, %v1893, %v1898
        %v1900 = vrot.slane %v252, 5
        %v1901 = vrot.slane %v706, 6
        %v1902 = vor.u32 %v1900, %v1901
        %v1903 = vrot.slane %v1902, 4
        %v1904 = vshrl.u32 %v199, 16
        %v1906 = vrot.slane %v1904, 5
        %v1907 = vrot.slane %v712, 6
        %v1908 = vor.u32 %v1906, %v1907
        %v1909 = vsel %vm1859, %v1903, %v1908
        %v1910 = vrot.slane %v253, 5
        %v1911 = vrot.slane %v718, 6
        %v1912 = vor.u32 %v1910, %v1911
        %v1913 = vrot.slane %v1912, 4
        %v1914 = vshrl.u32 %v201, 16
        %v1916 = vrot.slane %v1914, 5
        %v1917 = vrot.slane %v724, 6
        %v1918 = vor.u32 %v1916, %v1917
        %v1919 = vsel %vm1859, %v1913, %v1918
        %v1920 = vrot.slane %v260, 5
        %v1921 = vrot.slane %v730, 6
        %v1922 = vor.u32 %v1920, %v1921
        %v1923 = vrot.slane %v1922, 4
        %v1924 = vshrl.u32 %v203, 16
        %v1926 = vrot.slane %v1924, 5
        %v1927 = vrot.slane %v736, 6
        %v1928 = vor.u32 %v1926, %v1927
        %v1929 = vsel %vm1859, %v1923, %v1928
        %v1930 = vrot.slane %v261, 5
        %v1931 = vrot.slane %v742, 6
        %v1932 = vor.u32 %v1930, %v1931
        %v1933 = vrot.slane %v1932, 4
        %v1934 = vshrl.u32 %v205, 16
        %v1936 = vrot.slane %v1934, 5
        %v1937 = vrot.slane %v748, 6
        %v1938 = vor.u32 %v1936, %v1937
        %v1939 = vsel %vm1859, %v1933, %v1938
        %v1940 = vrot.slane %v268, 5
        %v1941 = vrot.slane %v754, 6
        %v1942 = vor.u32 %v1940, %v1941
        %v1943 = vrot.slane %v1942, 4
        %v1944 = vshrl.u32 %v207, 16
        %v1946 = vrot.slane %v1944, 5
        %v1947 = vrot.slane %v760, 6
        %v1948 = vor.u32 %v1946, %v1947
        %v1949 = vsel %vm1859, %v1943, %v1948
        %v1950 = vrot.slane %v269, 5
        %v1951 = vrot.slane %v766, 6
        %v1952 = vor.u32 %v1950, %v1951
        %v1953 = vrot.slane %v1952, 4
        %v1954 = vshrl.u32 %v209, 16
        %v1956 = vrot.slane %v1954, 5
        %v1957 = vrot.slane %v772, 6
        %v1958 = vor.u32 %v1956, %v1957
        %v1959 = vsel %vm1859, %v1953, %v1958
        %v1960 = vrot.slane %v276, 5
        %v1961 = vrot.slane %v778, 6
        %v1962 = vor.u32 %v1960, %v1961
        %v1963 = vrot.slane %v1962, 4
        %v1964 = vshrl.u32 %v211, 16
        %v1966 = vrot.slane %v1964, 5
        %v1967 = vrot.slane %v784, 6
        %v1968 = vor.u32 %v1966, %v1967
        %v1969 = vsel %vm1859, %v1963, %v1968
        %v1970 = vrot.slane %v277, 5
        %v1971 = vrot.slane %v790, 6
        %v1972 = vor.u32 %v1970, %v1971
        %v1973 = vrot.slane %v1972, 4
        %v1974 = vshrl.u32 %v213, 16
        %v1976 = vrot.slane %v1974, 5
        %v1977 = vrot.slane %v796, 6
        %v1978 = vor.u32 %v1976, %v1977
        %v1979 = vsel %vm1859, %v1973, %v1978
        %v1980 = vrot.slane %v284, 5
        %v1981 = vrot.slane %v802, 6
        %v1982 = vor.u32 %v1980, %v1981
        %v1983 = vrot.slane %v1982, 4
        %v1984 = vshrl.u32 %v215, 16
        %v1986 = vrot.slane %v1984, 5
        %v1987 = vrot.slane %v808, 6
        %v1988 = vor.u32 %v1986, %v1987
        %v1989 = vsel %vm1859, %v1983, %v1988
        %v1990 = vrot.slane %v285, 5
        %v1991 = vrot.slane %v814, 6
        %v1992 = vor.u32 %v1990, %v1991
        %v1993 = vrot.slane %v1992, 4
        %v1994 = vshrl.u32 %v217, 16
        %v1996 = vrot.slane %v1994, 5
        %v1997 = vrot.slane %v820, 6
        %v1998 = vor.u32 %v1996, %v1997
        %v1999 = vsel %vm1859, %v1993, %v1998
        %v2000 = vrot.slane %v292, 5
        %v2001 = vrot.slane %v826, 6
        %v2002 = vor.u32 %v2000, %v2001
        %v2003 = vrot.slane %v2002, 4
        %v2004 = vshrl.u32 %v219, 16
        %v2006 = vrot.slane %v2004, 5
        %v2007 = vrot.slane %v832, 6
        %v2008 = vor.u32 %v2006, %v2007
        %v2009 = vsel %vm1859, %v2003, %v2008
        %v2010 = vrot.slane %v293, 5
        %v2011 = vrot.slane %v838, 6
        %v2012 = vor.u32 %v2010, %v2011
        %v2013 = vrot.slane %v2012, 4
        %v2014 = vshrl.u32 %v221, 16
        %v2016 = vrot.slane %v2014, 5
        %v2017 = vrot.slane %v844, 6
        %v2018 = vor.u32 %v2016, %v2017
        %v2019 = vsel %vm1859, %v2013, %v2018
        %v2020 = vrot.slane %v300, 5
        %v2021 = vrot.slane %v850, 6
        %v2022 = vor.u32 %v2020, %v2021
        %v2023 = vrot.slane %v2022, 4
        %v2024 = vshrl.u32 %v223, 16
        %v2026 = vrot.slane %v2024, 5
        %v2027 = vrot.slane %v856, 6
        %v2028 = vor.u32 %v2026, %v2027
        %v2029 = vsel %vm1859, %v2023, %v2028
        %v2030 = vrot.slane %v301, 5
        %v2031 = vrot.slane %v862, 6
        %v2032 = vor.u32 %v2030, %v2031
        %v2033 = vrot.slane %v2032, 4
        %v2034 = vshrl.u32 %v225, 16
        %v2036 = vrot.slane %v2034, 5
        %v2037 = vrot.slane %v868, 6
        %v2038 = vor.u32 %v2036, %v2037
        %v2039 = vsel %vm1859, %v2033, %v2038
        %v2040 = vrot.slane %v307, 5
        %v2041 = vrot.slane %v874, 6
        %v2042 = vor.u32 %v2040, %v2041
        %v2043 = vrot.slane %v2042, 4
        %v2044 = vshrl.u32 %v227, 16
        %v2046 = vrot.slane %v2044, 5
        %v2047 = vrot.slane %v880, 6
        %v2048 = vor.u32 %v2046, %v2047
        %v2049 = vsel %vm1859, %v2043, %v2048
        %v2050 = vrot.slane %v308, 5
        %v2051 = vrot.slane %v886, 6
        %v2052 = vor.u32 %v2050, %v2051
        %v2053 = vrot.slane %v2052, 4
        %v2054 = vshrl.u32 %v229, 16
        %v2056 = vrot.slane %v2054, 5
        %v2057 = vrot.slane %v892, 6
        %v2058 = vor.u32 %v2056, %v2057
        %v2059 = vsel %vm1859, %v2053, %v2058
        %v2060 = vrot.slane %v314, 5
        %v2061 = vrot.slane %v898, 6
        %v2062 = vor.u32 %v2060, %v2061
        %v2063 = vrot.slane %v2062, 4
        %v2064 = vshrl.u32 %v231, 16
        %v2066 = vrot.slane %v2064, 5
        %v2067 = vrot.slane %v904, 6
        %v2068 = vor.u32 %v2066, %v2067
        %v2069 = vsel %vm1859, %v2063, %v2068
        %v2072 = vpack.i.b16 %v1879, %v1869
        %v2074 = vshrl.u32 %v1869, 16
        %v2075 = vshrl.u32 %v1879, 16
        %v2076 = vpack.i.b16 %v2075, %v2074
        %v2080 = vpack.i.b16 %v1899, %v1889
        %v2082 = vshrl.u32 %v1889, 16
        %v2083 = vshrl.u32 %v1899, 16
        %v2084 = vpack.i.b16 %v2083, %v2082
        %v2088 = vpack.i.b16 %v1919, %v1909
        %v2090 = vshrl.u32 %v1909, 16
        %v2091 = vshrl.u32 %v1919, 16
        %v2092 = vpack.i.b16 %v2091, %v2090
        %v2096 = vpack.i.b16 %v1939, %v1929
        %v2098 = vshrl.u32 %v1929, 16
        %v2099 = vshrl.u32 %v1939, 16
        %v2100 = vpack.i.b16 %v2099, %v2098
        %v2104 = vpack.i.b16 %v1959, %v1949
        %v2106 = vshrl.u32 %v1949, 16
        %v2107 = vshrl.u32 %v1959, 16
        %v2108 = vpack.i.b16 %v2107, %v2106
        %v2112 = vpack.i.b16 %v1979, %v1969
        %v2114 = vshrl.u32 %v1969, 16
        %v2115 = vshrl.u32 %v1979, 16
        %v2116 = vpack.i.b16 %v2115, %v2114
        %v2120 = vpack.i.b16 %v1999, %v1989
        %v2122 = vshrl.u32 %v1989, 16
        %v2123 = vshrl.u32 %v1999, 16
        %v2124 = vpack.i.b16 %v2123, %v2122
        %v2128 = vpack.i.b16 %v2019, %v2009
        %v2130 = vshrl.u32 %v2009, 16
        %v2131 = vshrl.u32 %v2019, 16
        %v2132 = vpack.i.b16 %v2131, %v2130
        %v2136 = vpack.i.b16 %v2039, %v2029
        %v2138 = vshrl.u32 %v2029, 16
        %v2139 = vshrl.u32 %v2039, 16
        %v2140 = vpack.i.b16 %v2139, %v2138
        %v2144 = vpack.i.b16 %v2059, %v2049
        %v2145 = vshrl.u32 %v2049, 16
        %v2146 = vshrl.u32 %v2059, 16
        %v2147 = vpack.i.b16 %v2146, %v2145
        %v2149 = vpack.i.b16 0, %v2069
        %v2151 = vshrl.u32 %v2069, 16
        %v2152 = vpack.i.b16 %v315, %v2151
        %v2154 = vcombine.low %v2072, %v2088
        %v2156 = vunpack.c.l.s4 1983009808
        %v2157 = vunpack.c.0.s8 %v2156
        %v2158 = vlaneseq
        %v2159 = vshrl.u32 %v2158, 7
        %v2160 = vsub.s32 %v2157, %v2159
        %v2161 = vrot.slane %v2154, %v2160
        %v2162 = vcombine.low %v2080, %v2096
        %v2164 = vunpack.c.l.s4 1983009808
        %v2165 = vunpack.c.0.s8 %v2164
        %v2166 = vlaneseq
        %v2167 = vshrl.u32 %v2166, 7
        %v2168 = vsub.s32 %v2165, %v2167
        %v2169 = vrot.slane %v2162, %v2168
        %v2170 = vcombine.low %v2161, %v2169
        %v2171 = vcombine.high %v2161, %v2169
        %v2173 = vunpack.c.l.s4 1934713408
        %v2174 = vunpack.c.0.s8 %v2173
        %v2175 = vlaneseq
        %v2176 = vshrl.u32 %v2175, 7
        %v2177 = vsub.s32 %v2174, %v2176
        %v2178 = vrot.slane %v2170, %v2177
        %v2180 = vunpack.c.l.s4 1934713408
        %v2181 = vunpack.c.0.s8 %v2180
        %v2182 = vlaneseq
        %v2183 = vshrl.u32 %v2182, 7
        %v2184 = vsub.s32 %v2181, %v2183
        %v2185 = vrot.slane %v2171, %v2184
        %v2186 = vcombine.high %v2178, 0
        %v2187 = vcombine.high %v2185, 0
        %v2188 = vcombine.low %v2076, %v2092
        %v2190 = vunpack.c.l.s4 1983009808
        %v2191 = vunpack.c.0.s8 %v2190
        %v2192 = vlaneseq
        %v2193 = vshrl.u32 %v2192, 7
        %v2194 = vsub.s32 %v2191, %v2193
        %v2195 = vrot.slane %v2188, %v2194
        %v2196 = vcombine.low %v2084, %v2100
        %v2198 = vunpack.c.l.s4 1983009808
        %v2199 = vunpack.c.0.s8 %v2198
        %v2200 = vlaneseq
        %v2201 = vshrl.u32 %v2200, 7
        %v2202 = vsub.s32 %v2199, %v2201
        %v2203 = vrot.slane %v2196, %v2202
        %v2204 = vcombine.low %v2195, %v2203
        %v2205 = vcombine.high %v2195, %v2203
        %v2207 = vunpack.c.l.s4 1934713408
        %v2208 = vunpack.c.0.s8 %v2207
        %v2209 = vlaneseq
        %v2210 = vshrl.u32 %v2209, 7
        %v2211 = vsub.s32 %v2208, %v2210
        %v2212 = vrot.slane %v2204, %v2211
        %v2214 = vunpack.c.l.s4 1934713408
        %v2215 = vunpack.c.0.s8 %v2214
        %v2216 = vlaneseq
        %v2217 = vshrl.u32 %v2216, 7
        %v2218 = vsub.s32 %v2215, %v2217
        %v2219 = vrot.slane %v2205, %v2218
        %v2220 = vcombine.high %v2212, 0
        %v2221 = vcombine.high %v2219, 0
        %v2222 = vcombine.low %v2104, %v2120
        %v2224 = vunpack.c.l.s4 1983009808
        %v2225 = vunpack.c.0.s8 %v2224
        %v2226 = vlaneseq
        %v2227 = vshrl.u32 %v2226, 7
        %v2228 = vsub.s32 %v2225, %v2227
        %v2229 = vrot.slane %v2222, %v2228
        %v2230 = vcombine.low %v2112, %v2128
        %v2232 = vunpack.c.l.s4 1983009808
        %v2233 = vunpack.c.0.s8 %v2232
        %v2234 = vlaneseq
        %v2235 = vshrl.u32 %v2234, 7
        %v2236 = vsub.s32 %v2233, %v2235
        %v2237 = vrot.slane %v2230, %v2236
        %v2238 = vcombine.low %v2229, %v2237
        %v2239 = vcombine.high %v2229, %v2237
        %v2241 = vunpack.c.l.s4 1934713408
        %v2242 = vunpack.c.0.s8 %v2241
        %v2243 = vlaneseq
        %v2244 = vshrl.u32 %v2243, 7
        %v2245 = vsub.s32 %v2242, %v2244
        %v2246 = vrot.slane %v2238, %v2245
        %v2248 = vunpack.c.l.s4 1934713408
        %v2249 = vunpack.c.0.s8 %v2248
        %v2250 = vlaneseq
        %v2251 = vshrl.u32 %v2250, 7
        %v2252 = vsub.s32 %v2249, %v2251
        %v2253 = vrot.slane %v2239, %v2252
        %v2254 = vcombine.high %v2246, 0
        %v2255 = vcombine.high %v2253, 0
        %v2256 = vcombine.low %v2108, %v2124
        %v2258 = vunpack.c.l.s4 1983009808
        %v2259 = vunpack.c.0.s8 %v2258
        %v2260 = vlaneseq
        %v2261 = vshrl.u32 %v2260, 7
        %v2262 = vsub.s32 %v2259, %v2261
        %v2263 = vrot.slane %v2256, %v2262
        %v2264 = vcombine.low %v2116, %v2132
        %v2266 = vunpack.c.l.s4 1983009808
        %v2267 = vunpack.c.0.s8 %v2266
        %v2268 = vlaneseq
        %v2269 = vshrl.u32 %v2268, 7
        %v2270 = vsub.s32 %v2267, %v2269
        %v2271 = vrot.slane %v2264, %v2270
        %v2272 = vcombine.low %v2263, %v2271
        %v2273 = vcombine.high %v2263, %v2271
        %v2275 = vunpack.c.l.s4 1934713408
        %v2276 = vunpack.c.0.s8 %v2275
        %v2277 = vlaneseq
        %v2278 = vshrl.u32 %v2277, 7
        %v2279 = vsub.s32 %v2276, %v2278
        %v2280 = vrot.slane %v2272, %v2279
        %v2282 = vunpack.c.l.s4 1934713408
        %v2283 = vunpack.c.0.s8 %v2282
        %v2284 = vlaneseq
        %v2285 = vshrl.u32 %v2284, 7
        %v2286 = vsub.s32 %v2283, %v2285
        %v2287 = vrot.slane %v2273, %v2286
        %v2288 = vcombine.high %v2280, 0
        %v2289 = vcombine.high %v2287, 0
        %v2290 = vcombine.low %v2136, %v2149
        %v2292 = vunpack.c.l.s4 1983009808
        %v2293 = vunpack.c.0.s8 %v2292
        %v2294 = vlaneseq
        %v2295 = vshrl.u32 %v2294, 7
        %v2296 = vsub.s32 %v2293, %v2295
        %v2297 = vrot.slane %v2290, %v2296
        %v2300 = vunpack.c.l.s4 1983009808
        %v2301 = vunpack.c.0.s8 %v2300
        %v2302 = vlaneseq
        %v2303 = vshrl.u32 %v2302, 7
        %v2304 = vsub.s32 %v2301, %v2303
        %v2305 = vrot.slane %v2144, %v2304
        %v2306 = vcombine.low %v2297, %v2305
        %v2307 = vcombine.high %v2297, %v2305
        %v2309 = vunpack.c.l.s4 1934713408
        %v2310 = vunpack.c.0.s8 %v2309
        %v2311 = vlaneseq
        %v2312 = vshrl.u32 %v2311, 7
        %v2313 = vsub.s32 %v2310, %v2312
        %v2314 = vrot.slane %v2306, %v2313
        %v2316 = vunpack.c.l.s4 1934713408
        %v2317 = vunpack.c.0.s8 %v2316
        %v2318 = vlaneseq
        %v2319 = vshrl.u32 %v2318, 7
        %v2320 = vsub.s32 %v2317, %v2319
        %v2321 = vrot.slane %v2307, %v2320
        %v2322 = vcombine.high %v2314, 0
        %v2323 = vcombine.high %v2321, 0
        %v2324 = vcombine.low %v2140, %v2152
        %v2326 = vunpack.c.l.s4 1983009808
        %v2327 = vunpack.c.0.s8 %v2326
        %v2328 = vlaneseq
        %v2329 = vshrl.u32 %v2328, 7
        %v2330 = vsub.s32 %v2327, %v2329
        %v2331 = vrot.slane %v2324, %v2330
        %v2334 = vunpack.c.l.s4 1983009808
        %v2335 = vunpack.c.0.s8 %v2334
        %v2336 = vlaneseq
        %v2337 = vshrl.u32 %v2336, 7
        %v2338 = vsub.s32 %v2335, %v2337
        %v2339 = vrot.slane %v2147, %v2338
        %v2340 = vcombine.low %v2331, %v2339
        %v2341 = vcombine.high %v2331, %v2339
        %v2343 = vunpack.c.l.s4 1934713408
        %v2344 = vunpack.c.0.s8 %v2343
        %v2345 = vlaneseq
        %v2346 = vshrl.u32 %v2345, 7
        %v2347 = vsub.s32 %v2344, %v2346
        %v2348 = vrot.slane %v2340, %v2347
        %v2350 = vunpack.c.l.s4 1934713408
        %v2351 = vunpack.c.0.s8 %v2350
        %v2352 = vlaneseq
        %v2353 = vshrl.u32 %v2352, 7
        %v2354 = vsub.s32 %v2351, %v2353
        %v2355 = vrot.slane %v2341, %v2354
        %v2356 = vcombine.high %v2348, 0
        %v2357 = vcombine.high %v2355, 0
        %v2361 = vunpack.c.l.b16 %v2178
        %v2362 = vunpack.c.l.b16 %v2246
        %v2363 = vunpack.c.l.b16 %v2314
        %v2364 = vpack.c.b16 %v2362, %v2361
        %v2365 = vpack.c.b16 %v2363, %v2363
        %v2369 = vunpack.c.l.b16 %v2212
        %v2370 = vunpack.c.l.b16 %v2280
        %v2371 = vunpack.c.l.b16 %v2348
        %v2372 = vpack.c.b16 %v2370, %v2369
        %v2373 = vpack.c.b16 %v2371, %v2371
        %2374 = vrot.lane.b32.xlu0 %v2372, 16
        %v2375 = vpop.permute.xlu0 %2374
        %2376 = vrot.lane.b32.xlu0 %v2373, 16
        %v2377 = vpop.permute.xlu0 %2376
        %v2381 = vunpack.c.l.b16 %v2186
        %v2382 = vunpack.c.l.b16 %v2254
        %v2383 = vunpack.c.l.b16 %v2322
        %v2384 = vpack.c.b16 %v2382, %v2381
        %v2385 = vpack.c.b16 %v2383, %v2383
        %2386 = vrot.lane.b32.xlu0 %v2384, 32
        %v2387 = vpop.permute.xlu0 %2386
        %2388 = vrot.lane.b32.xlu0 %v2385, 32
        %v2389 = vpop.permute.xlu0 %2388
        %v2393 = vunpack.c.l.b16 %v2220
        %v2394 = vunpack.c.l.b16 %v2288
        %v2395 = vunpack.c.l.b16 %v2356
        %v2396 = vpack.c.b16 %v2394, %v2393
        %v2397 = vpack.c.b16 %v2395, %v2395
        %2398 = vrot.lane.b32.xlu0 %v2396, 48
        %v2399 = vpop.permute.xlu0 %2398
        %2400 = vrot.lane.b32.xlu0 %v2397, 48
        %v2401 = vpop.permute.xlu0 %2400
        %v2405 = vunpack.c.l.b16 %v2185
        %v2406 = vunpack.c.l.b16 %v2253
        %v2407 = vunpack.c.l.b16 %v2321
        %v2408 = vpack.c.b16 %v2406, %v2405
        %v2409 = vpack.c.b16 %v2407, %v2407
        %2410 = vrot.lane.b32.xlu0 %v2408, 64
        %v2411 = vpop.permute.xlu0 %2410
        %2412 = vrot.lane.b32.xlu0 %v2409, 64
        %v2413 = vpop.permute.xlu0 %2412
        %v2417 = vunpack.c.l.b16 %v2219
        %v2418 = vunpack.c.l.b16 %v2287
        %v2419 = vunpack.c.l.b16 %v2355
        %v2420 = vpack.c.b16 %v2418, %v2417
        %v2421 = vpack.c.b16 %v2419, %v2419
        %2422 = vrot.lane.b32.xlu0 %v2420, 80
        %v2423 = vpop.permute.xlu0 %2422
        %2424 = vrot.lane.b32.xlu0 %v2421, 80
        %v2425 = vpop.permute.xlu0 %2424
        %v2429 = vunpack.c.l.b16 %v2187
        %v2430 = vunpack.c.l.b16 %v2255
        %v2431 = vunpack.c.l.b16 %v2323
        %v2432 = vpack.c.b16 %v2430, %v2429
        %v2433 = vpack.c.b16 %v2431, %v2431
        %2434 = vrot.lane.b32.xlu0 %v2432, 96
        %v2435 = vpop.permute.xlu0 %2434
        %2436 = vrot.lane.b32.xlu0 %v2433, 96
        %v2437 = vpop.permute.xlu0 %2436
        %v2441 = vunpack.c.l.b16 %v2221
        %v2442 = vunpack.c.l.b16 %v2289
        %v2443 = vunpack.c.l.b16 %v2357
        %v2444 = vpack.c.b16 %v2442, %v2441
        %v2445 = vpack.c.b16 %v2443, %v2443
        %2446 = vrot.lane.b32.xlu0 %v2444, 112
        %v2447 = vpop.permute.xlu0 %2446
        %2448 = vrot.lane.b32.xlu0 %v2445, 112
        %v2449 = vpop.permute.xlu0 %2448
        %v2452 = vsel %vm614, %v2364, %v2375
        %v2455 = vsel %vm614, %v2365, %v2377
        %v2457 = vsel %vm621, %v2452, %v2387
        %v2459 = vsel %vm621, %v2455, %v2389
        %v2461 = vsel %vm626, %v2457, %v2399
        %v2463 = vsel %vm626, %v2459, %v2401
        %v2465 = vsel %vm631, %v2461, %v2411
        %v2467 = vsel %vm631, %v2463, %v2413
        %v2469 = vsel %vm636, %v2465, %v2423
        %v2471 = vsel %vm636, %v2467, %v2425
        %v2473 = vsel %vm641, %v2469, %v2435
        %v2475 = vsel %vm641, %v2471, %v2437
        %v2477 = vsel %vm646, %v2473, %v2447
        %v2479 = vsel %vm646, %v2475, %v2449
        %vm2480 = vcmask 1041408
        %vm2481 = vcmask 1045508
        %vm2482 = vmor %vm2480, %vm2481
        %v2483 = vrot.slane %v190, 6
        %v2484 = vrot.slane %v2483, 4
        %v2485 = vrot.slane %v191, 6
        %v2486 = vsel %vm2482, %v2484, %v2485
        %v2487 = vrot.slane %v192, 6
        %v2488 = vrot.slane %v2487, 4
        %v2489 = vrot.slane %v193, 6
        %v2490 = vsel %vm2482, %v2488, %v2489
        %v2491 = vrot.slane %v194, 6
        %v2492 = vrot.slane %v2491, 4
        %v2493 = vrot.slane %v195, 6
        %v2494 = vsel %vm2482, %v2492, %v2493
        %v2495 = vrot.slane %v196, 6
        %v2496 = vrot.slane %v2495, 4
        %v2497 = vrot.slane %v197, 6
        %v2498 = vsel %vm2482, %v2496, %v2497
        %v2499 = vrot.slane %v198, 6
        %v2500 = vrot.slane %v2499, 4
        %v2501 = vrot.slane %v199, 6
        %v2502 = vsel %vm2482, %v2500, %v2501
        %v2503 = vrot.slane %v200, 6
        %v2504 = vrot.slane %v2503, 4
        %v2505 = vrot.slane %v201, 6
        %v2506 = vsel %vm2482, %v2504, %v2505
        %v2507 = vrot.slane %v202, 6
        %v2508 = vrot.slane %v2507, 4
        %v2509 = vrot.slane %v203, 6
        %v2510 = vsel %vm2482, %v2508, %v2509
        %v2511 = vrot.slane %v204, 6
        %v2512 = vrot.slane %v2511, 4
        %v2513 = vrot.slane %v205, 6
        %v2514 = vsel %vm2482, %v2512, %v2513
        %v2515 = vrot.slane %v206, 6
        %v2516 = vrot.slane %v2515, 4
        %v2517 = vrot.slane %v207, 6
        %v2518 = vsel %vm2482, %v2516, %v2517
        %v2519 = vrot.slane %v208, 6
        %v2520 = vrot.slane %v2519, 4
        %v2521 = vrot.slane %v209, 6
        %v2522 = vsel %vm2482, %v2520, %v2521
        %v2523 = vrot.slane %v210, 6
        %v2524 = vrot.slane %v2523, 4
        %v2525 = vrot.slane %v211, 6
        %v2526 = vsel %vm2482, %v2524, %v2525
        %v2527 = vrot.slane %v212, 6
        %v2528 = vrot.slane %v2527, 4
        %v2529 = vrot.slane %v213, 6
        %v2530 = vsel %vm2482, %v2528, %v2529
        %v2531 = vrot.slane %v214, 6
        %v2532 = vrot.slane %v2531, 4
        %v2533 = vrot.slane %v215, 6
        %v2534 = vsel %vm2482, %v2532, %v2533
        %v2535 = vrot.slane %v216, 6
        %v2536 = vrot.slane %v2535, 4
        %v2537 = vrot.slane %v217, 6
        %v2538 = vsel %vm2482, %v2536, %v2537
        %v2539 = vrot.slane %v218, 6
        %v2540 = vrot.slane %v2539, 4
        %v2541 = vrot.slane %v219, 6
        %v2542 = vsel %vm2482, %v2540, %v2541
        %v2543 = vrot.slane %v220, 6
        %v2544 = vrot.slane %v2543, 4
        %v2545 = vrot.slane %v221, 6
        %v2546 = vsel %vm2482, %v2544, %v2545
        %v2547 = vrot.slane %v222, 6
        %v2548 = vrot.slane %v2547, 4
        %v2549 = vrot.slane %v223, 6
        %v2550 = vsel %vm2482, %v2548, %v2549
        %v2551 = vrot.slane %v224, 6
        %v2552 = vrot.slane %v2551, 4
        %v2553 = vrot.slane %v225, 6
        %v2554 = vsel %vm2482, %v2552, %v2553
        %v2555 = vrot.slane %v226, 6
        %v2556 = vrot.slane %v2555, 4
        %v2557 = vrot.slane %v227, 6
        %v2558 = vsel %vm2482, %v2556, %v2557
        %v2559 = vrot.slane %v228, 6
        %v2560 = vrot.slane %v2559, 4
        %v2561 = vrot.slane %v229, 6
        %v2562 = vsel %vm2482, %v2560, %v2561
        %v2563 = vrot.slane %v230, 6
        %v2564 = vrot.slane %v2563, 4
        %v2565 = vrot.slane %v231, 6
        %v2566 = vsel %vm2482, %v2564, %v2565
        %v2569 = vpack.i.b16 %v2490, %v2486
        %v2571 = vshrl.u32 %v2486, 16
        %v2572 = vshrl.u32 %v2490, 16
        %v2573 = vpack.i.b16 %v2572, %v2571
        %v2577 = vpack.i.b16 %v2498, %v2494
        %v2579 = vshrl.u32 %v2494, 16
        %v2580 = vshrl.u32 %v2498, 16
        %v2581 = vpack.i.b16 %v2580, %v2579
        %v2585 = vpack.i.b16 %v2506, %v2502
        %v2587 = vshrl.u32 %v2502, 16
        %v2588 = vshrl.u32 %v2506, 16
        %v2589 = vpack.i.b16 %v2588, %v2587
        %v2593 = vpack.i.b16 %v2514, %v2510
        %v2595 = vshrl.u32 %v2510, 16
        %v2596 = vshrl.u32 %v2514, 16
        %v2597 = vpack.i.b16 %v2596, %v2595
        %v2601 = vpack.i.b16 %v2522, %v2518
        %v2603 = vshrl.u32 %v2518, 16
        %v2604 = vshrl.u32 %v2522, 16
        %v2605 = vpack.i.b16 %v2604, %v2603
        %v2609 = vpack.i.b16 %v2530, %v2526
        %v2611 = vshrl.u32 %v2526, 16
        %v2612 = vshrl.u32 %v2530, 16
        %v2613 = vpack.i.b16 %v2612, %v2611
        %v2617 = vpack.i.b16 %v2538, %v2534
        %v2619 = vshrl.u32 %v2534, 16
        %v2620 = vshrl.u32 %v2538, 16
        %v2621 = vpack.i.b16 %v2620, %v2619
        %v2625 = vpack.i.b16 %v2546, %v2542
        %v2627 = vshrl.u32 %v2542, 16
        %v2628 = vshrl.u32 %v2546, 16
        %v2629 = vpack.i.b16 %v2628, %v2627
        %v2633 = vpack.i.b16 %v2554, %v2550
        %v2635 = vshrl.u32 %v2550, 16
        %v2636 = vshrl.u32 %v2554, 16
        %v2637 = vpack.i.b16 %v2636, %v2635
        %v2641 = vpack.i.b16 %v2562, %v2558
        %v2642 = vshrl.u32 %v2558, 16
        %v2643 = vshrl.u32 %v2562, 16
        %v2644 = vpack.i.b16 %v2643, %v2642
        %v2646 = vpack.i.b16 0, %v2566
        %v2648 = vshrl.u32 %v2566, 16
        %v2649 = vpack.i.b16 %v315, %v2648
        %v2651 = vcombine.low %v2569, %v2585
        %v2653 = vunpack.c.l.s4 1983009808
        %v2654 = vunpack.c.0.s8 %v2653
        %v2655 = vlaneseq
        %v2656 = vshrl.u32 %v2655, 7
        %v2657 = vsub.s32 %v2654, %v2656
        %v2658 = vrot.slane %v2651, %v2657
        %v2659 = vcombine.low %v2577, %v2593
        %v2661 = vunpack.c.l.s4 1983009808
        %v2662 = vunpack.c.0.s8 %v2661
        %v2663 = vlaneseq
        %v2664 = vshrl.u32 %v2663, 7
        %v2665 = vsub.s32 %v2662, %v2664
        %v2666 = vrot.slane %v2659, %v2665
        %v2667 = vcombine.low %v2658, %v2666
        %v2668 = vcombine.high %v2658, %v2666
        %v2670 = vunpack.c.l.s4 1934713408
        %v2671 = vunpack.c.0.s8 %v2670
        %v2672 = vlaneseq
        %v2673 = vshrl.u32 %v2672, 7
        %v2674 = vsub.s32 %v2671, %v2673
        %v2675 = vrot.slane %v2667, %v2674
        %v2677 = vunpack.c.l.s4 1934713408
        %v2678 = vunpack.c.0.s8 %v2677
        %v2679 = vlaneseq
        %v2680 = vshrl.u32 %v2679, 7
        %v2681 = vsub.s32 %v2678, %v2680
        %v2682 = vrot.slane %v2668, %v2681
        %v2683 = vcombine.high %v2675, 0
        %v2684 = vcombine.high %v2682, 0
        %v2685 = vcombine.low %v2573, %v2589
        %v2687 = vunpack.c.l.s4 1983009808
        %v2688 = vunpack.c.0.s8 %v2687
        %v2689 = vlaneseq
        %v2690 = vshrl.u32 %v2689, 7
        %v2691 = vsub.s32 %v2688, %v2690
        %v2692 = vrot.slane %v2685, %v2691
        %v2693 = vcombine.low %v2581, %v2597
        %v2695 = vunpack.c.l.s4 1983009808
        %v2696 = vunpack.c.0.s8 %v2695
        %v2697 = vlaneseq
        %v2698 = vshrl.u32 %v2697, 7
        %v2699 = vsub.s32 %v2696, %v2698
        %v2700 = vrot.slane %v2693, %v2699
        %v2701 = vcombine.low %v2692, %v2700
        %v2702 = vcombine.high %v2692, %v2700
        %v2704 = vunpack.c.l.s4 1934713408
        %v2705 = vunpack.c.0.s8 %v2704
        %v2706 = vlaneseq
        %v2707 = vshrl.u32 %v2706, 7
        %v2708 = vsub.s32 %v2705, %v2707
        %v2709 = vrot.slane %v2701, %v2708
        %v2711 = vunpack.c.l.s4 1934713408
        %v2712 = vunpack.c.0.s8 %v2711
        %v2713 = vlaneseq
        %v2714 = vshrl.u32 %v2713, 7
        %v2715 = vsub.s32 %v2712, %v2714
        %v2716 = vrot.slane %v2702, %v2715
        %v2717 = vcombine.high %v2709, 0
        %v2718 = vcombine.high %v2716, 0
        %v2719 = vcombine.low %v2601, %v2617
        %v2721 = vunpack.c.l.s4 1983009808
        %v2722 = vunpack.c.0.s8 %v2721
        %v2723 = vlaneseq
        %v2724 = vshrl.u32 %v2723, 7
        %v2725 = vsub.s32 %v2722, %v2724
        %v2726 = vrot.slane %v2719, %v2725
        %v2727 = vcombine.low %v2609, %v2625
        %v2729 = vunpack.c.l.s4 1983009808
        %v2730 = vunpack.c.0.s8 %v2729
        %v2731 = vlaneseq
        %v2732 = vshrl.u32 %v2731, 7
        %v2733 = vsub.s32 %v2730, %v2732
        %v2734 = vrot.slane %v2727, %v2733
        %v2735 = vcombine.low %v2726, %v2734
        %v2736 = vcombine.high %v2726, %v2734
        %v2738 = vunpack.c.l.s4 1934713408
        %v2739 = vunpack.c.0.s8 %v2738
        %v2740 = vlaneseq
        %v2741 = vshrl.u32 %v2740, 7
        %v2742 = vsub.s32 %v2739, %v2741
        %v2743 = vrot.slane %v2735, %v2742
        %v2745 = vunpack.c.l.s4 1934713408
        %v2746 = vunpack.c.0.s8 %v2745
        %v2747 = vlaneseq
        %v2748 = vshrl.u32 %v2747, 7
        %v2749 = vsub.s32 %v2746, %v2748
        %v2750 = vrot.slane %v2736, %v2749
        %v2751 = vcombine.high %v2743, 0
        %v2752 = vcombine.high %v2750, 0
        %v2753 = vcombine.low %v2605, %v2621
        %v2755 = vunpack.c.l.s4 1983009808
        %v2756 = vunpack.c.0.s8 %v2755
        %v2757 = vlaneseq
        %v2758 = vshrl.u32 %v2757, 7
        %v2759 = vsub.s32 %v2756, %v2758
        %v2760 = vrot.slane %v2753, %v2759
        %v2761 = vcombine.low %v2613, %v2629
        %v2763 = vunpack.c.l.s4 1983009808
        %v2764 = vunpack.c.0.s8 %v2763
        %v2765 = vlaneseq
        %v2766 = vshrl.u32 %v2765, 7
        %v2767 = vsub.s32 %v2764, %v2766
        %v2768 = vrot.slane %v2761, %v2767
        %v2769 = vcombine.low %v2760, %v2768
        %v2770 = vcombine.high %v2760, %v2768
        %v2772 = vunpack.c.l.s4 1934713408
        %v2773 = vunpack.c.0.s8 %v2772
        %v2774 = vlaneseq
        %v2775 = vshrl.u32 %v2774, 7
        %v2776 = vsub.s32 %v2773, %v2775
        %v2777 = vrot.slane %v2769, %v2776
        %v2779 = vunpack.c.l.s4 1934713408
        %v2780 = vunpack.c.0.s8 %v2779
        %v2781 = vlaneseq
        %v2782 = vshrl.u32 %v2781, 7
        %v2783 = vsub.s32 %v2780, %v2782
        %v2784 = vrot.slane %v2770, %v2783
        %v2785 = vcombine.high %v2777, 0
        %v2786 = vcombine.high %v2784, 0
        %v2787 = vcombine.low %v2633, %v2646
        %v2789 = vunpack.c.l.s4 1983009808
        %v2790 = vunpack.c.0.s8 %v2789
        %v2791 = vlaneseq
        %v2792 = vshrl.u32 %v2791, 7
        %v2793 = vsub.s32 %v2790, %v2792
        %v2794 = vrot.slane %v2787, %v2793
        %v2797 = vunpack.c.l.s4 1983009808
        %v2798 = vunpack.c.0.s8 %v2797
        %v2799 = vlaneseq
        %v2800 = vshrl.u32 %v2799, 7
        %v2801 = vsub.s32 %v2798, %v2800
        %v2802 = vrot.slane %v2641, %v2801
        %v2803 = vcombine.low %v2794, %v2802
        %v2804 = vcombine.high %v2794, %v2802
        %v2806 = vunpack.c.l.s4 1934713408
        %v2807 = vunpack.c.0.s8 %v2806
        %v2808 = vlaneseq
        %v2809 = vshrl.u32 %v2808, 7
        %v2810 = vsub.s32 %v2807, %v2809
        %v2811 = vrot.slane %v2803, %v2810
        %v2813 = vunpack.c.l.s4 1934713408
        %v2814 = vunpack.c.0.s8 %v2813
        %v2815 = vlaneseq
        %v2816 = vshrl.u32 %v2815, 7
        %v2817 = vsub.s32 %v2814, %v2816
        %v2818 = vrot.slane %v2804, %v2817
        %v2819 = vcombine.high %v2811, 0
        %v2820 = vcombine.high %v2818, 0
        %v2821 = vcombine.low %v2637, %v2649
        %v2823 = vunpack.c.l.s4 1983009808
        %v2824 = vunpack.c.0.s8 %v2823
        %v2825 = vlaneseq
        %v2826 = vshrl.u32 %v2825, 7
        %v2827 = vsub.s32 %v2824, %v2826
        %v2828 = vrot.slane %v2821, %v2827
        %v2831 = vunpack.c.l.s4 1983009808
        %v2832 = vunpack.c.0.s8 %v2831
        %v2833 = vlaneseq
        %v2834 = vshrl.u32 %v2833, 7
        %v2835 = vsub.s32 %v2832, %v2834
        %v2836 = vrot.slane %v2644, %v2835
        %v2837 = vcombine.low %v2828, %v2836
        %v2838 = vcombine.high %v2828, %v2836
        %v2840 = vunpack.c.l.s4 1934713408
        %v2841 = vunpack.c.0.s8 %v2840
        %v2842 = vlaneseq
        %v2843 = vshrl.u32 %v2842, 7
        %v2844 = vsub.s32 %v2841, %v2843
        %v2845 = vrot.slane %v2837, %v2844
        %v2847 = vunpack.c.l.s4 1934713408
        %v2848 = vunpack.c.0.s8 %v2847
        %v2849 = vlaneseq
        %v2850 = vshrl.u32 %v2849, 7
        %v2851 = vsub.s32 %v2848, %v2850
        %v2852 = vrot.slane %v2838, %v2851
        %v2853 = vcombine.high %v2845, 0
        %v2854 = vcombine.high %v2852, 0
        %v2858 = vunpack.c.l.b16 %v2675
        %v2859 = vunpack.c.l.b16 %v2743
        %v2860 = vunpack.c.l.b16 %v2811
        %v2861 = vpack.c.b16 %v2859, %v2858
        %v2862 = vpack.c.b16 %v2860, %v2860
        %v2866 = vunpack.c.l.b16 %v2709
        %v2867 = vunpack.c.l.b16 %v2777
        %v2868 = vunpack.c.l.b16 %v2845
        %v2869 = vpack.c.b16 %v2867, %v2866
        %v2870 = vpack.c.b16 %v2868, %v2868
        %2871 = vrot.lane.b32.xlu0 %v2869, 16
        %v2872 = vpop.permute.xlu0 %2871
        %2873 = vrot.lane.b32.xlu0 %v2870, 16
        %v2874 = vpop.permute.xlu0 %2873
        %v2878 = vunpack.c.l.b16 %v2683
        %v2879 = vunpack.c.l.b16 %v2751
        %v2880 = vunpack.c.l.b16 %v2819
        %v2881 = vpack.c.b16 %v2879, %v2878
        %v2882 = vpack.c.b16 %v2880, %v2880
        %2883 = vrot.lane.b32.xlu0 %v2881, 32
        %v2884 = vpop.permute.xlu0 %2883
        %2885 = vrot.lane.b32.xlu0 %v2882, 32
        %v2886 = vpop.permute.xlu0 %2885
        %v2890 = vunpack.c.l.b16 %v2717
        %v2891 = vunpack.c.l.b16 %v2785
        %v2892 = vunpack.c.l.b16 %v2853
        %v2893 = vpack.c.b16 %v2891, %v2890
        %v2894 = vpack.c.b16 %v2892, %v2892
        %2895 = vrot.lane.b32.xlu0 %v2893, 48
        %v2896 = vpop.permute.xlu0 %2895
        %2897 = vrot.lane.b32.xlu0 %v2894, 48
        %v2898 = vpop.permute.xlu0 %2897
        %v2902 = vunpack.c.l.b16 %v2682
        %v2903 = vunpack.c.l.b16 %v2750
        %v2904 = vunpack.c.l.b16 %v2818
        %v2905 = vpack.c.b16 %v2903, %v2902
        %v2906 = vpack.c.b16 %v2904, %v2904
        %2907 = vrot.lane.b32.xlu0 %v2905, 64
        %v2908 = vpop.permute.xlu0 %2907
        %2909 = vrot.lane.b32.xlu0 %v2906, 64
        %v2910 = vpop.permute.xlu0 %2909
        %v2914 = vunpack.c.l.b16 %v2716
        %v2915 = vunpack.c.l.b16 %v2784
        %v2916 = vunpack.c.l.b16 %v2852
        %v2917 = vpack.c.b16 %v2915, %v2914
        %v2918 = vpack.c.b16 %v2916, %v2916
        %2919 = vrot.lane.b32.xlu0 %v2917, 80
        %v2920 = vpop.permute.xlu0 %2919
        %2921 = vrot.lane.b32.xlu0 %v2918, 80
        %v2922 = vpop.permute.xlu0 %2921
        %v2926 = vunpack.c.l.b16 %v2684
        %v2927 = vunpack.c.l.b16 %v2752
        %v2928 = vunpack.c.l.b16 %v2820
        %v2929 = vpack.c.b16 %v2927, %v2926
        %v2930 = vpack.c.b16 %v2928, %v2928
        %2931 = vrot.lane.b32.xlu0 %v2929, 96
        %v2932 = vpop.permute.xlu0 %2931
        %2933 = vrot.lane.b32.xlu0 %v2930, 96
        %v2934 = vpop.permute.xlu0 %2933
        %v2938 = vunpack.c.l.b16 %v2718
        %v2939 = vunpack.c.l.b16 %v2786
        %v2940 = vunpack.c.l.b16 %v2854
        %v2941 = vpack.c.b16 %v2939, %v2938
        %v2942 = vpack.c.b16 %v2940, %v2940
        %2943 = vrot.lane.b32.xlu0 %v2941, 112
        %v2944 = vpop.permute.xlu0 %2943
        %2945 = vrot.lane.b32.xlu0 %v2942, 112
        %v2946 = vpop.permute.xlu0 %2945
        %v2949 = vsel %vm614, %v2861, %v2872
        %v2952 = vsel %vm614, %v2862, %v2874
        %v2954 = vsel %vm621, %v2949, %v2884
        %v2956 = vsel %vm621, %v2952, %v2886
        %v2958 = vsel %vm626, %v2954, %v2896
        %v2960 = vsel %vm626, %v2956, %v2898
        %v2962 = vsel %vm631, %v2958, %v2908
        %v2964 = vsel %vm631, %v2960, %v2910
        %v2966 = vsel %vm636, %v2962, %v2920
        %v2968 = vsel %vm636, %v2964, %v2922
        %v2970 = vsel %vm641, %v2966, %v2932
        %v2972 = vsel %vm641, %v2968, %v2934
        %v2974 = vsel %vm646, %v2970, %v2944
        %v2976 = vsel %vm646, %v2972, %v2946
        %vm2977 = vsmask.f32 1280
        %vm2978 = vsmask.f32 5392
        %vm2979 = vmor %vm2977, %vm2978
        %v2980 = vrot.slane %v236, 6
        %v2981 = vrot.slane %v658, 7
        %v2982 = vor.u32 %v2980, %v2981
        %v2983 = vrot.slane %v2982, 4
        %v2984 = vrot.slane %v1864, 6
        %v2985 = vrot.slane %v664, 7
        %v2986 = vor.u32 %v2984, %v2985
        %v2987 = vsel %vm2979, %v2983, %v2986
        %v2988 = vrot.slane %v237, 6
        %v2989 = vrot.slane %v670, 7
        %v2990 = vor.u32 %v2988, %v2989
        %v2991 = vrot.slane %v2990, 4
        %v2992 = vrot.slane %v1874, 6
        %v2993 = vrot.slane %v676, 7
        %v2994 = vor.u32 %v2992, %v2993
        %v2995 = vsel %vm2979, %v2991, %v2994
        %v2996 = vrot.slane %v244, 6
        %v2997 = vrot.slane %v682, 7
        %v2998 = vor.u32 %v2996, %v2997
        %v2999 = vrot.slane %v2998, 4
        %v3000 = vrot.slane %v1884, 6
        %v3001 = vrot.slane %v688, 7
        %v3002 = vor.u32 %v3000, %v3001
        %v3003 = vsel %vm2979, %v2999, %v3002
        %v3004 = vrot.slane %v245, 6
        %v3005 = vrot.slane %v694, 7
        %v3006 = vor.u32 %v3004, %v3005
        %v3007 = vrot.slane %v3006, 4
        %v3008 = vrot.slane %v1894, 6
        %v3009 = vrot.slane %v700, 7
        %v3010 = vor.u32 %v3008, %v3009
        %v3011 = vsel %vm2979, %v3007, %v3010
        %v3012 = vrot.slane %v252, 6
        %v3013 = vrot.slane %v706, 7
        %v3014 = vor.u32 %v3012, %v3013
        %v3015 = vrot.slane %v3014, 4
        %v3016 = vrot.slane %v1904, 6
        %v3017 = vrot.slane %v712, 7
        %v3018 = vor.u32 %v3016, %v3017
        %v3019 = vsel %vm2979, %v3015, %v3018
        %v3020 = vrot.slane %v253, 6
        %v3021 = vrot.slane %v718, 7
        %v3022 = vor.u32 %v3020, %v3021
        %v3023 = vrot.slane %v3022, 4
        %v3024 = vrot.slane %v1914, 6
        %v3025 = vrot.slane %v724, 7
        %v3026 = vor.u32 %v3024, %v3025
        %v3027 = vsel %vm2979, %v3023, %v3026
        %v3028 = vrot.slane %v260, 6
        %v3029 = vrot.slane %v730, 7
        %v3030 = vor.u32 %v3028, %v3029
        %v3031 = vrot.slane %v3030, 4
        %v3032 = vrot.slane %v1924, 6
        %v3033 = vrot.slane %v736, 7
        %v3034 = vor.u32 %v3032, %v3033
        %v3035 = vsel %vm2979, %v3031, %v3034
        %v3036 = vrot.slane %v261, 6
        %v3037 = vrot.slane %v742, 7
        %v3038 = vor.u32 %v3036, %v3037
        %v3039 = vrot.slane %v3038, 4
        %v3040 = vrot.slane %v1934, 6
        %v3041 = vrot.slane %v748, 7
        %v3042 = vor.u32 %v3040, %v3041
        %v3043 = vsel %vm2979, %v3039, %v3042
        %v3044 = vrot.slane %v268, 6
        %v3045 = vrot.slane %v754, 7
        %v3046 = vor.u32 %v3044, %v3045
        %v3047 = vrot.slane %v3046, 4
        %v3048 = vrot.slane %v1944, 6
        %v3049 = vrot.slane %v760, 7
        %v3050 = vor.u32 %v3048, %v3049
        %v3051 = vsel %vm2979, %v3047, %v3050
        %v3052 = vrot.slane %v269, 6
        %v3053 = vrot.slane %v766, 7
        %v3054 = vor.u32 %v3052, %v3053
        %v3055 = vrot.slane %v3054, 4
        %v3056 = vrot.slane %v1954, 6
        %v3057 = vrot.slane %v772, 7
        %v3058 = vor.u32 %v3056, %v3057
        %v3059 = vsel %vm2979, %v3055, %v3058
        %v3060 = vrot.slane %v276, 6
        %v3061 = vrot.slane %v778, 7
        %v3062 = vor.u32 %v3060, %v3061
        %v3063 = vrot.slane %v3062, 4
        %v3064 = vrot.slane %v1964, 6
        %v3065 = vrot.slane %v784, 7
        %v3066 = vor.u32 %v3064, %v3065
        %v3067 = vsel %vm2979, %v3063, %v3066
        %v3068 = vrot.slane %v277, 6
        %v3069 = vrot.slane %v790, 7
        %v3070 = vor.u32 %v3068, %v3069
        %v3071 = vrot.slane %v3070, 4
        %v3072 = vrot.slane %v1974, 6
        %v3073 = vrot.slane %v796, 7
        %v3074 = vor.u32 %v3072, %v3073
        %v3075 = vsel %vm2979, %v3071, %v3074
        %v3076 = vrot.slane %v284, 6
        %v3077 = vrot.slane %v802, 7
        %v3078 = vor.u32 %v3076, %v3077
        %v3079 = vrot.slane %v3078, 4
        %v3080 = vrot.slane %v1984, 6
        %v3081 = vrot.slane %v808, 7
        %v3082 = vor.u32 %v3080, %v3081
        %v3083 = vsel %vm2979, %v3079, %v3082
        %v3084 = vrot.slane %v285, 6
        %v3085 = vrot.slane %v814, 7
        %v3086 = vor.u32 %v3084, %v3085
        %v3087 = vrot.slane %v3086, 4
        %v3088 = vrot.slane %v1994, 6
        %v3089 = vrot.slane %v820, 7
        %v3090 = vor.u32 %v3088, %v3089
        %v3091 = vsel %vm2979, %v3087, %v3090
        %v3092 = vrot.slane %v292, 6
        %v3093 = vrot.slane %v826, 7
        %v3094 = vor.u32 %v3092, %v3093
        %v3095 = vrot.slane %v3094, 4
        %v3096 = vrot.slane %v2004, 6
        %v3097 = vrot.slane %v832, 7
        %v3098 = vor.u32 %v3096, %v3097
        %v3099 = vsel %vm2979, %v3095, %v3098
        %v3100 = vrot.slane %v293, 6
        %v3101 = vrot.slane %v838, 7
        %v3102 = vor.u32 %v3100, %v3101
        %v3103 = vrot.slane %v3102, 4
        %v3104 = vrot.slane %v2014, 6
        %v3105 = vrot.slane %v844, 7
        %v3106 = vor.u32 %v3104, %v3105
        %v3107 = vsel %vm2979, %v3103, %v3106
        %v3108 = vrot.slane %v300, 6
        %v3109 = vrot.slane %v850, 7
        %v3110 = vor.u32 %v3108, %v3109
        %v3111 = vrot.slane %v3110, 4
        %v3112 = vrot.slane %v2024, 6
        %v3113 = vrot.slane %v856, 7
        %v3114 = vor.u32 %v3112, %v3113
        %v3115 = vsel %vm2979, %v3111, %v3114
        %v3116 = vrot.slane %v301, 6
        %v3117 = vrot.slane %v862, 7
        %v3118 = vor.u32 %v3116, %v3117
        %v3119 = vrot.slane %v3118, 4
        %v3120 = vrot.slane %v2034, 6
        %v3121 = vrot.slane %v868, 7
        %v3122 = vor.u32 %v3120, %v3121
        %v3123 = vsel %vm2979, %v3119, %v3122
        %v3124 = vrot.slane %v307, 6
        %v3125 = vrot.slane %v874, 7
        %v3126 = vor.u32 %v3124, %v3125
        %v3127 = vrot.slane %v3126, 4
        %v3128 = vrot.slane %v2044, 6
        %v3129 = vrot.slane %v880, 7
        %v3130 = vor.u32 %v3128, %v3129
        %v3131 = vsel %vm2979, %v3127, %v3130
        %v3132 = vrot.slane %v308, 6
        %v3133 = vrot.slane %v886, 7
        %v3134 = vor.u32 %v3132, %v3133
        %v3135 = vrot.slane %v3134, 4
        %v3136 = vrot.slane %v2054, 6
        %v3137 = vrot.slane %v892, 7
        %v3138 = vor.u32 %v3136, %v3137
        %v3139 = vsel %vm2979, %v3135, %v3138
        %v3140 = vrot.slane %v314, 6
        %v3141 = vrot.slane %v898, 7
        %v3142 = vor.u32 %v3140, %v3141
        %v3143 = vrot.slane %v3142, 4
        %v3144 = vrot.slane %v2064, 6
        %v3145 = vrot.slane %v904, 7
        %v3146 = vor.u32 %v3144, %v3145
        %v3147 = vsel %vm2979, %v3143, %v3146
        %v3150 = vpack.i.b16 %v2995, %v2987
        %v3152 = vshrl.u32 %v2987, 16
        %v3153 = vshrl.u32 %v2995, 16
        %v3154 = vpack.i.b16 %v3153, %v3152
        %v3158 = vpack.i.b16 %v3011, %v3003
        %v3160 = vshrl.u32 %v3003, 16
        %v3161 = vshrl.u32 %v3011, 16
        %v3162 = vpack.i.b16 %v3161, %v3160
        %v3166 = vpack.i.b16 %v3027, %v3019
        %v3168 = vshrl.u32 %v3019, 16
        %v3169 = vshrl.u32 %v3027, 16
        %v3170 = vpack.i.b16 %v3169, %v3168
        %v3174 = vpack.i.b16 %v3043, %v3035
        %v3176 = vshrl.u32 %v3035, 16
        %v3177 = vshrl.u32 %v3043, 16
        %v3178 = vpack.i.b16 %v3177, %v3176
        %v3182 = vpack.i.b16 %v3059, %v3051
        %v3184 = vshrl.u32 %v3051, 16
        %v3185 = vshrl.u32 %v3059, 16
        %v3186 = vpack.i.b16 %v3185, %v3184
        %v3190 = vpack.i.b16 %v3075, %v3067
        %v3192 = vshrl.u32 %v3067, 16
        %v3193 = vshrl.u32 %v3075, 16
        %v3194 = vpack.i.b16 %v3193, %v3192
        %v3198 = vpack.i.b16 %v3091, %v3083
        %v3200 = vshrl.u32 %v3083, 16
        %v3201 = vshrl.u32 %v3091, 16
        %v3202 = vpack.i.b16 %v3201, %v3200
        %v3206 = vpack.i.b16 %v3107, %v3099
        %v3208 = vshrl.u32 %v3099, 16
        %v3209 = vshrl.u32 %v3107, 16
        %v3210 = vpack.i.b16 %v3209, %v3208
        %v3214 = vpack.i.b16 %v3123, %v3115
        %v3216 = vshrl.u32 %v3115, 16
        %v3217 = vshrl.u32 %v3123, 16
        %v3218 = vpack.i.b16 %v3217, %v3216
        %v3222 = vpack.i.b16 %v3139, %v3131
        %v3223 = vshrl.u32 %v3131, 16
        %v3224 = vshrl.u32 %v3139, 16
        %v3225 = vpack.i.b16 %v3224, %v3223
        %v3227 = vpack.i.b16 0, %v3147
        %v3229 = vshrl.u32 %v3147, 16
        %v3230 = vpack.i.b16 %v315, %v3229
        %v3232 = vcombine.low %v3150, %v3166
        %v3234 = vunpack.c.l.s4 1983009808
        %v3235 = vunpack.c.0.s8 %v3234
        %v3236 = vlaneseq
        %v3237 = vshrl.u32 %v3236, 7
        %v3238 = vsub.s32 %v3235, %v3237
        %v3239 = vrot.slane %v3232, %v3238
        %v3240 = vcombine.low %v3158, %v3174
        %v3242 = vunpack.c.l.s4 1983009808
        %v3243 = vunpack.c.0.s8 %v3242
        %v3244 = vlaneseq
        %v3245 = vshrl.u32 %v3244, 7
        %v3246 = vsub.s32 %v3243, %v3245
        %v3247 = vrot.slane %v3240, %v3246
        %v3248 = vcombine.low %v3239, %v3247
        %v3249 = vcombine.high %v3239, %v3247
        %v3251 = vunpack.c.l.s4 1934713408
        %v3252 = vunpack.c.0.s8 %v3251
        %v3253 = vlaneseq
        %v3254 = vshrl.u32 %v3253, 7
        %v3255 = vsub.s32 %v3252, %v3254
        %v3256 = vrot.slane %v3248, %v3255
        %v3258 = vunpack.c.l.s4 1934713408
        %v3259 = vunpack.c.0.s8 %v3258
        %v3260 = vlaneseq
        %v3261 = vshrl.u32 %v3260, 7
        %v3262 = vsub.s32 %v3259, %v3261
        %v3263 = vrot.slane %v3249, %v3262
        %v3264 = vcombine.high %v3256, 0
        %v3265 = vcombine.high %v3263, 0
        %v3266 = vcombine.low %v3154, %v3170
        %v3268 = vunpack.c.l.s4 1983009808
        %v3269 = vunpack.c.0.s8 %v3268
        %v3270 = vlaneseq
        %v3271 = vshrl.u32 %v3270, 7
        %v3272 = vsub.s32 %v3269, %v3271
        %v3273 = vrot.slane %v3266, %v3272
        %v3274 = vcombine.low %v3162, %v3178
        %v3276 = vunpack.c.l.s4 1983009808
        %v3277 = vunpack.c.0.s8 %v3276
        %v3278 = vlaneseq
        %v3279 = vshrl.u32 %v3278, 7
        %v3280 = vsub.s32 %v3277, %v3279
        %v3281 = vrot.slane %v3274, %v3280
        %v3282 = vcombine.low %v3273, %v3281
        %v3283 = vcombine.high %v3273, %v3281
        %v3285 = vunpack.c.l.s4 1934713408
        %v3286 = vunpack.c.0.s8 %v3285
        %v3287 = vlaneseq
        %v3288 = vshrl.u32 %v3287, 7
        %v3289 = vsub.s32 %v3286, %v3288
        %v3290 = vrot.slane %v3282, %v3289
        %v3292 = vunpack.c.l.s4 1934713408
        %v3293 = vunpack.c.0.s8 %v3292
        %v3294 = vlaneseq
        %v3295 = vshrl.u32 %v3294, 7
        %v3296 = vsub.s32 %v3293, %v3295
        %v3297 = vrot.slane %v3283, %v3296
        %v3298 = vcombine.high %v3290, 0
        %v3299 = vcombine.high %v3297, 0
        %v3300 = vcombine.low %v3182, %v3198
        %v3302 = vunpack.c.l.s4 1983009808
        %v3303 = vunpack.c.0.s8 %v3302
        %v3304 = vlaneseq
        %v3305 = vshrl.u32 %v3304, 7
        %v3306 = vsub.s32 %v3303, %v3305
        %v3307 = vrot.slane %v3300, %v3306
        %v3308 = vcombine.low %v3190, %v3206
        %v3310 = vunpack.c.l.s4 1983009808
        %v3311 = vunpack.c.0.s8 %v3310
        %v3312 = vlaneseq
        %v3313 = vshrl.u32 %v3312, 7
        %v3314 = vsub.s32 %v3311, %v3313
        %v3315 = vrot.slane %v3308, %v3314
        %v3316 = vcombine.low %v3307, %v3315
        %v3317 = vcombine.high %v3307, %v3315
        %v3319 = vunpack.c.l.s4 1934713408
        %v3320 = vunpack.c.0.s8 %v3319
        %v3321 = vlaneseq
        %v3322 = vshrl.u32 %v3321, 7
        %v3323 = vsub.s32 %v3320, %v3322
        %v3324 = vrot.slane %v3316, %v3323
        %v3326 = vunpack.c.l.s4 1934713408
        %v3327 = vunpack.c.0.s8 %v3326
        %v3328 = vlaneseq
        %v3329 = vshrl.u32 %v3328, 7
        %v3330 = vsub.s32 %v3327, %v3329
        %v3331 = vrot.slane %v3317, %v3330
        %v3332 = vcombine.high %v3324, 0
        %v3333 = vcombine.high %v3331, 0
        %v3334 = vcombine.low %v3186, %v3202
        %v3336 = vunpack.c.l.s4 1983009808
        %v3337 = vunpack.c.0.s8 %v3336
        %v3338 = vlaneseq
        %v3339 = vshrl.u32 %v3338, 7
        %v3340 = vsub.s32 %v3337, %v3339
        %v3341 = vrot.slane %v3334, %v3340
        %v3342 = vcombine.low %v3194, %v3210
        %v3344 = vunpack.c.l.s4 1983009808
        %v3345 = vunpack.c.0.s8 %v3344
        %v3346 = vlaneseq
        %v3347 = vshrl.u32 %v3346, 7
        %v3348 = vsub.s32 %v3345, %v3347
        %v3349 = vrot.slane %v3342, %v3348
        %v3350 = vcombine.low %v3341, %v3349
        %v3351 = vcombine.high %v3341, %v3349
        %v3353 = vunpack.c.l.s4 1934713408
        %v3354 = vunpack.c.0.s8 %v3353
        %v3355 = vlaneseq
        %v3356 = vshrl.u32 %v3355, 7
        %v3357 = vsub.s32 %v3354, %v3356
        %v3358 = vrot.slane %v3350, %v3357
        %v3360 = vunpack.c.l.s4 1934713408
        %v3361 = vunpack.c.0.s8 %v3360
        %v3362 = vlaneseq
        %v3363 = vshrl.u32 %v3362, 7
        %v3364 = vsub.s32 %v3361, %v3363
        %v3365 = vrot.slane %v3351, %v3364
        %v3366 = vcombine.high %v3358, 0
        %v3367 = vcombine.high %v3365, 0
        %v3368 = vcombine.low %v3214, %v3227
        %v3370 = vunpack.c.l.s4 1983009808
        %v3371 = vunpack.c.0.s8 %v3370
        %v3372 = vlaneseq
        %v3373 = vshrl.u32 %v3372, 7
        %v3374 = vsub.s32 %v3371, %v3373
        %v3375 = vrot.slane %v3368, %v3374
        %v3378 = vunpack.c.l.s4 1983009808
        %v3379 = vunpack.c.0.s8 %v3378
        %v3380 = vlaneseq
        %v3381 = vshrl.u32 %v3380, 7
        %v3382 = vsub.s32 %v3379, %v3381
        %v3383 = vrot.slane %v3222, %v3382
        %v3384 = vcombine.low %v3375, %v3383
        %v3385 = vcombine.high %v3375, %v3383
        %v3387 = vunpack.c.l.s4 1934713408
        %v3388 = vunpack.c.0.s8 %v3387
        %v3389 = vlaneseq
        %v3390 = vshrl.u32 %v3389, 7
        %v3391 = vsub.s32 %v3388, %v3390
        %v3392 = vrot.slane %v3384, %v3391
        %v3394 = vunpack.c.l.s4 1934713408
        %v3395 = vunpack.c.0.s8 %v3394
        %v3396 = vlaneseq
        %v3397 = vshrl.u32 %v3396, 7
        %v3398 = vsub.s32 %v3395, %v3397
        %v3399 = vrot.slane %v3385, %v3398
        %v3400 = vcombine.high %v3392, 0
        %v3401 = vcombine.high %v3399, 0
        %v3402 = vcombine.low %v3218, %v3230
        %v3404 = vunpack.c.l.s4 1983009808
        %v3405 = vunpack.c.0.s8 %v3404
        %v3406 = vlaneseq
        %v3407 = vshrl.u32 %v3406, 7
        %v3408 = vsub.s32 %v3405, %v3407
        %v3409 = vrot.slane %v3402, %v3408
        %v3412 = vunpack.c.l.s4 1983009808
        %v3413 = vunpack.c.0.s8 %v3412
        %v3414 = vlaneseq
        %v3415 = vshrl.u32 %v3414, 7
        %v3416 = vsub.s32 %v3413, %v3415
        %v3417 = vrot.slane %v3225, %v3416
        %v3418 = vcombine.low %v3409, %v3417
        %v3419 = vcombine.high %v3409, %v3417
        %v3421 = vunpack.c.l.s4 1934713408
        %v3422 = vunpack.c.0.s8 %v3421
        %v3423 = vlaneseq
        %v3424 = vshrl.u32 %v3423, 7
        %v3425 = vsub.s32 %v3422, %v3424
        %v3426 = vrot.slane %v3418, %v3425
        %v3428 = vunpack.c.l.s4 1934713408
        %v3429 = vunpack.c.0.s8 %v3428
        %v3430 = vlaneseq
        %v3431 = vshrl.u32 %v3430, 7
        %v3432 = vsub.s32 %v3429, %v3431
        %v3433 = vrot.slane %v3419, %v3432
        %v3434 = vcombine.high %v3426, 0
        %v3435 = vcombine.high %v3433, 0
        %v3439 = vunpack.c.l.b16 %v3256
        %v3440 = vunpack.c.l.b16 %v3324
        %v3441 = vunpack.c.l.b16 %v3392
        %v3442 = vpack.c.b16 %v3440, %v3439
        %v3443 = vpack.c.b16 %v3441, %v3441
        %v3447 = vunpack.c.l.b16 %v3290
        %v3448 = vunpack.c.l.b16 %v3358
        %v3449 = vunpack.c.l.b16 %v3426
        %v3450 = vpack.c.b16 %v3448, %v3447
        %v3451 = vpack.c.b16 %v3449, %v3449
        %3452 = vrot.lane.b32.xlu0 %v3450, 16
        %v3453 = vpop.permute.xlu0 %3452
        %3454 = vrot.lane.b32.xlu0 %v3451, 16
        %v3455 = vpop.permute.xlu0 %3454
        %v3459 = vunpack.c.l.b16 %v3264
        %v3460 = vunpack.c.l.b16 %v3332
        %v3461 = vunpack.c.l.b16 %v3400
        %v3462 = vpack.c.b16 %v3460, %v3459
        %v3463 = vpack.c.b16 %v3461, %v3461
        %3464 = vrot.lane.b32.xlu0 %v3462, 32
        %v3465 = vpop.permute.xlu0 %3464
        %3466 = vrot.lane.b32.xlu0 %v3463, 32
        %v3467 = vpop.permute.xlu0 %3466
        %v3471 = vunpack.c.l.b16 %v3298
        %v3472 = vunpack.c.l.b16 %v3366
        %v3473 = vunpack.c.l.b16 %v3434
        %v3474 = vpack.c.b16 %v3472, %v3471
        %v3475 = vpack.c.b16 %v3473, %v3473
        %3476 = vrot.lane.b32.xlu0 %v3474, 48
        %v3477 = vpop.permute.xlu0 %3476
        %3478 = vrot.lane.b32.xlu0 %v3475, 48
        %v3479 = vpop.permute.xlu0 %3478
        %v3483 = vunpack.c.l.b16 %v3263
        %v3484 = vunpack.c.l.b16 %v3331
        %v3485 = vunpack.c.l.b16 %v3399
        %v3486 = vpack.c.b16 %v3484, %v3483
        %v3487 = vpack.c.b16 %v3485, %v3485
        %3488 = vrot.lane.b32.xlu0 %v3486, 64
        %v3489 = vpop.permute.xlu0 %3488
        %3490 = vrot.lane.b32.xlu0 %v3487, 64
        %v3491 = vpop.permute.xlu0 %3490
        %v3495 = vunpack.c.l.b16 %v3297
        %v3496 = vunpack.c.l.b16 %v3365
        %v3497 = vunpack.c.l.b16 %v3433
        %v3498 = vpack.c.b16 %v3496, %v3495
        %v3499 = vpack.c.b16 %v3497, %v3497
        %3500 = vrot.lane.b32.xlu0 %v3498, 80
        %v3501 = vpop.permute.xlu0 %3500
        %3502 = vrot.lane.b32.xlu0 %v3499, 80
        %v3503 = vpop.permute.xlu0 %3502
        %v3507 = vunpack.c.l.b16 %v3265
        %v3508 = vunpack.c.l.b16 %v3333
        %v3509 = vunpack.c.l.b16 %v3401
        %v3510 = vpack.c.b16 %v3508, %v3507
        %v3511 = vpack.c.b16 %v3509, %v3509
        %3512 = vrot.lane.b32.xlu0 %v3510, 96
        %v3513 = vpop.permute.xlu0 %3512
        %3514 = vrot.lane.b32.xlu0 %v3511, 96
        %v3515 = vpop.permute.xlu0 %3514
        %v3519 = vunpack.c.l.b16 %v3299
        %v3520 = vunpack.c.l.b16 %v3367
        %v3521 = vunpack.c.l.b16 %v3435
        %v3522 = vpack.c.b16 %v3520, %v3519
        %v3523 = vpack.c.b16 %v3521, %v3521
        %3524 = vrot.lane.b32.xlu0 %v3522, 112
        %v3525 = vpop.permute.xlu0 %3524
        %3526 = vrot.lane.b32.xlu0 %v3523, 112
        %v3527 = vpop.permute.xlu0 %3526
        %v3530 = vsel %vm614, %v3442, %v3453
        %v3533 = vsel %vm614, %v3443, %v3455
        %v3535 = vsel %vm621, %v3530, %v3465
        %v3537 = vsel %vm621, %v3533, %v3467
        %v3539 = vsel %vm626, %v3535, %v3477
        %v3541 = vsel %vm626, %v3537, %v3479
        %v3543 = vsel %vm631, %v3539, %v3489
        %v3545 = vsel %vm631, %v3541, %v3491
        %v3547 = vsel %vm636, %v3543, %v3501
        %v3549 = vsel %vm636, %v3545, %v3503
        %v3551 = vsel %vm641, %v3547, %v3513
        %v3553 = vsel %vm641, %v3549, %v3515
        %v3555 = vsel %vm646, %v3551, %v3525
        %v3557 = vsel %vm646, %v3553, %v3527
        %vm3558 = vcmask 1040384
        %vm3559 = vcmask 1044484
        %vm3560 = vmor %vm3558, %vm3559
        %v3561 = vrot.slane %v190, 7
        %v3562 = vrot.slane %v3561, 4
        %v3563 = vrot.slane %v191, 7
        %v3564 = vsel %vm3560, %v3562, %v3563
        %v3565 = vrot.slane %v192, 7
        %v3566 = vrot.slane %v3565, 4
        %v3567 = vrot.slane %v193, 7
        %v3568 = vsel %vm3560, %v3566, %v3567
        %v3569 = vrot.slane %v194, 7
        %v3570 = vrot.slane %v3569, 4
        %v3571 = vrot.slane %v195, 7
        %v3572 = vsel %vm3560, %v3570, %v3571
        %v3573 = vrot.slane %v196, 7
        %v3574 = vrot.slane %v3573, 4
        %v3575 = vrot.slane %v197, 7
        %v3576 = vsel %vm3560, %v3574, %v3575
        %v3577 = vrot.slane %v198, 7
        %v3578 = vrot.slane %v3577, 4
        %v3579 = vrot.slane %v199, 7
        %v3580 = vsel %vm3560, %v3578, %v3579
        %v3581 = vrot.slane %v200, 7
        %v3582 = vrot.slane %v3581, 4
        %v3583 = vrot.slane %v201, 7
        %v3584 = vsel %vm3560, %v3582, %v3583
        %v3585 = vrot.slane %v202, 7
        %v3586 = vrot.slane %v3585, 4
        %v3587 = vrot.slane %v203, 7
        %v3588 = vsel %vm3560, %v3586, %v3587
        %v3589 = vrot.slane %v204, 7
        %v3590 = vrot.slane %v3589, 4
        %v3591 = vrot.slane %v205, 7
        %v3592 = vsel %vm3560, %v3590, %v3591
        %v3593 = vrot.slane %v206, 7
        %v3594 = vrot.slane %v3593, 4
        %v3595 = vrot.slane %v207, 7
        %v3596 = vsel %vm3560, %v3594, %v3595
        %v3597 = vrot.slane %v208, 7
        %v3598 = vrot.slane %v3597, 4
        %v3599 = vrot.slane %v209, 7
        %v3600 = vsel %vm3560, %v3598, %v3599
        %v3601 = vrot.slane %v210, 7
        %v3602 = vrot.slane %v3601, 4
        %v3603 = vrot.slane %v211, 7
        %v3604 = vsel %vm3560, %v3602, %v3603
        %v3605 = vrot.slane %v212, 7
        %v3606 = vrot.slane %v3605, 4
        %v3607 = vrot.slane %v213, 7
        %v3608 = vsel %vm3560, %v3606, %v3607
        %v3609 = vrot.slane %v214, 7
        %v3610 = vrot.slane %v3609, 4
        %v3611 = vrot.slane %v215, 7
        %v3612 = vsel %vm3560, %v3610, %v3611
        %v3613 = vrot.slane %v216, 7
        %v3614 = vrot.slane %v3613, 4
        %v3615 = vrot.slane %v217, 7
        %v3616 = vsel %vm3560, %v3614, %v3615
        %v3617 = vrot.slane %v218, 7
        %v3618 = vrot.slane %v3617, 4
        %v3619 = vrot.slane %v219, 7
        %v3620 = vsel %vm3560, %v3618, %v3619
        %v3621 = vrot.slane %v220, 7
        %v3622 = vrot.slane %v3621, 4
        %v3623 = vrot.slane %v221, 7
        %v3624 = vsel %vm3560, %v3622, %v3623
        %v3625 = vrot.slane %v222, 7
        %v3626 = vrot.slane %v3625, 4
        %v3627 = vrot.slane %v223, 7
        %v3628 = vsel %vm3560, %v3626, %v3627
        %v3629 = vrot.slane %v224, 7
        %v3630 = vrot.slane %v3629, 4
        %v3631 = vrot.slane %v225, 7
        %v3632 = vsel %vm3560, %v3630, %v3631
        %v3633 = vrot.slane %v226, 7
        %v3634 = vrot.slane %v3633, 4
        %v3635 = vrot.slane %v227, 7
        %v3636 = vsel %vm3560, %v3634, %v3635
        %v3637 = vrot.slane %v228, 7
        %v3638 = vrot.slane %v3637, 4
        %v3639 = vrot.slane %v229, 7
        %v3640 = vsel %vm3560, %v3638, %v3639
        %v3641 = vrot.slane %v230, 7
        %v3642 = vrot.slane %v3641, 4
        %v3643 = vrot.slane %v231, 7
        %v3644 = vsel %vm3560, %v3642, %v3643
        %v3647 = vpack.i.b16 %v3568, %v3564
        %v3649 = vshrl.u32 %v3564, 16
        %v3650 = vshrl.u32 %v3568, 16
        %v3651 = vpack.i.b16 %v3650, %v3649
        %v3655 = vpack.i.b16 %v3576, %v3572
        %v3657 = vshrl.u32 %v3572, 16
        %v3658 = vshrl.u32 %v3576, 16
        %v3659 = vpack.i.b16 %v3658, %v3657
        %v3663 = vpack.i.b16 %v3584, %v3580
        %v3665 = vshrl.u32 %v3580, 16
        %v3666 = vshrl.u32 %v3584, 16
        %v3667 = vpack.i.b16 %v3666, %v3665
        %v3671 = vpack.i.b16 %v3592, %v3588
        %v3673 = vshrl.u32 %v3588, 16
        %v3674 = vshrl.u32 %v3592, 16
        %v3675 = vpack.i.b16 %v3674, %v3673
        %v3679 = vpack.i.b16 %v3600, %v3596
        %v3681 = vshrl.u32 %v3596, 16
        %v3682 = vshrl.u32 %v3600, 16
        %v3683 = vpack.i.b16 %v3682, %v3681
        %v3687 = vpack.i.b16 %v3608, %v3604
        %v3689 = vshrl.u32 %v3604, 16
        %v3690 = vshrl.u32 %v3608, 16
        %v3691 = vpack.i.b16 %v3690, %v3689
        %v3695 = vpack.i.b16 %v3616, %v3612
        %v3697 = vshrl.u32 %v3612, 16
        %v3698 = vshrl.u32 %v3616, 16
        %v3699 = vpack.i.b16 %v3698, %v3697
        %v3703 = vpack.i.b16 %v3624, %v3620
        %v3705 = vshrl.u32 %v3620, 16
        %v3706 = vshrl.u32 %v3624, 16
        %v3707 = vpack.i.b16 %v3706, %v3705
        %v3711 = vpack.i.b16 %v3632, %v3628
        %v3713 = vshrl.u32 %v3628, 16
        %v3714 = vshrl.u32 %v3632, 16
        %v3715 = vpack.i.b16 %v3714, %v3713
        %v3719 = vpack.i.b16 %v3640, %v3636
        %v3720 = vshrl.u32 %v3636, 16
        %v3721 = vshrl.u32 %v3640, 16
        %v3722 = vpack.i.b16 %v3721, %v3720
        %v3724 = vpack.i.b16 0, %v3644
        %v3726 = vshrl.u32 %v3644, 16
        %v3727 = vpack.i.b16 %v315, %v3726
        %v3729 = vcombine.low %v3647, %v3663
        %v3731 = vunpack.c.l.s4 1983009808
        %v3732 = vunpack.c.0.s8 %v3731
        %v3733 = vlaneseq
        %v3734 = vshrl.u32 %v3733, 7
        %v3735 = vsub.s32 %v3732, %v3734
        %v3736 = vrot.slane %v3729, %v3735
        %v3737 = vcombine.low %v3655, %v3671
        %v3739 = vunpack.c.l.s4 1983009808
        %v3740 = vunpack.c.0.s8 %v3739
        %v3741 = vlaneseq
        %v3742 = vshrl.u32 %v3741, 7
        %v3743 = vsub.s32 %v3740, %v3742
        %v3744 = vrot.slane %v3737, %v3743
        %v3745 = vcombine.low %v3736, %v3744
        %v3746 = vcombine.high %v3736, %v3744
        %v3748 = vunpack.c.l.s4 1934713408
        %v3749 = vunpack.c.0.s8 %v3748
        %v3750 = vlaneseq
        %v3751 = vshrl.u32 %v3750, 7
        %v3752 = vsub.s32 %v3749, %v3751
        %v3753 = vrot.slane %v3745, %v3752
        %v3755 = vunpack.c.l.s4 1934713408
        %v3756 = vunpack.c.0.s8 %v3755
        %v3757 = vlaneseq
        %v3758 = vshrl.u32 %v3757, 7
        %v3759 = vsub.s32 %v3756, %v3758
        %v3760 = vrot.slane %v3746, %v3759
        %v3761 = vcombine.high %v3753, 0
        %v3762 = vcombine.high %v3760, 0
        %v3763 = vcombine.low %v3651, %v3667
        %v3765 = vunpack.c.l.s4 1983009808
        %v3766 = vunpack.c.0.s8 %v3765
        %v3767 = vlaneseq
        %v3768 = vshrl.u32 %v3767, 7
        %v3769 = vsub.s32 %v3766, %v3768
        %v3770 = vrot.slane %v3763, %v3769
        %v3771 = vcombine.low %v3659, %v3675
        %v3773 = vunpack.c.l.s4 1983009808
        %v3774 = vunpack.c.0.s8 %v3773
        %v3775 = vlaneseq
        %v3776 = vshrl.u32 %v3775, 7
        %v3777 = vsub.s32 %v3774, %v3776
        %v3778 = vrot.slane %v3771, %v3777
        %v3779 = vcombine.low %v3770, %v3778
        %v3780 = vcombine.high %v3770, %v3778
        %v3782 = vunpack.c.l.s4 1934713408
        %v3783 = vunpack.c.0.s8 %v3782
        %v3784 = vlaneseq
        %v3785 = vshrl.u32 %v3784, 7
        %v3786 = vsub.s32 %v3783, %v3785
        %v3787 = vrot.slane %v3779, %v3786
        %v3789 = vunpack.c.l.s4 1934713408
        %v3790 = vunpack.c.0.s8 %v3789
        %v3791 = vlaneseq
        %v3792 = vshrl.u32 %v3791, 7
        %v3793 = vsub.s32 %v3790, %v3792
        %v3794 = vrot.slane %v3780, %v3793
        %v3795 = vcombine.high %v3787, 0
        %v3796 = vcombine.high %v3794, 0
        %v3797 = vcombine.low %v3679, %v3695
        %v3799 = vunpack.c.l.s4 1983009808
        %v3800 = vunpack.c.0.s8 %v3799
        %v3801 = vlaneseq
        %v3802 = vshrl.u32 %v3801, 7
        %v3803 = vsub.s32 %v3800, %v3802
        %v3804 = vrot.slane %v3797, %v3803
        %v3805 = vcombine.low %v3687, %v3703
        %v3807 = vunpack.c.l.s4 1983009808
        %v3808 = vunpack.c.0.s8 %v3807
        %v3809 = vlaneseq
        %v3810 = vshrl.u32 %v3809, 7
        %v3811 = vsub.s32 %v3808, %v3810
        %v3812 = vrot.slane %v3805, %v3811
        %v3813 = vcombine.low %v3804, %v3812
        %v3814 = vcombine.high %v3804, %v3812
        %v3816 = vunpack.c.l.s4 1934713408
        %v3817 = vunpack.c.0.s8 %v3816
        %v3818 = vlaneseq
        %v3819 = vshrl.u32 %v3818, 7
        %v3820 = vsub.s32 %v3817, %v3819
        %v3821 = vrot.slane %v3813, %v3820
        %v3823 = vunpack.c.l.s4 1934713408
        %v3824 = vunpack.c.0.s8 %v3823
        %v3825 = vlaneseq
        %v3826 = vshrl.u32 %v3825, 7
        %v3827 = vsub.s32 %v3824, %v3826
        %v3828 = vrot.slane %v3814, %v3827
        %v3829 = vcombine.high %v3821, 0
        %v3830 = vcombine.high %v3828, 0
        %v3831 = vcombine.low %v3683, %v3699
        %v3833 = vunpack.c.l.s4 1983009808
        %v3834 = vunpack.c.0.s8 %v3833
        %v3835 = vlaneseq
        %v3836 = vshrl.u32 %v3835, 7
        %v3837 = vsub.s32 %v3834, %v3836
        %v3838 = vrot.slane %v3831, %v3837
        %v3839 = vcombine.low %v3691, %v3707
        %v3841 = vunpack.c.l.s4 1983009808
        %v3842 = vunpack.c.0.s8 %v3841
        %v3843 = vlaneseq
        %v3844 = vshrl.u32 %v3843, 7
        %v3845 = vsub.s32 %v3842, %v3844
        %v3846 = vrot.slane %v3839, %v3845
        %v3847 = vcombine.low %v3838, %v3846
        %v3848 = vcombine.high %v3838, %v3846
        %v3850 = vunpack.c.l.s4 1934713408
        %v3851 = vunpack.c.0.s8 %v3850
        %v3852 = vlaneseq
        %v3853 = vshrl.u32 %v3852, 7
        %v3854 = vsub.s32 %v3851, %v3853
        %v3855 = vrot.slane %v3847, %v3854
        %v3857 = vunpack.c.l.s4 1934713408
        %v3858 = vunpack.c.0.s8 %v3857
        %v3859 = vlaneseq
        %v3860 = vshrl.u32 %v3859, 7
        %v3861 = vsub.s32 %v3858, %v3860
        %v3862 = vrot.slane %v3848, %v3861
        %v3863 = vcombine.high %v3855, 0
        %v3864 = vcombine.high %v3862, 0
        %v3865 = vcombine.low %v3711, %v3724
        %v3867 = vunpack.c.l.s4 1983009808
        %v3868 = vunpack.c.0.s8 %v3867
        %v3869 = vlaneseq
        %v3870 = vshrl.u32 %v3869, 7
        %v3871 = vsub.s32 %v3868, %v3870
        %v3872 = vrot.slane %v3865, %v3871
        %v3875 = vunpack.c.l.s4 1983009808
        %v3876 = vunpack.c.0.s8 %v3875
        %v3877 = vlaneseq
        %v3878 = vshrl.u32 %v3877, 7
        %v3879 = vsub.s32 %v3876, %v3878
        %v3880 = vrot.slane %v3719, %v3879
        %v3881 = vcombine.low %v3872, %v3880
        %v3882 = vcombine.high %v3872, %v3880
        %v3884 = vunpack.c.l.s4 1934713408
        %v3885 = vunpack.c.0.s8 %v3884
        %v3886 = vlaneseq
        %v3887 = vshrl.u32 %v3886, 7
        %v3888 = vsub.s32 %v3885, %v3887
        %v3889 = vrot.slane %v3881, %v3888
        %v3891 = vunpack.c.l.s4 1934713408
        %v3892 = vunpack.c.0.s8 %v3891
        %v3893 = vlaneseq
        %v3894 = vshrl.u32 %v3893, 7
        %v3895 = vsub.s32 %v3892, %v3894
        %v3896 = vrot.slane %v3882, %v3895
        %v3897 = vcombine.high %v3889, 0
        %v3898 = vcombine.high %v3896, 0
        %v3899 = vcombine.low %v3715, %v3727
        %v3901 = vunpack.c.l.s4 1983009808
        %v3902 = vunpack.c.0.s8 %v3901
        %v3903 = vlaneseq
        %v3904 = vshrl.u32 %v3903, 7
        %v3905 = vsub.s32 %v3902, %v3904
        %v3906 = vrot.slane %v3899, %v3905
        %v3909 = vunpack.c.l.s4 1983009808
        %v3910 = vunpack.c.0.s8 %v3909
        %v3911 = vlaneseq
        %v3912 = vshrl.u32 %v3911, 7
        %v3913 = vsub.s32 %v3910, %v3912
        %v3914 = vrot.slane %v3722, %v3913
        %v3915 = vcombine.low %v3906, %v3914
        %v3916 = vcombine.high %v3906, %v3914
        %v3918 = vunpack.c.l.s4 1934713408
        %v3919 = vunpack.c.0.s8 %v3918
        %v3920 = vlaneseq
        %v3921 = vshrl.u32 %v3920, 7
        %v3922 = vsub.s32 %v3919, %v3921
        %v3923 = vrot.slane %v3915, %v3922
        %v3925 = vunpack.c.l.s4 1934713408
        %v3926 = vunpack.c.0.s8 %v3925
        %v3927 = vlaneseq
        %v3928 = vshrl.u32 %v3927, 7
        %v3929 = vsub.s32 %v3926, %v3928
        %v3930 = vrot.slane %v3916, %v3929
        %v3931 = vcombine.high %v3923, 0
        %v3932 = vcombine.high %v3930, 0
        %v3936 = vunpack.c.l.b16 %v3753
        %v3937 = vunpack.c.l.b16 %v3821
        %v3938 = vunpack.c.l.b16 %v3889
        %v3939 = vpack.c.b16 %v3937, %v3936
        %v3940 = vpack.c.b16 %v3938, %v3938
        %v3944 = vunpack.c.l.b16 %v3787
        %v3945 = vunpack.c.l.b16 %v3855
        %v3946 = vunpack.c.l.b16 %v3923
        %v3947 = vpack.c.b16 %v3945, %v3944
        %v3948 = vpack.c.b16 %v3946, %v3946
        %3949 = vrot.lane.b32.xlu0 %v3947, 16
        %v3950 = vpop.permute.xlu0 %3949
        %3951 = vrot.lane.b32.xlu0 %v3948, 16
        %v3952 = vpop.permute.xlu0 %3951
        %v3956 = vunpack.c.l.b16 %v3761
        %v3957 = vunpack.c.l.b16 %v3829
        %v3958 = vunpack.c.l.b16 %v3897
        %v3959 = vpack.c.b16 %v3957, %v3956
        %v3960 = vpack.c.b16 %v3958, %v3958
        %3961 = vrot.lane.b32.xlu0 %v3959, 32
        %v3962 = vpop.permute.xlu0 %3961
        %3963 = vrot.lane.b32.xlu0 %v3960, 32
        %v3964 = vpop.permute.xlu0 %3963
        %v3968 = vunpack.c.l.b16 %v3795
        %v3969 = vunpack.c.l.b16 %v3863
        %v3970 = vunpack.c.l.b16 %v3931
        %v3971 = vpack.c.b16 %v3969, %v3968
        %v3972 = vpack.c.b16 %v3970, %v3970
        %3973 = vrot.lane.b32.xlu0 %v3971, 48
        %v3974 = vpop.permute.xlu0 %3973
        %3975 = vrot.lane.b32.xlu0 %v3972, 48
        %v3976 = vpop.permute.xlu0 %3975
        %v3980 = vunpack.c.l.b16 %v3760
        %v3981 = vunpack.c.l.b16 %v3828
        %v3982 = vunpack.c.l.b16 %v3896
        %v3983 = vpack.c.b16 %v3981, %v3980
        %v3984 = vpack.c.b16 %v3982, %v3982
        %3985 = vrot.lane.b32.xlu0 %v3983, 64
        %v3986 = vpop.permute.xlu0 %3985
        %3987 = vrot.lane.b32.xlu0 %v3984, 64
        %v3988 = vpop.permute.xlu0 %3987
        %v3992 = vunpack.c.l.b16 %v3794
        %v3993 = vunpack.c.l.b16 %v3862
        %v3994 = vunpack.c.l.b16 %v3930
        %v3995 = vpack.c.b16 %v3993, %v3992
        %v3996 = vpack.c.b16 %v3994, %v3994
        %3997 = vrot.lane.b32.xlu0 %v3995, 80
        %v3998 = vpop.permute.xlu0 %3997
        %3999 = vrot.lane.b32.xlu0 %v3996, 80
        %v4000 = vpop.permute.xlu0 %3999
        %v4004 = vunpack.c.l.b16 %v3762
        %v4005 = vunpack.c.l.b16 %v3830
        %v4006 = vunpack.c.l.b16 %v3898
        %v4007 = vpack.c.b16 %v4005, %v4004
        %v4008 = vpack.c.b16 %v4006, %v4006
        %4009 = vrot.lane.b32.xlu0 %v4007, 96
        %v4010 = vpop.permute.xlu0 %4009
        %4011 = vrot.lane.b32.xlu0 %v4008, 96
        %v4012 = vpop.permute.xlu0 %4011
        %v4016 = vunpack.c.l.b16 %v3796
        %v4017 = vunpack.c.l.b16 %v3864
        %v4018 = vunpack.c.l.b16 %v3932
        %v4019 = vpack.c.b16 %v4017, %v4016
        %v4020 = vpack.c.b16 %v4018, %v4018
        %4021 = vrot.lane.b32.xlu0 %v4019, 112
        %v4022 = vpop.permute.xlu0 %4021
        %4023 = vrot.lane.b32.xlu0 %v4020, 112
        %v4024 = vpop.permute.xlu0 %4023
        %v4027 = vsel %vm614, %v3939, %v3950
        %v4030 = vsel %vm614, %v3940, %v3952
        %v4032 = vsel %vm621, %v4027, %v3962
        %v4034 = vsel %vm621, %v4030, %v3964
        %v4036 = vsel %vm626, %v4032, %v3974
        %v4038 = vsel %vm626, %v4034, %v3976
        %v4040 = vsel %vm631, %v4036, %v3986
        %v4042 = vsel %vm631, %v4038, %v3988
        %v4044 = vsel %vm636, %v4040, %v3998
        %v4046 = vsel %vm636, %v4042, %v4000
        %v4048 = vsel %vm641, %v4044, %v4010
        %v4050 = vsel %vm641, %v4046, %v4012
        %v4052 = vsel %vm646, %v4048, %v4022
        %v4054 = vsel %vm646, %v4050, %v4024
        %v4055 = vshrl.u32 %v1315, 16
        %v4057 = vrot.slane %v4055, 5
        %v4058 = vshll.u32 %v1315, 16
        %v4060 = vrot.slane %v4058, 6
        %v4061 = vor.u32 %v4057, %v4060
        %v4062 = vshrl.u32 %v1317, 16
        %v4064 = vrot.slane %v4062, 5
        %v4065 = vshll.u32 %v1317, 16
        %v4067 = vrot.slane %v4065, 6
        %v4068 = vor.u32 %v4064, %v4067
        %v4069 = vsel %vm1857, %v4061, %v4068
        %vm4073 = vcmask 1044480
        %v4074 = vrot.slane %v1854, 3
        %v4075 = vrot.slane %v1856, 3
        %v4076 = vsel %vm4073, %v4074, %v4075
        %vm4078 = vsmask.f32 7424
        %v4079 = vshll.u32 %v2477, 16
        %v4081 = vrot.slane %v4079, 1
        %v4082 = vshrl.u32 %v2477, 16
        %v4084 = vor.u32 %v4082, %v4081
        %v4085 = vshll.u32 %v2479, 16
        %v4087 = vrot.slane %v4085, 1
        %v4088 = vsel %vm4078, %v4084, %v4087
        %v4089 = vshrl.u32 %v2479, 16
        %v4091 = vor.u32 %v4089, %v4087
        %v4096 = vrot.slane %v2974, 6
        %v4097 = vrot.slane %v2976, 6
        %v4098 = vsel %vm2480, %v4096, %v4097
        %vm4100 = vsmask.f32 4352
        %v4101 = vshrl.u32 %v3555, 16
        %v4103 = vrot.slane %v4101, 3
        %v4104 = vshll.u32 %v3555, 16
        %v4106 = vrot.slane %v4104, 4
        %v4107 = vor.u32 %v4103, %v4106
        %v4108 = vshrl.u32 %v3557, 16
        %v4110 = vrot.slane %v4108, 3
        %v4111 = vshll.u32 %v3557, 16
        %v4113 = vrot.slane %v4111, 4
        %v4114 = vor.u32 %v4110, %v4113
        %v4115 = vsel %vm4100, %v4107, %v4114
        %vm4119 = vcmask 1046528
        %v4120 = vrot.slane %v4052, 1
        %v4121 = vrot.slane %v4054, 1
        %v4122 = vsel %vm4119, %v4120, %v4121
        %vm4124 = vmand %vm1360, %vm1857
        %v4125 = vsel %vm4124, %v651, %v4061
        %vm4126 = vcmask 1044480
        %v4129 = vsel %vm4126, %v4069, %v4074
        %vm4131 = vcmask 1047552
        %vm4132 = vmand %vm4131, %vm4078
        %v4133 = vsel %vm4132, %v4076, %v4081
        %vm4134 = vcmask 1041408
        %v4137 = vsel %vm4134, %v4091, %v4096
        %vm4139 = vmand %vm4073, %vm4100
        %v4140 = vsel %vm4139, %v4098, %v4107
        %vm4141 = vcmask 1046528
        %v4144 = vsel %vm4141, %v4115, %v4120
        %v4146 = vld [vmem:[%s182] sm:$0xff]
        %v4148 = vunpack.c.l.b16 %v4146
        %v4149 = vunpack.c.h.b16 %v4146
        %v4150 = vpack.c.b16 %v4148, %v4148
        %v4151 = vpack.c.b16 %v4149, %v4149
        %vm4153 = vcmask 154624
        %v4155 = vsel %vm4153, %v4151, 0
        %vm4157 = vcmask 1040384
        %v4158 = vsel %vm4157, 4294967295, 65535
        %v4159 = vsel %vm4134, %v4158, 0
        %v4161 = vand.u32 %v4121, %v4159
        %4163 = vmatprep.subr.bf16.mxu0 0
        %4164 = vmatpush1.bf16.msra.mxu0 %v648
        %4165 = vmatprep.subr.bf16.mxu0 0
        %4166 = vmatpush1.bf16.msra.mxu0 %v4125
        %4167 = vmatprep.subr.bf16.mxu0 0
        %4168 = vmatpush1.bf16.msra.mxu0 %v4129
        %4169 = vmatprep.subr.bf16.mxu0 0
        %4170 = vmatpush1.bf16.msra.mxu0 %v4133
        %4171 = vmatprep.subr.bf16.mxu0 0
        %4172 = vmatpush1.bf16.msra.mxu0 %v4088
        %4173 = vmatprep.subr.bf16.mxu0 0
        %4174 = vmatpush1.bf16.msra.mxu0 %v4137
        %4175 = vmatprep.subr.bf16.mxu0 0
        %4176 = vmatpush1.bf16.msra.mxu0 %v4140
        %4177 = vmatprep.subr.bf16.mxu0 0
        %4178 = vmatpush1.bf16.msra.mxu0 %v4144
        %4179 = vmatprep.subr.bf16.mxu0 0
        %4180 = vmatpush1.bf16.msra.mxu0 %v4122
        %4181 = vmatprep.subr.bf16.mxu0 0
        %4182 = vmatpush1.bf16.msra.mxu0 %v4161
        %4183 = vmatprep.subr.bf16.mxu0 0
        %4184 = vmatpush1.bf16.msra.mxu0 0
        %4185 = vmatprep.subr.bf16.mxu0 0
        %4186 = vmatpush1.bf16.msra.mxu0 0
        %4187 = vmatprep.subr.bf16.mxu0 0
        %4188 = vmatpush1.bf16.msra.mxu0 0
        %4189 = vmatprep.subr.bf16.mxu0 0
        %4190 = vmatpush1.bf16.msra.mxu0 0
        %4191 = vmatprep.subr.bf16.mxu0 0
        %4192 = vmatpush1.bf16.msra.mxu0 0
        %4193 = vmatprep.subr.bf16.mxu0 0
        %4194 = vmatpush1.bf16.msra.mxu0 0
        %4195 = vmatprep.mubr.bf16.mxu0 %v4155
        %4196 = vmatmul.mubr.bf16.gmra.mrb[0].mxu0 %v4150
        %v4197 = vpop.f32.mrb[0].mxu0
        %v4198 = vadd.f32 0.0, %v4197
        %v4199 = vpop.f32.mrb[0].mxu0
        %v4200 = vpop.f32.mrb[0].mxu0
        %v4201 = vpop.f32.mrb[0].mxu0
        %4202 = vdwg.mxu0
        %4203 = vadd.xlane.f32.xlu0 %v4198
        %v4204 = vpop.xlane.xlu0 %4203
        %v4205 = vmul.f32 %v4198, %v4198
        %4206 = vadd.xlane.f32.xlu0 %v4205
        %v4207 = vpop.xlane.xlu0 %4206
        %p4208 = scmp.eq.s32.totalorder %s23, 0
        // Predicated region
        $region29: #{tpu_custom_call.1} parent=27 // pred_check
          %p4209 = pneg %p4208
        $region30: #{tpu_custom_call.1} parent=27 // pred_check_branch
          %4211 = sbr.rel (%p4209) target = $region32
        $region31: #{tpu_custom_call.1} parent=27 // pred_region
          %vm4212 = vcmask 7168
          %4213 = vst.msk [vmem:[#allocation2] sm:$0xff] %vm4212, 0.0
          %4214 = vst.msk [vmem:[#allocation3] sm:$0xff] %vm4212, 0.0
        $region32: #{tpu_custom_call.1} parent=27 // pred_fallthru
          _
        %v4215 = vld [vmem:[#allocation2] sm:$0xff]
        %v4216 = vadd.f32 %v4215, %v4204
        %vm4217 = vcmask 7168
        %4218 = vst.msk [vmem:[#allocation2] sm:$0xff] %vm4217, %v4216
        %v4219 = vld [vmem:[#allocation3] sm:$0xff]
        %v4220 = vadd.f32 %v4219, %v4207
        %4221 = vst.msk [vmem:[#allocation3] sm:$0xff] %vm4217, %v4220
        %v4223 = vcombine.high %v4198, %v4198
        %v4225 = vunpack.c.l.s4 1966171168
        %v4226 = vunpack.c.0.s8 %v4225
        %v4227 = vlaneseq
        %v4228 = vshrl.u32 %v4227, 7
        %v4229 = vsub.s32 %v4226, %v4228
        %v4230 = vrot.slane %v4198, %v4229
        %v4232 = vunpack.c.l.s4 1966171168
        %v4233 = vunpack.c.0.s8 %v4232
        %v4234 = vlaneseq
        %v4235 = vshrl.u32 %v4234, 7
        %v4236 = vsub.s32 %v4233, %v4235
        %v4237 = vrot.slane %v4223, %v4236
        %v4238 = vcombine.high %v4230, %v4230
        %v4239 = vcombine.high %v4237, %v4237
        %v4241 = vunpack.c.l.s4 1966171168
        %v4242 = vunpack.c.0.s8 %v4241
        %v4243 = vlaneseq
        %v4244 = vshrl.u32 %v4243, 7
        %v4245 = vsub.s32 %v4242, %v4244
        %v4246 = vrot.slane %v4230, %v4245
        %v4248 = vunpack.c.l.s4 1966171168
        %v4249 = vunpack.c.0.s8 %v4248
        %v4250 = vlaneseq
        %v4251 = vshrl.u32 %v4250, 7
        %v4252 = vsub.s32 %v4249, %v4251
        %v4253 = vrot.slane %v4237, %v4252
        %v4255 = vunpack.c.l.s4 1966171168
        %v4256 = vunpack.c.0.s8 %v4255
        %v4257 = vlaneseq
        %v4258 = vshrl.u32 %v4257, 7
        %v4259 = vsub.s32 %v4256, %v4258
        %v4260 = vrot.slane %v4238, %v4259
        %v4262 = vunpack.c.l.s4 1966171168
        %v4263 = vunpack.c.0.s8 %v4262
        %v4264 = vlaneseq
        %v4265 = vshrl.u32 %v4264, 7
        %v4266 = vsub.s32 %v4263, %v4265
        %v4267 = vrot.slane %v4239, %v4266
        %v4268 = vcombine.high %v4246, %v4246
        %v4269 = vcombine.high %v4253, %v4253
        %v4270 = vcombine.high %v4260, %v4260
        %v4271 = vcombine.high %v4267, %v4267
        %s4280 = scalar_lea.vmem %s172, %s23 [#allocation4]
        %4281 = vst [vmem:[%s4280] sm:$0x1] %v4246
        %4282 = vst [vmem:[%s4280 + $0x2] sm:$0x1] %v4260
        %4283 = vst [vmem:[%s4280 + $0x4] sm:$0x1] %v4268
        %4284 = vst [vmem:[%s4280 + $0x6] sm:$0x1] %v4270
        %4285 = vst [vmem:[%s4280 + $0x8] sm:$0x1] %v4253
        %4286 = vst [vmem:[%s4280 + $0xa] sm:$0x1] %v4267
        %4287 = vst [vmem:[%s4280 + $0xc] sm:$0x1] %v4269
        %4288 = vst [vmem:[%s4280 + $0xe] sm:$0x1] %v4271
        %p4289 = scmp.eq.s32.totalorder %s23, 1
        // Predicated region
        $region33: #{tpu_custom_call.1} parent=27 // pred_check
          %p4290 = pneg %p4289
        $region34: #{tpu_custom_call.1} parent=27 // pred_check_branch
          %4292 = sbr.rel (%p4290) target = $region36
        $region35: #{tpu_custom_call.1} parent=27 // pred_region
          %v4293 = vld [vmem:[#allocation2] sm:$0xff]
          %v4294 = vmul.f32 %v4293, 0.00390625
          %v4295 = vld [vmem:[#allocation3] sm:$0xff]
          %v4296 = vmul.f32 %v4295, 0.00390625
          %v4297 = vmul.f32 %v4294, %v4294
          %v4298 = vsub.f32 %v4296, %v4297
          %v4299 = vadd.f32 %v4298, 1e-05
          %v4300 = vrsqrt.pop %v4299
          %v4301 = vld [vmem:[%s172] sm:$0x3]
          %v4302 = vld [vmem:[%s172 + $0x2] sm:$0x3]
          %v4303 = vld [vmem:[%s172 + $0x4] sm:$0x3]
          %v4304 = vld [vmem:[%s172 + $0x6] sm:$0x3]
          %v4305 = vld [vmem:[%s172 + $0x8] sm:$0x3]
          %v4306 = vld [vmem:[%s172 + $0xa] sm:$0x3]
          %v4307 = vld [vmem:[%s172 + $0xc] sm:$0x3]
          %v4308 = vld [vmem:[%s172 + $0xe] sm:$0x3]
          %v4310 = vcombine.high %v4294, %v4294
          %v4312 = vunpack.c.l.s4 1966171168
          %v4313 = vunpack.c.0.s8 %v4312
          %v4314 = vlaneseq
          %v4315 = vshrl.u32 %v4314, 7
          %v4316 = vsub.s32 %v4313, %v4315
          %v4317 = vrot.slane %v4294, %v4316
          %v4319 = vunpack.c.l.s4 1966171168
          %v4320 = vunpack.c.0.s8 %v4319
          %v4321 = vlaneseq
          %v4322 = vshrl.u32 %v4321, 7
          %v4323 = vsub.s32 %v4320, %v4322
          %v4324 = vrot.slane %v4310, %v4323
          %v4325 = vcombine.high %v4317, %v4317
          %v4326 = vcombine.high %v4324, %v4324
          %v4328 = vunpack.c.l.s4 1966171168
          %v4329 = vunpack.c.0.s8 %v4328
          %v4330 = vlaneseq
          %v4331 = vshrl.u32 %v4330, 7
          %v4332 = vsub.s32 %v4329, %v4331
          %v4333 = vrot.slane %v4317, %v4332
          %v4335 = vunpack.c.l.s4 1966171168
          %v4336 = vunpack.c.0.s8 %v4335
          %v4337 = vlaneseq
          %v4338 = vshrl.u32 %v4337, 7
          %v4339 = vsub.s32 %v4336, %v4338
          %v4340 = vrot.slane %v4324, %v4339
          %v4342 = vunpack.c.l.s4 1966171168
          %v4343 = vunpack.c.0.s8 %v4342
          %v4344 = vlaneseq
          %v4345 = vshrl.u32 %v4344, 7
          %v4346 = vsub.s32 %v4343, %v4345
          %v4347 = vrot.slane %v4325, %v4346
          %v4349 = vunpack.c.l.s4 1966171168
          %v4350 = vunpack.c.0.s8 %v4349
          %v4351 = vlaneseq
          %v4352 = vshrl.u32 %v4351, 7
          %v4353 = vsub.s32 %v4350, %v4352
          %v4354 = vrot.slane %v4326, %v4353
          %v4355 = vcombine.high %v4333, %v4333
          %v4356 = vcombine.high %v4340, %v4340
          %v4357 = vcombine.high %v4347, %v4347
          %v4358 = vcombine.high %v4354, %v4354
          %v4359 = vlaneseq
          %v4360 = vshrl.u32 %v4359, 7
          %v4361 = vsub.s32 0, %v4360
          %v4362 = vrot.slane %v4333, %v4361
          %v4363 = vlaneseq
          %v4364 = vshrl.u32 %v4363, 7
          %v4365 = vsub.s32 0, %v4364
          %v4366 = vrot.slane %v4347, %v4365
          %v4367 = vlaneseq
          %v4368 = vshrl.u32 %v4367, 7
          %v4369 = vsub.s32 0, %v4368
          %v4370 = vrot.slane %v4355, %v4369
          %v4371 = vlaneseq
          %v4372 = vshrl.u32 %v4371, 7
          %v4373 = vsub.s32 0, %v4372
          %v4374 = vrot.slane %v4357, %v4373
          %v4375 = vlaneseq
          %v4376 = vshrl.u32 %v4375, 7
          %v4377 = vsub.s32 0, %v4376
          %v4378 = vrot.slane %v4340, %v4377
          %v4379 = vlaneseq
          %v4380 = vshrl.u32 %v4379, 7
          %v4381 = vsub.s32 0, %v4380
          %v4382 = vrot.slane %v4354, %v4381
          %v4383 = vlaneseq
          %v4384 = vshrl.u32 %v4383, 7
          %v4385 = vsub.s32 0, %v4384
          %v4386 = vrot.slane %v4356, %v4385
          %v4387 = vlaneseq
          %v4388 = vshrl.u32 %v4387, 7
          %v4389 = vsub.s32 0, %v4388
          %v4390 = vrot.slane %v4358, %v4389
          %4391 = vset.pattern.permute.xlu0 0
          %4392 = vperm.xlu0 %4391, %v4362
          %v4393 = vpop.permute.xlu0 %4392
          %4395 = vset.pattern.permute.xlu0 0
          %4396 = vperm.xlu0 %4395, %v4366
          %v4397 = vpop.permute.xlu0 %4396
          %4399 = vset.pattern.permute.xlu0 0
          %4400 = vperm.xlu0 %4399, %v4370
          %v4401 = vpop.permute.xlu0 %4400
          %4403 = vset.pattern.permute.xlu0 0
          %4404 = vperm.xlu0 %4403, %v4374
          %v4405 = vpop.permute.xlu0 %4404
          %4407 = vset.pattern.permute.xlu0 0
          %4408 = vperm.xlu0 %4407, %v4378
          %v4409 = vpop.permute.xlu0 %4408
          %4411 = vset.pattern.permute.xlu0 0
          %4412 = vperm.xlu0 %4411, %v4382
          %v4413 = vpop.permute.xlu0 %4412
          %4415 = vset.pattern.permute.xlu0 0
          %4416 = vperm.xlu0 %4415, %v4386
          %v4417 = vpop.permute.xlu0 %4416
          %4419 = vset.pattern.permute.xlu0 0
          %4420 = vperm.xlu0 %4419, %v4390
          %v4421 = vpop.permute.xlu0 %4420
          %v4423 = vsub.f32 %v4301, %v4393
          %v4424 = vsub.f32 %v4302, %v4397
          %v4425 = vsub.f32 %v4303, %v4401
          %v4426 = vsub.f32 %v4304, %v4405
          %v4427 = vsub.f32 %v4305, %v4409
          %v4428 = vsub.f32 %v4306, %v4413
          %v4429 = vsub.f32 %v4307, %v4417
          %v4430 = vsub.f32 %v4308, %v4421
          %v4432 = vcombine.high %v4300, %v4300
          %v4434 = vunpack.c.l.s4 1966171168
          %v4435 = vunpack.c.0.s8 %v4434
          %v4436 = vlaneseq
          %v4437 = vshrl.u32 %v4436, 7
          %v4438 = vsub.s32 %v4435, %v4437
          %v4439 = vrot.slane %v4300, %v4438
          %v4441 = vunpack.c.l.s4 1966171168
          %v4442 = vunpack.c.0.s8 %v4441
          %v4443 = vlaneseq
          %v4444 = vshrl.u32 %v4443, 7
          %v4445 = vsub.s32 %v4442, %v4444
          %v4446 = vrot.slane %v4432, %v4445
          %v4447 = vcombine.high %v4439, %v4439
          %v4448 = vcombine.high %v4446, %v4446
          %v4450 = vunpack.c.l.s4 1966171168
          %v4451 = vunpack.c.0.s8 %v4450
          %v4452 = vlaneseq
          %v4453 = vshrl.u32 %v4452, 7
          %v4454 = vsub.s32 %v4451, %v4453
          %v4455 = vrot.slane %v4439, %v4454
          %v4457 = vunpack.c.l.s4 1966171168
          %v4458 = vunpack.c.0.s8 %v4457
          %v4459 = vlaneseq
          %v4460 = vshrl.u32 %v4459, 7
          %v4461 = vsub.s32 %v4458, %v4460
          %v4462 = vrot.slane %v4446, %v4461
          %v4464 = vunpack.c.l.s4 1966171168
          %v4465 = vunpack.c.0.s8 %v4464
          %v4466 = vlaneseq
          %v4467 = vshrl.u32 %v4466, 7
          %v4468 = vsub.s32 %v4465, %v4467
          %v4469 = vrot.slane %v4447, %v4468
          %v4471 = vunpack.c.l.s4 1966171168
          %v4472 = vunpack.c.0.s8 %v4471
          %v4473 = vlaneseq
          %v4474 = vshrl.u32 %v4473, 7
          %v4475 = vsub.s32 %v4472, %v4474
          %v4476 = vrot.slane %v4448, %v4475
          %v4477 = vcombine.high %v4455, %v4455
          %v4478 = vcombine.high %v4462, %v4462
          %v4479 = vcombine.high %v4469, %v4469
          %v4480 = vcombine.high %v4476, %v4476
          %v4481 = vlaneseq
          %v4482 = vshrl.u32 %v4481, 7
          %v4483 = vsub.s32 0, %v4482
          %v4484 = vrot.slane %v4455, %v4483
          %v4485 = vlaneseq
          %v4486 = vshrl.u32 %v4485, 7
          %v4487 = vsub.s32 0, %v4486
          %v4488 = vrot.slane %v4469, %v4487
          %v4489 = vlaneseq
          %v4490 = vshrl.u32 %v4489, 7
          %v4491 = vsub.s32 0, %v4490
          %v4492 = vrot.slane %v4477, %v4491
          %v4493 = vlaneseq
          %v4494 = vshrl.u32 %v4493, 7
          %v4495 = vsub.s32 0, %v4494
          %v4496 = vrot.slane %v4479, %v4495
          %v4497 = vlaneseq
          %v4498 = vshrl.u32 %v4497, 7
          %v4499 = vsub.s32 0, %v4498
          %v4500 = vrot.slane %v4462, %v4499
          %v4501 = vlaneseq
          %v4502 = vshrl.u32 %v4501, 7
          %v4503 = vsub.s32 0, %v4502
          %v4504 = vrot.slane %v4476, %v4503
          %v4505 = vlaneseq
          %v4506 = vshrl.u32 %v4505, 7
          %v4507 = vsub.s32 0, %v4506
          %v4508 = vrot.slane %v4478, %v4507
          %v4509 = vlaneseq
          %v4510 = vshrl.u32 %v4509, 7
          %v4511 = vsub.s32 0, %v4510
          %v4512 = vrot.slane %v4480, %v4511
          %4513 = vset.pattern.permute.xlu0 0
          %4514 = vperm.xlu0 %4513, %v4484
          %v4515 = vpop.permute.xlu0 %4514
          %4517 = vset.pattern.permute.xlu0 0
          %4518 = vperm.xlu0 %4517, %v4488
          %v4519 = vpop.permute.xlu0 %4518
          %4521 = vset.pattern.permute.xlu0 0
          %4522 = vperm.xlu0 %4521, %v4492
          %v4523 = vpop.permute.xlu0 %4522
          %4525 = vset.pattern.permute.xlu0 0
          %4526 = vperm.xlu0 %4525, %v4496
          %v4527 = vpop.permute.xlu0 %4526
          %4529 = vset.pattern.permute.xlu0 0
          %4530 = vperm.xlu0 %4529, %v4500
          %v4531 = vpop.permute.xlu0 %4530
          %4533 = vset.pattern.permute.xlu0 0
          %4534 = vperm.xlu0 %4533, %v4504
          %v4535 = vpop.permute.xlu0 %4534
          %4537 = vset.pattern.permute.xlu0 0
          %4538 = vperm.xlu0 %4537, %v4508
          %v4539 = vpop.permute.xlu0 %4538
          %4541 = vset.pattern.permute.xlu0 0
          %4542 = vperm.xlu0 %4541, %v4512
          %v4543 = vpop.permute.xlu0 %4542
          %v4545 = vmul.f32 %v4423, %v4515
          %v4546 = vmul.f32 %v4424, %v4519
          %v4547 = vmul.f32 %v4425, %v4523
          %v4548 = vmul.f32 %v4426, %v4527
          %v4549 = vmul.f32 %v4427, %v4531
          %v4550 = vmul.f32 %v4428, %v4535
          %v4551 = vmul.f32 %v4429, %v4539
          %v4552 = vmul.f32 %v4430, %v4543
          %v4553 = vmax.f32 %v4545, 0.0
          %v4554 = vmax.f32 %v4546, 0.0
          %v4555 = vmax.f32 %v4547, 0.0
          %v4556 = vmax.f32 %v4548, 0.0
          %v4557 = vmax.f32 %v4549, 0.0
          %v4558 = vmax.f32 %v4550, 0.0
          %v4559 = vmax.f32 %v4551, 0.0
          %v4560 = vmax.f32 %v4552, 0.0
          %4561 = vst [vmem:[%s172] sm:$0x3] %v4553
          %4562 = vst [vmem:[%s172 + $0x2] sm:$0x3] %v4554
          %4563 = vst [vmem:[%s172 + $0x4] sm:$0x3] %v4555
          %4564 = vst [vmem:[%s172 + $0x6] sm:$0x3] %v4556
          %4565 = vst [vmem:[%s172 + $0x8] sm:$0x3] %v4557
          %4566 = vst [vmem:[%s172 + $0xa] sm:$0x3] %v4558
          %4567 = vst [vmem:[%s172 + $0xc] sm:$0x3] %v4559
          %4568 = vst [vmem:[%s172 + $0xe] sm:$0x3] %v4560
        $region36: #{tpu_custom_call.1} parent=27 // pred_fallthru
          _
        %s4569 = sand.u32 %s97, 1
        %s4570 = scalar_lea.sflag [#allocation5], %s4569
        %s4571 = sand.u32 %s97, 1
        %s4572 = smul.addr %s4571, 16
        %s4573 = scalar_lea.vmem [#allocation4], %s4572
        // Predicated region
        $region37: #{tpu_custom_call.1} parent=27 // pred_check
          %p4574 = pneg %p107
        $region38: #{tpu_custom_call.1} parent=27 // pred_check_branch
          %4576 = sbr.rel (%p4574) target = $region40
        $region39: #{tpu_custom_call.1} parent=27 // pred_region
          %s4577 = smul.u32 8, %s22
          %s4579 = ssub.s32 256, 256
          %4580 = vsyncadd %s4570, %s4579
          %s4581 = smul.addr %s21, 16
          %s4582 = sadd.s32 %s4577, %s4581
          %s4583 = smul.addr %s4582, 32
          %s4584 = scalar_lea.hbm %s2, %s4583
          %s4585 = sshll.u32 %s4573, 4
          %s4586 = int_to_ptr.vmem [resolvable:$true] %s4585
          %4591 = dma.vmem_to_hbm [thread:$0]  %s4586, 256, %s4584, %s4570, 32, 32, 2
        $region40: #{tpu_custom_call.1} parent=27 // pred_fallthru
          _
      $region28: #{tpu_custom_call.1} parent=5 // pred_fallthru
        _
      %p4592 = scmp.le.s32.totalorder 2, %s11
      // Predicated region
      $region41: #{tpu_custom_call.1} parent=5 // pred_check
        %p4593 = pneg %p4592
      $region42: #{tpu_custom_call.1} parent=5 // pred_check_branch
        %4595 = sbr.rel (%p4593) target = $region44
      $region43: #{tpu_custom_call.1} parent=5 // pred_region
        %s4596 = ssub.s32 %s11, 2
        // Predicated region
        $region45: #{tpu_custom_call.1} parent=43 // pred_check
          %p4597 = pneg %p113
        $region46: #{tpu_custom_call.1} parent=43 // pred_check_branch
          %4599 = sbr.rel (%p4597) target = $region48
        $region47: #{tpu_custom_call.1} parent=43 // pred_region
          %s4600 = sand.u32 %s98, 1
          %s4601 = scalar_lea.sflag [#allocation5], %s4600
          %s4602 = sand.u32 %s98, 1
          %s4603 = smul.addr %s4602, 16
          %s4604 = scalar_lea.vmem [#allocation4], %s4603
          %4605 = dma.done %s4601, 256
        $region48: #{tpu_custom_call.1} parent=43 // pred_fallthru
          _
      $region44: #{tpu_custom_call.1} parent=5 // pred_fallthru
        _
    $region6: #{tpu_custom_call.1} parent=1 // loop_footer
      %s15 = sadd.s32 1, %s11
    $region7: #{tpu_custom_call.1} parent=1 // loop_footer_branch
      %10 = sbr.rel target = $region3
    $region8: #{tpu_custom_call.1} parent=1 // loop_exit
      _
    %4606 = vsyncpa [#allocation5], 1
    %s4607 = scalar_lea.sflag [#allocation5], 1
    %4608 = vsyncpa %s4607, 1

</llo_original>
